<compile_context>
chip_gen: v6e
topology: v6e:2x2x1
jax: 0.10.0
libtpu: 0.0.40
codegen_flags: <defaults>
</compile_context>

<pallas_src>
import functools

import jax
import jax.numpy as jnp
from jax.experimental import pallas as pl
from jax.experimental.pallas import tpu as pltpu


def _compute_vmem_limit():
    try:
        cap = int(pltpu.get_tpu_info().vmem_capacity_bytes)
        return int(min(96 * 1024 * 1024, (cap * 3) // 4))
    except Exception:
        return 48 * 1024 * 1024  # safe on v7x's 64 MiB physical VMEM


_VMEM_LIMIT = _compute_vmem_limit()


def _ceil_to(x, m):
    return ((x + m - 1) // m) * m


def _tile(dim, desired):
    """Pick a tile size and padded extent: full dim if small, else `desired`."""
    if dim <= desired:
        return dim, dim
    return desired, _ceil_to(dim, desired)


# ----------------------------------------------------------------------------
# Tiled linear:  y = act(x @ W + b)          (bf16 MXU, f32 accumulate, bf16 out)
# ----------------------------------------------------------------------------
def _linear_kernel(x_ref, w_ref, b_ref, o_ref, acc_ref, *, activation):
    k = pl.program_id(2)

    @pl.when(k == 0)
    def _():
        acc_ref[...] = jnp.zeros_like(acc_ref)

    acc_ref[...] += jnp.dot(x_ref[...], w_ref[...],
                            preferred_element_type=jnp.float32)

    @pl.when(k == pl.num_programs(2) - 1)
    def _():
        y = acc_ref[...] + b_ref[...]
        if activation == "tanh":
            y = jnp.tanh(y)
        elif activation == "relu":
            y = jnp.maximum(y, 0.0)
        o_ref[...] = y.astype(o_ref.dtype)


def pallas_linear(x, w, b=None, activation=None, tm=256, tk=256, tn=256):
    """x: (M, K), w: (K, N) [bf16 weights], b: (N,) or None -> (M, N) bf16."""
    M, K = x.shape
    N = w.shape[1]
    tm, Mp = _tile(M, tm)
    tk, Kp = _tile(K, tk)
    tn, Np = _tile(N, tn)

    xb = x.astype(jnp.bfloat16)
    wb = w.astype(jnp.bfloat16)         # no-op when weights already bf16
    if (Mp, Kp) != (M, K):
        xb = jnp.pad(xb, ((0, Mp - M), (0, Kp - K)))
    if (Kp, Np) != (K, N):
        wb = jnp.pad(wb, ((0, Kp - K), (0, Np - N)))
    if b is None:
        b2 = jnp.zeros((1, Np), jnp.float32)
    else:
        b2 = b.astype(jnp.float32).reshape(1, N)
        if Np != N:
            b2 = jnp.pad(b2, ((0, 0), (0, Np - N)))

    kernel = functools.partial(_linear_kernel, activation=activation)
    out = pl.pallas_call(
        kernel,
        out_shape=jax.ShapeDtypeStruct((Mp, Np), jnp.bfloat16),
        grid=(Mp // tm, Np // tn, Kp // tk),
        in_specs=[
            pl.BlockSpec((tm, tk), lambda i, j, k: (i, k)),
            pl.BlockSpec((tk, tn), lambda i, j, k: (k, j)),
            pl.BlockSpec((1, tn), lambda i, j, k: (0, j)),
        ],
        out_specs=pl.BlockSpec((tm, tn), lambda i, j, k: (i, j)),
        scratch_shapes=[pltpu.VMEM((tm, tn), jnp.float32)],
        compiler_params=pltpu.CompilerParams(
            dimension_semantics=("parallel", "parallel", "arbitrary"),
            vmem_limit_bytes=_VMEM_LIMIT),
    )(xb, wb, b2)
    if (Mp, Np) != (M, N):
        out = out[:M, :N]
    return out


# ----------------------------------------------------------------------------
# Fused projection + residual + LayerNorm:   y = LN(residual + x @ W + b)
# Output width = full N (= hidden), so LN runs as a kernel epilogue (no extra
# HBM passes for the residual add / LayerNorm).
# ----------------------------------------------------------------------------
def _linear_res_ln_kernel(x_ref, w_ref, b_ref, r_ref, g_ref, be_ref, o_ref,
                          acc_ref, *, eps):
    k = pl.program_id(1)

    @pl.when(k == 0)
    def _():
        acc_ref[...] = jnp.zeros_like(acc_ref)

    acc_ref[...] += jnp.dot(x_ref[...], w_ref[...],
                            preferred_element_type=jnp.float32)

    @pl.when(k == pl.num_programs(1) - 1)
    def _():
        y = acc_ref[...] + b_ref[...] + r_ref[...].astype(jnp.float32)
        mu = jnp.mean(y, axis=-1, keepdims=True)
        var = jnp.mean((y - mu) ** 2, axis=-1, keepdims=True)
        y = (y - mu) * jax.lax.rsqrt(var + eps) * g_ref[...] + be_ref[...]
        o_ref[...] = y.astype(o_ref.dtype)


def pallas_linear_res_ln(x, w, b, residual, gamma, beta, eps=1e-5, tm=256, tk=256):
    """x: (M, K), w: (K, N), residual: (M, N) -> LN(residual + x@w + b), bf16."""
    M, K = x.shape
    N = w.shape[1]
    tm, Mp = _tile(M, tm)
    tk, Kp = _tile(K, tk)

    xb = x.astype(jnp.bfloat16)
    wb = w.astype(jnp.bfloat16)
    rb = residual.astype(jnp.bfloat16)
    if Mp != M:
        xb = jnp.pad(xb, ((0, Mp - M), (0, 0)))
        rb = jnp.pad(rb, ((0, Mp - M), (0, 0)))
    if Kp != K:
        xb = jnp.pad(xb, ((0, 0), (0, Kp - K)))
        wb = jnp.pad(wb, ((0, Kp - K), (0, 0)))
    b2 = b.astype(jnp.float32).reshape(1, N)
    g2 = gamma.astype(jnp.float32).reshape(1, N)
    be2 = beta.astype(jnp.float32).reshape(1, N)

    out = pl.pallas_call(
        functools.partial(_linear_res_ln_kernel, eps=eps),
        out_shape=jax.ShapeDtypeStruct((Mp, N), jnp.bfloat16),
        grid=(Mp // tm, Kp // tk),
        in_specs=[
            pl.BlockSpec((tm, tk), lambda i, k: (i, k)),
            pl.BlockSpec((tk, N), lambda i, k: (k, 0)),
            pl.BlockSpec((1, N), lambda i, k: (0, 0)),
            pl.BlockSpec((tm, N), lambda i, k: (i, 0)),
            pl.BlockSpec((1, N), lambda i, k: (0, 0)),
            pl.BlockSpec((1, N), lambda i, k: (0, 0)),
        ],
        out_specs=pl.BlockSpec((tm, N), lambda i, k: (i, 0)),
        scratch_shapes=[pltpu.VMEM((tm, N), jnp.float32)],
        compiler_params=pltpu.CompilerParams(
            dimension_semantics=("parallel", "arbitrary"),
            vmem_limit_bytes=_VMEM_LIMIT),
    )(xb, wb, b2, rb, g2, be2)
    if Mp != M:
        out = out[:M]
    return out


# ----------------------------------------------------------------------------
# Flash-style multi-head attention: grid = (B, heads, kv_tiles), online softmax.
# Causal mask generated in-kernel (additive -10000, as in the reference);
# key-padding bias passed as a tiny (B, 1, S) additive row.
# ----------------------------------------------------------------------------
def _attn_kernel(*refs, scale, causal, has_bias, tkv):
    if has_bias:
        q_ref, k_ref, v_ref, b_ref, o_ref, m_scr, l_scr, acc_scr = refs
    else:
        q_ref, k_ref, v_ref, o_ref, m_scr, l_scr, acc_scr = refs

    kv = pl.program_id(2)

    @pl.when(kv == 0)
    def _():
        m_scr[...] = jnp.full_like(m_scr, -1e30)
        l_scr[...] = jnp.zeros_like(l_scr)
        acc_scr[...] = jnp.zeros_like(acc_scr)

    q = q_ref[0, 0]                    # (T, d)  bf16
    k = k_ref[0, 0]                    # (tkv, d) bf16
    v = v_ref[0, 0]                    # (tkv, d) bf16

    s = jax.lax.dot_general(           # (T, tkv) f32, contract on head_dim
        q, k, dimension_numbers=(((1,), (1,)), ((), ())),
        preferred_element_type=jnp.float32) * scale

    if causal:
        T = s.shape[0]
        row = jax.lax.broadcasted_iota(jnp.int32, (T, tkv), 0)
        col = kv * tkv + jax.lax.broadcasted_iota(jnp.int32, (T, tkv), 1)
        s = s + jnp.where(row >= col, 0.0, -10000.0)
    if has_bias:                       # (1, tkv) broadcast over query rows
        s = s + b_ref[0, 0]

    m_prev = m_scr[...]
    m_new = jnp.maximum(m_prev, jnp.max(s, axis=-1, keepdims=True))
    alpha = jnp.exp(m_prev - m_new)
    p = jnp.exp(s - m_new)
    l_scr[...] = l_scr[...] * alpha + jnp.sum(p, axis=-1, keepdims=True)
    acc_scr[...] = acc_scr[...] * alpha + jax.lax.dot_general(
        p.astype(v.dtype), v, dimension_numbers=(((1,), (0,)), ((), ())),
        preferred_element_type=jnp.float32)
    m_scr[...] = m_new

    @pl.when(kv == pl.num_programs(2) - 1)
    def _():
        o_ref[0, 0] = (acc_scr[...] *
                       pl.reciprocal(l_scr[...], approx=True)).astype(o_ref.dtype)


def pallas_attention(q, k, v, *, scale, causal, key_pad_bias=None, tkv=512):
    """q: (B, Hh, T, d), k/v: (B, Hh, S, d), key_pad_bias: (B, 1, S) additive.

    Returns (B, Hh, T, d) bf16.
    """
    B, Hh, T, d = q.shape
    S = k.shape[2]
    tkv, Sp = _tile(S, tkv)
    has_bias = key_pad_bias is not None

    qb = q.astype(jnp.bfloat16)
    kb = k.astype(jnp.bfloat16)
    vb = v.astype(jnp.bfloat16)
    bias = None
    if Sp != S:
        kb = jnp.pad(kb, ((0, 0), (0, 0), (0, Sp - S), (0, 0)))
        vb = jnp.pad(vb, ((0, 0), (0, 0), (0, Sp - S), (0, 0)))
        if not has_bias:   # mask the padded keys for the non-causal path too
            bias = jnp.zeros((B, 1, S), jnp.float32)
            has_bias = True
    if has_bias:
        bias = key_pad_bias.astype(jnp.float32) if bias is None else bias
        if Sp != S:
            bias = jnp.pad(bias, ((0, 0), (0, 0), (0, Sp - S)),
                           constant_values=-1e30)

    kernel = functools.partial(_attn_kernel, scale=scale, causal=causal,
                               has_bias=has_bias, tkv=tkv)
    in_specs = [
        pl.BlockSpec((1, 1, T, d), lambda b, h, kv: (b, h, 0, 0)),
        pl.BlockSpec((1, 1, tkv, d), lambda b, h, kv: (b, h, kv, 0)),
        pl.BlockSpec((1, 1, tkv, d), lambda b, h, kv: (b, h, kv, 0)),
    ]
    args = [qb, kb, vb]
    if has_bias:
        in_specs.append(pl.BlockSpec((1, 1, tkv), lambda b, h, kv: (b, 0, kv)))
        args.append(bias)

    return pl.pallas_call(
        kernel,
        out_shape=jax.ShapeDtypeStruct((B, Hh, T, d), jnp.bfloat16),
        grid=(B, Hh, Sp // tkv),
        in_specs=in_specs,
        out_specs=pl.BlockSpec((1, 1, T, d), lambda b, h, kv: (b, h, 0, 0)),
        scratch_shapes=[pltpu.VMEM((T, 1), jnp.float32),
                        pltpu.VMEM((T, 1), jnp.float32),
                        pltpu.VMEM((T, d), jnp.float32)],
        compiler_params=pltpu.CompilerParams(
            dimension_semantics=("parallel", "parallel", "arbitrary"),
            vmem_limit_bytes=_VMEM_LIMIT),
    )(*args)


# ----------------------------------------------------------------------------
# Fused lm_head (weight-tied, no bias) + per-token cross entropy.
# Streams vocab tiles with an online logsumexp; logits never hit HBM.
# word_emb stays in its native (V, H) layout; NLL output is lane-dense (1, N).
# ----------------------------------------------------------------------------
def _lmhead_xent_kernel(lab_ref, h_ref, w_ref, nll_ref, m_scr, l_scr, t_scr,
                        *, vocab_size, tv, need_vpad_mask):
    j = pl.program_id(1)

    @pl.when(j == 0)
    def _():
        m_scr[...] = jnp.full_like(m_scr, -1e30)
        l_scr[...] = jnp.zeros_like(l_scr)
        t_scr[...] = jnp.zeros_like(t_scr)

    # logitsᵀ tile: (tv, tnr) = w_tile (tv, H) · hᵀ (H, tnr); contract on H.
    logits = jax.lax.dot_general(
        w_ref[...], h_ref[...],
        dimension_numbers=(((1,), (1,)), ((), ())),
        preferred_element_type=jnp.float32)

    vrow = jax.lax.broadcasted_iota(jnp.int32, (tv, 1), 0)      # hoisted (tv,1) iota
    if need_vpad_mask:                                           # only when Vp != V
        logits = jnp.where(vrow < (vocab_size - j * tv), logits, -1e30)

    # online logsumexp over vocab tiles (per hidden row = per lane)
    m_prev = m_scr[...]
    m_new = jnp.maximum(m_prev, jnp.max(logits, axis=0, keepdims=True))
    alpha = jnp.exp(m_prev - m_new)
    l_scr[...] = l_scr[...] * alpha + jnp.sum(jnp.exp(logits - m_new),
                                              axis=0, keepdims=True)
    m_scr[...] = m_new

    # target-logit gather folded into the streamed pass
    lab_local = lab_ref[...] - j * tv                            # (1, tnr)
    t_scr[...] += jnp.sum(jnp.where(vrow == lab_local, logits, 0.0),
                          axis=0, keepdims=True)

    @pl.when(j == pl.num_programs(1) - 1)
    def _():
        nll_ref[...] = (m_scr[...] + jnp.log(l_scr[...])) - t_scr[...]


def pallas_lmhead_xent(hidden, word_emb, labels, tn_rows=1024, tv=512):
    """hidden: (N, H), word_emb: (V, H) bf16, labels: (N,) -> per-token NLL (N,)."""
    N, H = hidden.shape
    V = word_emb.shape[0]
    tnr, Np = _tile(N, tn_rows)
    tvv, Vp = _tile(V, tv)

    h = hidden.astype(jnp.bfloat16)
    if Np != N:
        h = jnp.pad(h, ((0, Np - N), (0, 0)))
    w = word_emb.astype(jnp.bfloat16)
    if Vp != V:
        w = jnp.pad(w, ((0, Vp - V), (0, 0)))
    lab = labels.astype(jnp.int32)
    if Np != N:
        # padded label rows produce garbage NLL; they are sliced off below.
        lab = jnp.pad(lab, (0, Np - N))
    lab = lab.reshape(1, Np)

    kernel = functools.partial(_lmhead_xent_kernel, vocab_size=V, tv=tvv,
                               need_vpad_mask=(Vp != V))
    nll = pl.pallas_call(
        kernel,
        out_shape=jax.ShapeDtypeStruct((1, Np), jnp.float32),
        grid=(Np // tnr, Vp // tvv),
        in_specs=[
            pl.BlockSpec((1, tnr), lambda i, j: (0, i)),
            pl.BlockSpec((tnr, H), lambda i, j: (i, 0)),
            pl.BlockSpec((tvv, H), lambda i, j: (j, 0)),
        ],
        out_specs=pl.BlockSpec((1, tnr), lambda i, j: (0, i)),
        scratch_shapes=[pltpu.VMEM((1, tnr), jnp.float32)] * 3,
        compiler_params=pltpu.CompilerParams(
            dimension_semantics=("parallel", "arbitrary"),
            vmem_limit_bytes=_VMEM_LIMIT),
    )(lab, h, w)
    return nll[0, :N]


# ----------------------------------------------------------------------------
# Plain-JAX glue (layout plumbing, embedding layernorm, embeddings)
# ----------------------------------------------------------------------------
def layer_norm(x, gamma, beta, eps=1e-5):
    mu = jnp.mean(x, axis=-1, keepdims=True)
    var = jnp.mean((x - mu) ** 2, axis=-1, keepdims=True)
    return (x - mu) / jnp.sqrt(var + eps) * gamma + beta


def embed(ids, params):
    """ids: (B, L) -> (B, L, H): word + position embeddings + LayerNorm (f32)."""
    we = params["word_emb"][ids]
    pe = params["pos_emb"][: ids.shape[1]][None, :, :]
    return layer_norm(we + pe, params["emb_ln_g"], params["emb_ln_b"])


def _split_heads(x, num_heads):   # (L, B, E) -> (B, Hh, L, d)   (bf16)
    L, B, E = x.shape
    d = E // num_heads
    return x.reshape(L, B, num_heads, d).transpose(1, 2, 0, 3)


def _merge_heads(x):              # (B, Hh, L, d) -> (L, B, E)   (bf16)
    B, Hh, L, d = x.shape
    return x.transpose(2, 0, 1, 3).reshape(L, B, Hh * d)


def decoder_layer(x2d, T, B, memory2d, S, key_pad_bias, p, num_heads):
    """nn.TransformerDecoderLayer (post-LN, relu, no dropout at eval).

    x2d: (T*B, E) bf16, memory2d: (S*B, E) bf16.  Returns (T*B, E) bf16.
    """
    E = x2d.shape[-1]
    d = E // num_heads
    scale = 1.0 / (d ** 0.5)

    # --- causal self-attention (fused QKV projection) -------------------------
    sa = p["self_attn"]
    qkv = pallas_linear(x2d, sa["w_qkv"], sa["b_qkv"]).reshape(T, B, 3, E)
    q = _split_heads(qkv[:, :, 0, :], num_heads)
    k = _split_heads(qkv[:, :, 1, :], num_heads)
    v = _split_heads(qkv[:, :, 2, :], num_heads)
    o = pallas_attention(q, k, v, scale=scale, causal=True)
    o2d = _merge_heads(o).reshape(T * B, E)
    x1 = pallas_linear_res_ln(o2d, sa["wo"], sa["bo"], x2d,
                              p["ln1_g"], p["ln1_b"])

    # --- encoder-decoder attention (fused KV projection) ----------------------
    ca = p["cross_attn"]
    qx = pallas_linear(x1, ca["wq"], ca["bq"]).reshape(T, B, E)
    kv = pallas_linear(memory2d, ca["w_kv"], ca["b_kv"]).reshape(S, B, 2, E)
    qh = _split_heads(qx, num_heads)
    kh = _split_heads(kv[:, :, 0, :], num_heads)
    vh = _split_heads(kv[:, :, 1, :], num_heads)
    o = pallas_attention(qh, kh, vh, scale=scale, causal=False,
                         key_pad_bias=key_pad_bias)
    o2d = _merge_heads(o).reshape(T * B, E)
    x2 = pallas_linear_res_ln(o2d, ca["wo"], ca["bo"], x1,
                              p["ln2_g"], p["ln2_b"])

    # --- FFN (relu), second matmul fused with residual + LN -------------------
    h = pallas_linear(x2, p["ffn_w1"], p["ffn_b1"], activation="relu")
    x3 = pallas_linear_res_ln(h, p["ffn_w2"], p["ffn_b2"], x2,
                              p["ln3_g"], p["ln3_b"])
    return x3


# ----------------------------------------------------------------------------
# Seq2Seq forward (training branch: target_ids is not None)
# ----------------------------------------------------------------------------
def seq2seq_forward(params, source_ids, source_mask, target_ids, target_mask,
                    *, num_heads):
    B, S = source_ids.shape
    T = target_ids.shape[1]
    H = params["word_emb"].shape[1]

    # TODO(synk): full pretrained RobertaModel encoder stack not reproduced here;
    # synthetic encoder = embeddings (word + pos + LayerNorm) stands in for outputs[0].
    enc = embed(source_ids, params)                              # (B, S, H) f32
    memory2d = jnp.transpose(enc, (1, 0, 2)).reshape(S * B, H).astype(jnp.bfloat16)

    # Key-padding additive bias (B, 1, S): 0 where attended, -1e30 where padded.
    key_pad_bias = jnp.where(source_mask[:, None, :] == 0, -1e30, 0.0)

    tgt = jnp.transpose(embed(target_ids, params), (1, 0, 2))    # (T, B, H) f32
    x2d = tgt.reshape(T * B, H).astype(jnp.bfloat16)

    for layer_p in params["decoder_layers"]:
        x2d = decoder_layer(x2d, T, B, memory2d, S, key_pad_bias,
                            layer_p, num_heads)

    # hidden_states = tanh(dense(out)).permute([1, 0, 2])
    hs = pallas_linear(x2d, params["dense_w"], params["dense_b"],
                       activation="tanh").reshape(T, B, H)
    hidden_states = jnp.transpose(hs, (1, 0, 2))                 # (B, T, H) bf16

    # Shifted LM loss; lm_head tied to word_emb (no bias), fused with cross-entropy.
    active = (target_mask[:, 1:] != 0).reshape(-1).astype(jnp.float32)
    hidden_shift = hidden_states[:, :-1, :].reshape(-1, H)       # (B*(T-1), H)
    shift_labels = target_ids[:, 1:].reshape(-1)

    nll = pallas_lmhead_xent(hidden_shift, params["word_emb_bf16"], shift_labels)
    active_sum = jnp.sum(active)
    loss = jnp.sum(nll * active) / active_sum        # CE mean over active tokens
    return loss, loss * active_sum, active_sum


# ----------------------------------------------------------------------------
# Deterministic parameter init (bf16 matmul weights, fused QKV / KV layouts)
# ----------------------------------------------------------------------------
def init_params(key, vocab, hidden, ffn, num_layers, max_pos):
    def norm_f32(k, shape):
        return (0.02 * jax.random.normal(k, shape)).astype(jnp.float32)

    def norm_bf16(k, shape):
        return (0.02 * jax.random.normal(k, shape)).astype(jnp.bfloat16)

    ks = jax.random.split(key, 4 + num_layers)
    word_emb = norm_f32(ks[0], (vocab, hidden))
    params = {
        "word_emb": word_emb,                          # f32 master (embedding lookup)
        "word_emb_bf16": word_emb.astype(jnp.bfloat16),  # tied lm_head copy
        "pos_emb": norm_f32(ks[1], (max_pos, hidden)),
        "emb_ln_g": jnp.ones((hidden,), jnp.float32),
        "emb_ln_b": jnp.zeros((hidden,), jnp.float32),
        "dense_w": norm_bf16(ks[2], (hidden, hidden)),
        "dense_b": jnp.zeros((hidden,), jnp.float32),
    }

    def self_attn_params(k):
        kq, kk, kv, ko = jax.random.split(k, 4)
        w_qkv = jnp.concatenate([norm_bf16(kq, (hidden, hidden)),
                                 norm_bf16(kk, (hidden, hidden)),
                                 norm_bf16(kv, (hidden, hidden))], axis=1)
        return {
            "w_qkv": w_qkv,
            "b_qkv": jnp.zeros((3 * hidden,), jnp.float32),
            "wo": norm_bf16(ko, (hidden, hidden)),
            "bo": jnp.zeros((hidden,), jnp.float32),
        }

    def cross_attn_params(k):
        kq, kk, kv, ko = jax.random.split(k, 4)
        w_kv = jnp.concatenate([norm_bf16(kk, (hidden, hidden)),
                                norm_bf16(kv, (hidden, hidden))], axis=1)
        return {
            "wq": norm_bf16(kq, (hidden, hidden)),
            "bq": jnp.zeros((hidden,), jnp.float32),
            "w_kv": w_kv,
            "b_kv": jnp.zeros((2 * hidden,), jnp.float32),
            "wo": norm_bf16(ko, (hidden, hidden)),
            "bo": jnp.zeros((hidden,), jnp.float32),
        }

    layers = []
    for li in range(num_layers):
        lk = jax.random.split(ks[4 + li], 4)
        layers.append({
            "self_attn": self_attn_params(lk[0]),
            "cross_attn": cross_attn_params(lk[1]),
            "ffn_w1": norm_bf16(lk[2], (hidden, ffn)),
            "ffn_b1": jnp.zeros((ffn,), jnp.float32),
            "ffn_w2": norm_bf16(lk[3], (ffn, hidden)),
            "ffn_b2": jnp.zeros((hidden,), jnp.float32),
            "ln1_g": jnp.ones((hidden,), jnp.float32),
            "ln1_b": jnp.zeros((hidden,), jnp.float32),
            "ln2_g": jnp.ones((hidden,), jnp.float32),
            "ln2_b": jnp.zeros((hidden,), jnp.float32),
            "ln3_g": jnp.ones((hidden,), jnp.float32),
            "ln3_b": jnp.zeros((hidden,), jnp.float32),
        })
    params["decoder_layers"] = layers
    return params


# ----------------------------------------------------------------------------
# Main
# ----------------------------------------------------------------------------
if __name__ == "__main__":
    # TODO(synk): the beam-search inference branch (target_ids is None) uses the
    # host-side Beam class with data-dependent Python control flow; not translated.
    B, S, T = 2, 16, 8
    HIDDEN, HEADS, FFN, VOCAB, LAYERS = 32, 4, 64, 64, 2

    key = jax.random.PRNGKey(0)
    kp, k1, k2 = jax.random.split(key, 3)

    params = init_params(kp, VOCAB, HIDDEN, FFN, LAYERS, max_pos=64)

    source_ids = jax.random.randint(k1, (B, S), 0, VOCAB, dtype=jnp.int32)
    target_ids = jax.random.randint(k2, (B, T), 0, VOCAB, dtype=jnp.int32)
    source_mask = jnp.ones((B, S), jnp.int32).at[1, 12:].set(0)
    target_mask = jnp.ones((B, T), jnp.int32).at[1, 6:].set(0)

    fwd = jax.jit(functools.partial(seq2seq_forward, num_heads=HEADS))
    loss, loss_times_count, active_count = fwd(params, source_ids, source_mask,
                                               target_ids, target_mask)
    jax.block_until_ready((loss, loss_times_count, active_count))

    assert jnp.isfinite(loss), "loss is not finite"
    print("KERNEL_OK")
</pallas_src>

<mosaic_0001>
module attributes {stable_mosaic.version = 11 : i64} {
  func.func @_linear_kernel(%arg0: i32, %arg1: i32, %arg2: i32, %arg3: memref<16x32xbf16, #tpu.memory_space<vmem>>, %arg4: memref<32x96xbf16, #tpu.memory_space<vmem>>, %arg5: memref<1x96xf32, #tpu.memory_space<vmem>>, %arg6: memref<16x96xbf16, #tpu.memory_space<vmem>>, %arg7: memref<16x96xf32, #tpu.memory_space<vmem>>) attributes {dimension_semantics = [#tpu.dimension_semantics<parallel>, #tpu.dimension_semantics<parallel>, #tpu.dimension_semantics<arbitrary>], iteration_bounds = array<i64: 1, 1, 1>, scalar_prefetch = 0 : i64, scratch_operands = 1 : i64, tpu.core_type = #tpu.core_type<tc>, window_params = [{transform_indices = @transform_0, window_bounds = array<i64: 16, 32>}, {transform_indices = @transform_1, window_bounds = array<i64: 32, 96>}, {transform_indices = @transform_2, window_bounds = array<i64: 1, 96>}, {transform_indices = @transform_3, window_bounds = array<i64: 16, 96>}]} {
    %c0_i32 = arith.constant 0 : i32
    %0 = arith.cmpi eq, %arg2, %c0_i32 : i32
    %1 = arith.extui %0 : i1 to i32
    %c0_i32_0 = arith.constant 0 : i32
    %2 = arith.cmpi ne, %1, %c0_i32_0 : i32
    scf.if %2 {
      %cst_10 = arith.constant 0.000000e+00 : f32
      %12 = vector.broadcast %cst_10 : f32 to vector<16x96xf32>
      %c0_11 = arith.constant 0 : index
      %c0_12 = arith.constant 0 : index
      %13 = vector.load %arg7[%c0_11, %c0_12] : memref<16x96xf32, #tpu.memory_space<vmem>>, vector<16x96xf32>
      tpu.vector_store %arg7[%c0_11, %c0_12], %12 {strides = array<i32>} : memref<16x96xf32, #tpu.memory_space<vmem>>, vector<16x96xf32>,
    } else {
    }
    %c0 = arith.constant 0 : index
    %c0_1 = arith.constant 0 : index
    %3 = vector.load %arg7[%c0, %c0_1] : memref<16x96xf32, #tpu.memory_space<vmem>>, vector<16x96xf32>
    %c0_2 = arith.constant 0 : index
    %c0_3 = arith.constant 0 : index
    %4 = vector.load %arg3[%c0_2, %c0_3] : memref<16x32xbf16, #tpu.memory_space<vmem>>, vector<16x32xbf16>
    %c0_4 = arith.constant 0 : index
    %c0_5 = arith.constant 0 : index
    %5 = vector.load %arg4[%c0_4, %c0_5] : memref<32x96xbf16, #tpu.memory_space<vmem>>, vector<32x96xbf16>
    %cst = arith.constant dense<0.000000e+00> : vector<16x96xf32>
    %6 = tpu.matmul %4, %5, %cst {dimension_numbers = #tpu.dot_dimension_numbers<[1], [0], [0], [1], [0, 0, 1, 1], [], []>} : vector<16x32xbf16>, vector<32x96xbf16>, vector<16x96xf32> -> vector<16x96xf32>
    %7 = arith.addf %3, %6 : vector<16x96xf32>
    %c0_6 = arith.constant 0 : index
    %c0_7 = arith.constant 0 : index
    %8 = vector.load %arg7[%c0_6, %c0_7] : memref<16x96xf32, #tpu.memory_space<vmem>>, vector<16x96xf32>
    tpu.vector_store %arg7[%c0_6, %c0_7], %7 {strides = array<i32>} : memref<16x96xf32, #tpu.memory_space<vmem>>, vector<16x96xf32>,
    %c0_i32_8 = arith.constant 0 : i32
    %9 = arith.cmpi eq, %arg2, %c0_i32_8 : i32
    %10 = arith.extui %9 : i1 to i32
    %c0_i32_9 = arith.constant 0 : i32
    %11 = arith.cmpi ne, %10, %c0_i32_9 : i32
    scf.if %11 {
      %c0_10 = arith.constant 0 : index
      %c0_11 = arith.constant 0 : index
      %12 = vector.load %arg7[%c0_10, %c0_11] : memref<16x96xf32, #tpu.memory_space<vmem>>, vector<16x96xf32>
      %c0_12 = arith.constant 0 : index
      %c0_13 = arith.constant 0 : index
      %13 = vector.load %arg5[%c0_12, %c0_13] : memref<1x96xf32, #tpu.memory_space<vmem>>, vector<1x96xf32>
      %14 = vector.broadcast %13 : vector<1x96xf32> to vector<16x96xf32>
      %15 = arith.addf %12, %14 : vector<16x96xf32>
      %16 = arith.truncf %15 : vector<16x96xf32> to vector<16x96xbf16>
      %c0_14 = arith.constant 0 : index
      %c0_15 = arith.constant 0 : index
      %17 = vector.load %arg6[%c0_14, %c0_15] : memref<16x96xbf16, #tpu.memory_space<vmem>>, vector<16x96xbf16>
      tpu.vector_store %arg6[%c0_14, %c0_15], %16 {strides = array<i32>} : memref<16x96xbf16, #tpu.memory_space<vmem>>, vector<16x96xbf16>,
    } else {
    }
    return
  }
  func.func @transform_0(%arg0: i32, %arg1: i32, %arg2: i32) -> (i32, i32) {
    %c0_i32 = arith.constant 0 : i32
    return %arg0, %arg2 : i32, i32
  }
  func.func @transform_1(%arg0: i32, %arg1: i32, %arg2: i32) -> (i32, i32) {
    %c0_i32 = arith.constant 0 : i32
    return %arg2, %arg1 : i32, i32
  }
  func.func @transform_2(%arg0: i32, %arg1: i32, %arg2: i32) -> (i32, i32) {
    %c0_i32 = arith.constant 0 : i32
    %c0_i32_0 = arith.constant 0 : i32
    return %c0_i32, %arg1 : i32, i32
  }
  func.func @transform_3(%arg0: i32, %arg1: i32, %arg2: i32) -> (i32, i32) {
    %c0_i32 = arith.constant 0 : i32
    return %arg0, %arg1 : i32, i32
  }
}

module attributes {stable_mosaic.version = 11 : i64} {
  func.func @_attn_kernel(%arg0: i32, %arg1: i32, %arg2: i32, %arg3: memref<1x1x8x8xbf16, #tpu.memory_space<vmem>>, %arg4: memref<1x1x8x8xbf16, #tpu.memory_space<vmem>>, %arg5: memref<1x1x8x8xbf16, #tpu.memory_space<vmem>>, %arg6: memref<1x1x8x8xbf16, #tpu.memory_space<vmem>>, %arg7: memref<8x1xf32, #tpu.memory_space<vmem>>, %arg8: memref<8x1xf32, #tpu.memory_space<vmem>>, %arg9: memref<8x8xf32, #tpu.memory_space<vmem>>) attributes {dimension_semantics = [#tpu.dimension_semantics<parallel>, #tpu.dimension_semantics<parallel>, #tpu.dimension_semantics<arbitrary>], iteration_bounds = array<i64: 2, 4, 1>, scalar_prefetch = 0 : i64, scratch_operands = 3 : i64, tpu.core_type = #tpu.core_type<tc>, window_params = [{transform_indices = @transform_0, window_bounds = array<i64: 1, 1, 8, 8>}, {transform_indices = @transform_1, window_bounds = array<i64: 1, 1, 8, 8>}, {transform_indices = @transform_2, window_bounds = array<i64: 1, 1, 8, 8>}, {transform_indices = @transform_3, window_bounds = array<i64: 1, 1, 8, 8>}]} {
    %c0_i32 = arith.constant 0 : i32
    %0 = arith.cmpi eq, %arg2, %c0_i32 : i32
    %1 = arith.extui %0 : i1 to i32
    %c0_i32_0 = arith.constant 0 : i32
    %2 = arith.cmpi ne, %1, %c0_i32_0 : i32
    scf.if %2 {
      %cst_32 = arith.constant -1.000000e+30 : f32
      %48 = vector.broadcast %cst_32 : f32 to vector<8x1xf32>
      %c0_33 = arith.constant 0 : index
      %c0_34 = arith.constant 0 : index
      %49 = vector.load %arg7[%c0_33, %c0_34] : memref<8x1xf32, #tpu.memory_space<vmem>>, vector<8x1xf32>
      tpu.vector_store %arg7[%c0_33, %c0_34], %48 {strides = array<i32>} : memref<8x1xf32, #tpu.memory_space<vmem>>, vector<8x1xf32>,
      %cst_35 = arith.constant 0.000000e+00 : f32
      %50 = vector.broadcast %cst_35 : f32 to vector<8x1xf32>
      %c0_36 = arith.constant 0 : index
      %c0_37 = arith.constant 0 : index
      %51 = vector.load %arg8[%c0_36, %c0_37] : memref<8x1xf32, #tpu.memory_space<vmem>>, vector<8x1xf32>
      tpu.vector_store %arg8[%c0_36, %c0_37], %50 {strides = array<i32>} : memref<8x1xf32, #tpu.memory_space<vmem>>, vector<8x1xf32>,
      %cst_38 = arith.constant 0.000000e+00 : f32
      %52 = vector.broadcast %cst_38 : f32 to vector<8x8xf32>
      %c0_39 = arith.constant 0 : index
      %c0_40 = arith.constant 0 : index
      %53 = vector.load %arg9[%c0_39, %c0_40] : memref<8x8xf32, #tpu.memory_space<vmem>>, vector<8x8xf32>
      tpu.vector_store %arg9[%c0_39, %c0_40], %52 {strides = array<i32>} : memref<8x8xf32, #tpu.memory_space<vmem>>, vector<8x8xf32>,
    } else {
    }
    %c0 = arith.constant 0 : index
    %c0_1 = arith.constant 0 : index
    %c0_2 = arith.constant 0 : index
    %c0_3 = arith.constant 0 : index
    %3 = vector.load %arg3[%c0, %c0_1, %c0_2, %c0_3] : memref<1x1x8x8xbf16, #tpu.memory_space<vmem>>, vector<1x1x8x8xbf16>
    %4 = vector.shape_cast %3 : vector<1x1x8x8xbf16> to vector<8x8xbf16>
    %c0_4 = arith.constant 0 : index
    %c0_5 = arith.constant 0 : index
    %c0_6 = arith.constant 0 : index
    %c0_7 = arith.constant 0 : index
    %5 = vector.load %arg4[%c0_4, %c0_5, %c0_6, %c0_7] : memref<1x1x8x8xbf16, #tpu.memory_space<vmem>>, vector<1x1x8x8xbf16>
    %6 = vector.shape_cast %5 : vector<1x1x8x8xbf16> to vector<8x8xbf16>
    %c0_8 = arith.constant 0 : index
    %c0_9 = arith.constant 0 : index
    %c0_10 = arith.constant 0 : index
    %c0_11 = arith.constant 0 : index
    %7 = vector.load %arg5[%c0_8, %c0_9, %c0_10, %c0_11] : memref<1x1x8x8xbf16, #tpu.memory_space<vmem>>, vector<1x1x8x8xbf16>
    %8 = vector.shape_cast %7 : vector<1x1x8x8xbf16> to vector<8x8xbf16>
    %cst = arith.constant dense<0.000000e+00> : vector<8x8xf32>
    %9 = tpu.matmul %4, %6, %cst {dimension_numbers = #tpu.dot_dimension_numbers<[1], [1], [0], [0], [0, 0, 1, 0], [], []>} : vector<8x8xbf16>, vector<8x8xbf16>, vector<8x8xf32> -> vector<8x8xf32>
    %cst_12 = arith.constant 0.353553385 : f32
    %10 = vector.broadcast %cst_12 : f32 to vector<8x8xf32>
    %11 = arith.mulf %9, %10 : vector<8x8xf32>
    %12 = tpu.iota {dimensions = array<i32: 0>} : vector<8x8xi32>
    %c8_i32 = arith.constant 8 : i32
    %13 = arith.muli %arg2, %c8_i32 : i32
    %14 = tpu.iota {dimensions = array<i32: 1>} : vector<8x8xi32>
    %15 = vector.broadcast %13 : i32 to vector<8x8xi32>
    %16 = arith.addi %15, %14 : vector<8x8xi32>
    %17 = arith.cmpi sge, %12, %16 : vector<8x8xi32>
    %cst_13 = arith.constant 0.000000e+00 : f32
    %cst_14 = arith.constant -1.000000e+04 : f32
    %18 = vector.broadcast %cst_13 : f32 to vector<8x8xf32>
    %19 = vector.broadcast %cst_14 : f32 to vector<8x8xf32>
    %20 = arith.select %17, %18, %19 : vector<8x8xi1>, vector<8x8xf32>
    %21 = arith.addf %11, %20 : vector<8x8xf32>
    %c0_15 = arith.constant 0 : index
    %c0_16 = arith.constant 0 : index
    %22 = vector.load %arg7[%c0_15, %c0_16] : memref<8x1xf32, #tpu.memory_space<vmem>>, vector<8x1xf32>
    %cst_17 = arith.constant dense<0xFF800000> : vector<8xf32>
    %23 = vector.multi_reduction <maximumf>, %21, %cst_17 [1] : vector<8x8xf32> to vector<8xf32>
    %24 = vector.shape_cast %23 : vector<8xf32> to vector<8x1xf32>
    %25 = arith.maximumf %22, %24 : vector<8x1xf32>
    %26 = arith.subf %22, %25 : vector<8x1xf32>
    %27 = math.exp %26 : vector<8x1xf32>
    %28 = vector.broadcast %25 : vector<8x1xf32> to vector<8x8xf32>
    %29 = arith.subf %21, %28 : vector<8x8xf32>
    %30 = math.exp %29 : vector<8x8xf32>
    %c0_18 = arith.constant 0 : index
    %c0_19 = arith.constant 0 : index
    %31 = vector.load %arg8[%c0_18, %c0_19] : memref<8x1xf32, #tpu.memory_space<vmem>>, vector<8x1xf32>
    %32 = arith.mulf %31, %27 : vector<8x1xf32>
    %cst_20 = arith.constant dense<0.000000e+00> : vector<8xf32>
    %33 = vector.multi_reduction <add>, %30, %cst_20 [1] : vector<8x8xf32> to vector<8xf32>
    %34 = vector.shape_cast %33 : vector<8xf32> to vector<8x1xf32>
    %35 = arith.addf %32, %34 : vector<8x1xf32>
    %c0_21 = arith.constant 0 : index
    %c0_22 = arith.constant 0 : index
    %36 = vector.load %arg8[%c0_21, %c0_22] : memref<8x1xf32, #tpu.memory_space<vmem>>, vector<8x1xf32>
    tpu.vector_store %arg8[%c0_21, %c0_22], %35 {strides = array<i32>} : memref<8x1xf32, #tpu.memory_space<vmem>>, vector<8x1xf32>,
    %c0_23 = arith.constant 0 : index
    %c0_24 = arith.constant 0 : index
    %37 = vector.load %arg9[%c0_23, %c0_24] : memref<8x8xf32, #tpu.memory_space<vmem>>, vector<8x8xf32>
    %38 = vector.broadcast %27 : vector<8x1xf32> to vector<8x8xf32>
    %39 = arith.mulf %37, %38 : vector<8x8xf32>
    %40 = arith.truncf %30 : vector<8x8xf32> to vector<8x8xbf16>
    %cst_25 = arith.constant dense<0.000000e+00> : vector<8x8xf32>
    %41 = tpu.matmul %40, %8, %cst_25 {dimension_numbers = #tpu.dot_dimension_numbers<[1], [0], [0], [1], [0, 0, 1, 1], [], []>} : vector<8x8xbf16>, vector<8x8xbf16>, vector<8x8xf32> -> vector<8x8xf32>
    %42 = arith.addf %39, %41 : vector<8x8xf32>
    %c0_26 = arith.constant 0 : index
    %c0_27 = arith.constant 0 : index
    %43 = vector.load %arg9[%c0_26, %c0_27] : memref<8x8xf32, #tpu.memory_space<vmem>>, vector<8x8xf32>
    tpu.vector_store %arg9[%c0_26, %c0_27], %42 {strides = array<i32>} : memref<8x8xf32, #tpu.memory_space<vmem>>, vector<8x8xf32>,
    %c0_28 = arith.constant 0 : index
    %c0_29 = arith.constant 0 : index
    %44 = vector.load %arg7[%c0_28, %c0_29] : memref<8x1xf32, #tpu.memory_space<vmem>>, vector<8x1xf32>
    tpu.vector_store %arg7[%c0_28, %c0_29], %25 {strides = array<i32>} : memref<8x1xf32, #tpu.memory_space<vmem>>, vector<8x1xf32>,
    %c0_i32_30 = arith.constant 0 : i32
    %45 = arith.cmpi eq, %arg2, %c0_i32_30 : i32
    %46 = arith.extui %45 : i1 to i32
    %c0_i32_31 = arith.constant 0 : i32
    %47 = arith.cmpi ne, %46, %c0_i32_31 : i32
    scf.if %47 {
      %c0_32 = arith.constant 0 : index
      %c0_33 = arith.constant 0 : index
      %48 = vector.load %arg9[%c0_32, %c0_33] : memref<8x8xf32, #tpu.memory_space<vmem>>, vector<8x8xf32>
      %c0_34 = arith.constant 0 : index
      %c0_35 = arith.constant 0 : index
      %49 = vector.load %arg8[%c0_34, %c0_35] : memref<8x1xf32, #tpu.memory_space<vmem>>, vector<8x1xf32>
      %50 = tpu.reciprocal %49 {approx = true} : vector<8x1xf32> -> vector<8x1xf32>
      %51 = vector.broadcast %50 : vector<8x1xf32> to vector<8x8xf32>
      %52 = arith.mulf %48, %51 : vector<8x8xf32>
      %53 = arith.truncf %52 : vector<8x8xf32> to vector<8x8xbf16>
      %c0_36 = arith.constant 0 : index
      %c0_37 = arith.constant 0 : index
      %c0_38 = arith.constant 0 : index
      %c0_39 = arith.constant 0 : index
      %54 = vector.load %arg6[%c0_36, %c0_37, %c0_38, %c0_39] : memref<1x1x8x8xbf16, #tpu.memory_space<vmem>>, vector<1x1x8x8xbf16>
      %55 = vector.shape_cast %54 : vector<1x1x8x8xbf16> to vector<8x8xbf16>
      %56 = vector.shape_cast %53 : vector<8x8xbf16> to vector<1x1x8x8xbf16>
      tpu.vector_store %arg6[%c0_36, %c0_37, %c0_38, %c0_39], %56 {strides = array<i32>} : memref<1x1x8x8xbf16, #tpu.memory_space<vmem>>, vector<1x1x8x8xbf16>,
    } else {
    }
    return
  }
  func.func @transform_0(%arg0: i32, %arg1: i32, %arg2: i32) -> (i32, i32, i32, i32) {
    %c0_i32 = arith.constant 0 : i32
    %c0_i32_0 = arith.constant 0 : i32
    %c0_i32_1 = arith.constant 0 : i32
    return %arg0, %arg1, %c0_i32, %c0_i32_0 : i32, i32, i32, i32
  }
  func.func @transform_1(%arg0: i32, %arg1: i32, %arg2: i32) -> (i32, i32, i32, i32) {
    %c0_i32 = arith.constant 0 : i32
    %c0_i32_0 = arith.constant 0 : i32
    return %arg0, %arg1, %arg2, %c0_i32 : i32, i32, i32, i32
  }
  func.func @transform_2(%arg0: i32, %arg1: i32, %arg2: i32) -> (i32, i32, i32, i32) {
    %c0_i32 = arith.constant 0 : i32
    %c0_i32_0 = arith.constant 0 : i32
    return %arg0, %arg1, %arg2, %c0_i32 : i32, i32, i32, i32
  }
  func.func @transform_3(%arg0: i32, %arg1: i32, %arg2: i32) -> (i32, i32, i32, i32) {
    %c0_i32 = arith.constant 0 : i32
    %c0_i32_0 = arith.constant 0 : i32
    %c0_i32_1 = arith.constant 0 : i32
    return %arg0, %arg1, %c0_i32, %c0_i32_0 : i32, i32, i32, i32
  }
}

module attributes {stable_mosaic.version = 11 : i64} {
  func.func @_linear_res_ln_kernel(%arg0: i32, %arg1: i32, %arg2: memref<16x32xbf16, #tpu.memory_space<vmem>>, %arg3: memref<32x32xbf16, #tpu.memory_space<vmem>>, %arg4: memref<1x32xf32, #tpu.memory_space<vmem>>, %arg5: memref<16x32xbf16, #tpu.memory_space<vmem>>, %arg6: memref<1x32xf32, #tpu.memory_space<vmem>>, %arg7: memref<1x32xf32, #tpu.memory_space<vmem>>, %arg8: memref<16x32xbf16, #tpu.memory_space<vmem>>, %arg9: memref<16x32xf32, #tpu.memory_space<vmem>>) attributes {dimension_semantics = [#tpu.dimension_semantics<parallel>, #tpu.dimension_semantics<arbitrary>], iteration_bounds = array<i64: 1, 1>, scalar_prefetch = 0 : i64, scratch_operands = 1 : i64, tpu.core_type = #tpu.core_type<tc>, window_params = [{transform_indices = @transform_0, window_bounds = array<i64: 16, 32>}, {transform_indices = @transform_1, window_bounds = array<i64: 32, 32>}, {pipeline_mode = #tpu.pipeline_mode<synchronous>, transform_indices = @transform_2, window_bounds = array<i64: 1, 32>}, {transform_indices = @transform_3, window_bounds = array<i64: 16, 32>}, {pipeline_mode = #tpu.pipeline_mode<synchronous>, transform_indices = @transform_4, window_bounds = array<i64: 1, 32>}, {pipeline_mode = #tpu.pipeline_mode<synchronous>, transform_indices = @transform_5, window_bounds = array<i64: 1, 32>}, {transform_indices = @transform_6, window_bounds = array<i64: 16, 32>}]} {
    %c0_i32 = arith.constant 0 : i32
    %0 = arith.cmpi eq, %arg1, %c0_i32 : i32
    %1 = arith.extui %0 : i1 to i32
    %c0_i32_0 = arith.constant 0 : i32
    %2 = arith.cmpi ne, %1, %c0_i32_0 : i32
    scf.if %2 {
      %cst_10 = arith.constant 0.000000e+00 : f32
      %12 = vector.broadcast %cst_10 : f32 to vector<16x32xf32>
      %c0_11 = arith.constant 0 : index
      %c0_12 = arith.constant 0 : index
      %13 = vector.load %arg9[%c0_11, %c0_12] : memref<16x32xf32, #tpu.memory_space<vmem>>, vector<16x32xf32>
      tpu.vector_store %arg9[%c0_11, %c0_12], %12 {strides = array<i32>} : memref<16x32xf32, #tpu.memory_space<vmem>>, vector<16x32xf32>,
    } else {
    }
    %c0 = arith.constant 0 : index
    %c0_1 = arith.constant 0 : index
    %3 = vector.load %arg9[%c0, %c0_1] : memref<16x32xf32, #tpu.memory_space<vmem>>, vector<16x32xf32>
    %c0_2 = arith.constant 0 : index
    %c0_3 = arith.constant 0 : index
    %4 = vector.load %arg2[%c0_2, %c0_3] : memref<16x32xbf16, #tpu.memory_space<vmem>>, vector<16x32xbf16>
    %c0_4 = arith.constant 0 : index
    %c0_5 = arith.constant 0 : index
    %5 = vector.load %arg3[%c0_4, %c0_5] : memref<32x32xbf16, #tpu.memory_space<vmem>>, vector<32x32xbf16>
    %cst = arith.constant dense<0.000000e+00> : vector<16x32xf32>
    %6 = tpu.matmul %4, %5, %cst {dimension_numbers = #tpu.dot_dimension_numbers<[1], [0], [0], [1], [0, 0, 1, 1], [], []>} : vector<16x32xbf16>, vector<32x32xbf16>, vector<16x32xf32> -> vector<16x32xf32>
    %7 = arith.addf %3, %6 : vector<16x32xf32>
    %c0_6 = arith.constant 0 : index
    %c0_7 = arith.constant 0 : index
    %8 = vector.load %arg9[%c0_6, %c0_7] : memref<16x32xf32, #tpu.memory_space<vmem>>, vector<16x32xf32>
    tpu.vector_store %arg9[%c0_6, %c0_7], %7 {strides = array<i32>} : memref<16x32xf32, #tpu.memory_space<vmem>>, vector<16x32xf32>,
    %c0_i32_8 = arith.constant 0 : i32
    %9 = arith.cmpi eq, %arg1, %c0_i32_8 : i32
    %10 = arith.extui %9 : i1 to i32
    %c0_i32_9 = arith.constant 0 : i32
    %11 = arith.cmpi ne, %10, %c0_i32_9 : i32
    scf.if %11 {
      %c0_10 = arith.constant 0 : index
      %c0_11 = arith.constant 0 : index
      %12 = vector.load %arg9[%c0_10, %c0_11] : memref<16x32xf32, #tpu.memory_space<vmem>>, vector<16x32xf32>
      %c0_12 = arith.constant 0 : index
      %c0_13 = arith.constant 0 : index
      %13 = vector.load %arg4[%c0_12, %c0_13] : memref<1x32xf32, #tpu.memory_space<vmem>>, vector<1x32xf32>
      %14 = vector.broadcast %13 : vector<1x32xf32> to vector<16x32xf32>
      %15 = arith.addf %12, %14 : vector<16x32xf32>
      %c0_14 = arith.constant 0 : index
      %c0_15 = arith.constant 0 : index
      %16 = vector.load %arg5[%c0_14, %c0_15] : memref<16x32xbf16, #tpu.memory_space<vmem>>, vector<16x32xbf16>
      %17 = arith.extf %16 : vector<16x32xbf16> to vector<16x32xf32>
      %18 = arith.addf %15, %17 : vector<16x32xf32>
      %cst_16 = arith.constant dense<0.000000e+00> : vector<16xf32>
      %19 = vector.multi_reduction <add>, %18, %cst_16 [1] : vector<16x32xf32> to vector<16xf32>
      %20 = vector.shape_cast %19 : vector<16xf32> to vector<16x1xf32>
      %cst_17 = arith.constant 3.200000e+01 : f32
      %21 = vector.broadcast %cst_17 : f32 to vector<16x1xf32>
      %22 = arith.divf %20, %21 : vector<16x1xf32>
      %23 = vector.broadcast %22 : vector<16x1xf32> to vector<16x32xf32>
      %24 = arith.subf %18, %23 : vector<16x32xf32>
      %25 = arith.mulf %24, %24 : vector<16x32xf32>
      %cst_18 = arith.constant dense<0.000000e+00> : vector<16xf32>
      %26 = vector.multi_reduction <add>, %25, %cst_18 [1] : vector<16x32xf32> to vector<16xf32>
      %27 = vector.shape_cast %26 : vector<16xf32> to vector<16x1xf32>
      %cst_19 = arith.constant 3.200000e+01 : f32
      %28 = vector.broadcast %cst_19 : f32 to vector<16x1xf32>
      %29 = arith.divf %27, %28 : vector<16x1xf32>
      %30 = vector.broadcast %22 : vector<16x1xf32> to vector<16x32xf32>
      %31 = arith.subf %18, %30 : vector<16x32xf32>
      %cst_20 = arith.constant 9.99999974E-6 : f32
      %32 = vector.broadcast %cst_20 : f32 to vector<16x1xf32>
      %33 = arith.addf %29, %32 : vector<16x1xf32>
      %34 = math.rsqrt %33 : vector<16x1xf32>
      %35 = vector.broadcast %34 : vector<16x1xf32> to vector<16x32xf32>
      %36 = arith.mulf %31, %35 : vector<16x32xf32>
      %c0_21 = arith.constant 0 : index
      %c0_22 = arith.constant 0 : index
      %37 = vector.load %arg6[%c0_21, %c0_22] : memref<1x32xf32, #tpu.memory_space<vmem>>, vector<1x32xf32>
      %38 = vector.broadcast %37 : vector<1x32xf32> to vector<16x32xf32>
      %39 = arith.mulf %36, %38 : vector<16x32xf32>
      %c0_23 = arith.constant 0 : index
      %c0_24 = arith.constant 0 : index
      %40 = vector.load %arg7[%c0_23, %c0_24] : memref<1x32xf32, #tpu.memory_space<vmem>>, vector<1x32xf32>
      %41 = vector.broadcast %40 : vector<1x32xf32> to vector<16x32xf32>
      %42 = arith.addf %39, %41 : vector<16x32xf32>
      %43 = arith.truncf %42 : vector<16x32xf32> to vector<16x32xbf16>
      %c0_25 = arith.constant 0 : index
      %c0_26 = arith.constant 0 : index
      %44 = vector.load %arg8[%c0_25, %c0_26] : memref<16x32xbf16, #tpu.memory_space<vmem>>, vector<16x32xbf16>
      tpu.vector_store %arg8[%c0_25, %c0_26], %43 {strides = array<i32>} : memref<16x32xbf16, #tpu.memory_space<vmem>>, vector<16x32xbf16>,
    } else {
    }
    return
  }
  func.func @transform_0(%arg0: i32, %arg1: i32) -> (i32, i32) {
    %c0_i32 = arith.constant 0 : i32
    return %arg0, %arg1 : i32, i32
  }
  func.func @transform_1(%arg0: i32, %arg1: i32) -> (i32, i32) {
    %c0_i32 = arith.constant 0 : i32
    %c0_i32_0 = arith.constant 0 : i32
    return %arg1, %c0_i32 : i32, i32
  }
  func.func @transform_2(%arg0: i32, %arg1: i32) -> (i32, i32) {
    %c0_i32 = arith.constant 0 : i32
    %c0_i32_0 = arith.constant 0 : i32
    %c0_i32_1 = arith.constant 0 : i32
    return %c0_i32, %c0_i32_0 : i32, i32
  }
  func.func @transform_3(%arg0: i32, %arg1: i32) -> (i32, i32) {
    %c0_i32 = arith.constant 0 : i32
    %c0_i32_0 = arith.constant 0 : i32
    return %arg0, %c0_i32 : i32, i32
  }
  func.func @transform_4(%arg0: i32, %arg1: i32) -> (i32, i32) {
    %c0_i32 = arith.constant 0 : i32
    %c0_i32_0 = arith.constant 0 : i32
    %c0_i32_1 = arith.constant 0 : i32
    return %c0_i32, %c0_i32_0 : i32, i32
  }
  func.func @transform_5(%arg0: i32, %arg1: i32) -> (i32, i32) {
    %c0_i32 = arith.constant 0 : i32
    %c0_i32_0 = arith.constant 0 : i32
    %c0_i32_1 = arith.constant 0 : i32
    return %c0_i32, %c0_i32_0 : i32, i32
  }
  func.func @transform_6(%arg0: i32, %arg1: i32) -> (i32, i32) {
    %c0_i32 = arith.constant 0 : i32
    %c0_i32_0 = arith.constant 0 : i32
    return %arg0, %c0_i32 : i32, i32
  }
}

module attributes {stable_mosaic.version = 11 : i64} {
  func.func @_linear_kernel(%arg0: i32, %arg1: i32, %arg2: i32, %arg3: memref<16x32xbf16, #tpu.memory_space<vmem>>, %arg4: memref<32x32xbf16, #tpu.memory_space<vmem>>, %arg5: memref<1x32xf32, #tpu.memory_space<vmem>>, %arg6: memref<16x32xbf16, #tpu.memory_space<vmem>>, %arg7: memref<16x32xf32, #tpu.memory_space<vmem>>) attributes {dimension_semantics = [#tpu.dimension_semantics<parallel>, #tpu.dimension_semantics<parallel>, #tpu.dimension_semantics<arbitrary>], iteration_bounds = array<i64: 1, 1, 1>, scalar_prefetch = 0 : i64, scratch_operands = 1 : i64, tpu.core_type = #tpu.core_type<tc>, window_params = [{transform_indices = @transform_0, window_bounds = array<i64: 16, 32>}, {transform_indices = @transform_1, window_bounds = array<i64: 32, 32>}, {transform_indices = @transform_2, window_bounds = array<i64: 1, 32>}, {transform_indices = @transform_3, window_bounds = array<i64: 16, 32>}]} {
    %c0_i32 = arith.constant 0 : i32
    %0 = arith.cmpi eq, %arg2, %c0_i32 : i32
    %1 = arith.extui %0 : i1 to i32
    %c0_i32_0 = arith.constant 0 : i32
    %2 = arith.cmpi ne, %1, %c0_i32_0 : i32
    scf.if %2 {
      %cst_10 = arith.constant 0.000000e+00 : f32
      %12 = vector.broadcast %cst_10 : f32 to vector<16x32xf32>
      %c0_11 = arith.constant 0 : index
      %c0_12 = arith.constant 0 : index
      %13 = vector.load %arg7[%c0_11, %c0_12] : memref<16x32xf32, #tpu.memory_space<vmem>>, vector<16x32xf32>
      tpu.vector_store %arg7[%c0_11, %c0_12], %12 {strides = array<i32>} : memref<16x32xf32, #tpu.memory_space<vmem>>, vector<16x32xf32>,
    } else {
    }
    %c0 = arith.constant 0 : index
    %c0_1 = arith.constant 0 : index
    %3 = vector.load %arg7[%c0, %c0_1] : memref<16x32xf32, #tpu.memory_space<vmem>>, vector<16x32xf32>
    %c0_2 = arith.constant 0 : index
    %c0_3 = arith.constant 0 : index
    %4 = vector.load %arg3[%c0_2, %c0_3] : memref<16x32xbf16, #tpu.memory_space<vmem>>, vector<16x32xbf16>
    %c0_4 = arith.constant 0 : index
    %c0_5 = arith.constant 0 : index
    %5 = vector.load %arg4[%c0_4, %c0_5] : memref<32x32xbf16, #tpu.memory_space<vmem>>, vector<32x32xbf16>
    %cst = arith.constant dense<0.000000e+00> : vector<16x32xf32>
    %6 = tpu.matmul %4, %5, %cst {dimension_numbers = #tpu.dot_dimension_numbers<[1], [0], [0], [1], [0, 0, 1, 1], [], []>} : vector<16x32xbf16>, vector<32x32xbf16>, vector<16x32xf32> -> vector<16x32xf32>
    %7 = arith.addf %3, %6 : vector<16x32xf32>
    %c0_6 = arith.constant 0 : index
    %c0_7 = arith.constant 0 : index
    %8 = vector.load %arg7[%c0_6, %c0_7] : memref<16x32xf32, #tpu.memory_space<vmem>>, vector<16x32xf32>
    tpu.vector_store %arg7[%c0_6, %c0_7], %7 {strides = array<i32>} : memref<16x32xf32, #tpu.memory_space<vmem>>, vector<16x32xf32>,
    %c0_i32_8 = arith.constant 0 : i32
    %9 = arith.cmpi eq, %arg2, %c0_i32_8 : i32
    %10 = arith.extui %9 : i1 to i32
    %c0_i32_9 = arith.constant 0 : i32
    %11 = arith.cmpi ne, %10, %c0_i32_9 : i32
    scf.if %11 {
      %c0_10 = arith.constant 0 : index
      %c0_11 = arith.constant 0 : index
      %12 = vector.load %arg7[%c0_10, %c0_11] : memref<16x32xf32, #tpu.memory_space<vmem>>, vector<16x32xf32>
      %c0_12 = arith.constant 0 : index
      %c0_13 = arith.constant 0 : index
      %13 = vector.load %arg5[%c0_12, %c0_13] : memref<1x32xf32, #tpu.memory_space<vmem>>, vector<1x32xf32>
      %14 = vector.broadcast %13 : vector<1x32xf32> to vector<16x32xf32>
      %15 = arith.addf %12, %14 : vector<16x32xf32>
      %16 = arith.truncf %15 : vector<16x32xf32> to vector<16x32xbf16>
      %c0_14 = arith.constant 0 : index
      %c0_15 = arith.constant 0 : index
      %17 = vector.load %arg6[%c0_14, %c0_15] : memref<16x32xbf16, #tpu.memory_space<vmem>>, vector<16x32xbf16>
      tpu.vector_store %arg6[%c0_14, %c0_15], %16 {strides = array<i32>} : memref<16x32xbf16, #tpu.memory_space<vmem>>, vector<16x32xbf16>,
    } else {
    }
    return
  }
  func.func @transform_0(%arg0: i32, %arg1: i32, %arg2: i32) -> (i32, i32) {
    %c0_i32 = arith.constant 0 : i32
    return %arg0, %arg2 : i32, i32
  }
  func.func @transform_1(%arg0: i32, %arg1: i32, %arg2: i32) -> (i32, i32) {
    %c0_i32 = arith.constant 0 : i32
    return %arg2, %arg1 : i32, i32
  }
  func.func @transform_2(%arg0: i32, %arg1: i32, %arg2: i32) -> (i32, i32) {
    %c0_i32 = arith.constant 0 : i32
    %c0_i32_0 = arith.constant 0 : i32
    return %c0_i32, %arg1 : i32, i32
  }
  func.func @transform_3(%arg0: i32, %arg1: i32, %arg2: i32) -> (i32, i32) {
    %c0_i32 = arith.constant 0 : i32
    return %arg0, %arg1 : i32, i32
  }
}

module attributes {stable_mosaic.version = 11 : i64} {
  func.func @_linear_kernel(%arg0: i32, %arg1: i32, %arg2: i32, %arg3: memref<32x32xbf16, #tpu.memory_space<vmem>>, %arg4: memref<32x64xbf16, #tpu.memory_space<vmem>>, %arg5: memref<1x64xf32, #tpu.memory_space<vmem>>, %arg6: memref<32x64xbf16, #tpu.memory_space<vmem>>, %arg7: memref<32x64xf32, #tpu.memory_space<vmem>>) attributes {dimension_semantics = [#tpu.dimension_semantics<parallel>, #tpu.dimension_semantics<parallel>, #tpu.dimension_semantics<arbitrary>], iteration_bounds = array<i64: 1, 1, 1>, scalar_prefetch = 0 : i64, scratch_operands = 1 : i64, tpu.core_type = #tpu.core_type<tc>, window_params = [{transform_indices = @transform_0, window_bounds = array<i64: 32, 32>}, {transform_indices = @transform_1, window_bounds = array<i64: 32, 64>}, {transform_indices = @transform_2, window_bounds = array<i64: 1, 64>}, {transform_indices = @transform_3, window_bounds = array<i64: 32, 64>}]} {
    %c0_i32 = arith.constant 0 : i32
    %0 = arith.cmpi eq, %arg2, %c0_i32 : i32
    %1 = arith.extui %0 : i1 to i32
    %c0_i32_0 = arith.constant 0 : i32
    %2 = arith.cmpi ne, %1, %c0_i32_0 : i32
    scf.if %2 {
      %cst_10 = arith.constant 0.000000e+00 : f32
      %12 = vector.broadcast %cst_10 : f32 to vector<32x64xf32>
      %c0_11 = arith.constant 0 : index
      %c0_12 = arith.constant 0 : index
      %13 = vector.load %arg7[%c0_11, %c0_12] : memref<32x64xf32, #tpu.memory_space<vmem>>, vector<32x64xf32>
      tpu.vector_store %arg7[%c0_11, %c0_12], %12 {strides = array<i32>} : memref<32x64xf32, #tpu.memory_space<vmem>>, vector<32x64xf32>,
    } else {
    }
    %c0 = arith.constant 0 : index
    %c0_1 = arith.constant 0 : index
    %3 = vector.load %arg7[%c0, %c0_1] : memref<32x64xf32, #tpu.memory_space<vmem>>, vector<32x64xf32>
    %c0_2 = arith.constant 0 : index
    %c0_3 = arith.constant 0 : index
    %4 = vector.load %arg3[%c0_2, %c0_3] : memref<32x32xbf16, #tpu.memory_space<vmem>>, vector<32x32xbf16>
    %c0_4 = arith.constant 0 : index
    %c0_5 = arith.constant 0 : index
    %5 = vector.load %arg4[%c0_4, %c0_5] : memref<32x64xbf16, #tpu.memory_space<vmem>>, vector<32x64xbf16>
    %cst = arith.constant dense<0.000000e+00> : vector<32x64xf32>
    %6 = tpu.matmul %4, %5, %cst {dimension_numbers = #tpu.dot_dimension_numbers<[1], [0], [0], [1], [0, 0, 1, 1], [], []>} : vector<32x32xbf16>, vector<32x64xbf16>, vector<32x64xf32> -> vector<32x64xf32>
    %7 = arith.addf %3, %6 : vector<32x64xf32>
    %c0_6 = arith.constant 0 : index
    %c0_7 = arith.constant 0 : index
    %8 = vector.load %arg7[%c0_6, %c0_7] : memref<32x64xf32, #tpu.memory_space<vmem>>, vector<32x64xf32>
    tpu.vector_store %arg7[%c0_6, %c0_7], %7 {strides = array<i32>} : memref<32x64xf32, #tpu.memory_space<vmem>>, vector<32x64xf32>,
    %c0_i32_8 = arith.constant 0 : i32
    %9 = arith.cmpi eq, %arg2, %c0_i32_8 : i32
    %10 = arith.extui %9 : i1 to i32
    %c0_i32_9 = arith.constant 0 : i32
    %11 = arith.cmpi ne, %10, %c0_i32_9 : i32
    scf.if %11 {
      %c0_10 = arith.constant 0 : index
      %c0_11 = arith.constant 0 : index
      %12 = vector.load %arg7[%c0_10, %c0_11] : memref<32x64xf32, #tpu.memory_space<vmem>>, vector<32x64xf32>
      %c0_12 = arith.constant 0 : index
      %c0_13 = arith.constant 0 : index
      %13 = vector.load %arg5[%c0_12, %c0_13] : memref<1x64xf32, #tpu.memory_space<vmem>>, vector<1x64xf32>
      %14 = vector.broadcast %13 : vector<1x64xf32> to vector<32x64xf32>
      %15 = arith.addf %12, %14 : vector<32x64xf32>
      %16 = arith.truncf %15 : vector<32x64xf32> to vector<32x64xbf16>
      %c0_14 = arith.constant 0 : index
      %c0_15 = arith.constant 0 : index
      %17 = vector.load %arg6[%c0_14, %c0_15] : memref<32x64xbf16, #tpu.memory_space<vmem>>, vector<32x64xbf16>
      tpu.vector_store %arg6[%c0_14, %c0_15], %16 {strides = array<i32>} : memref<32x64xbf16, #tpu.memory_space<vmem>>, vector<32x64xbf16>,
    } else {
    }
    return
  }
  func.func @transform_0(%arg0: i32, %arg1: i32, %arg2: i32) -> (i32, i32) {
    %c0_i32 = arith.constant 0 : i32
    return %arg0, %arg2 : i32, i32
  }
  func.func @transform_1(%arg0: i32, %arg1: i32, %arg2: i32) -> (i32, i32) {
    %c0_i32 = arith.constant 0 : i32
    return %arg2, %arg1 : i32, i32
  }
  func.func @transform_2(%arg0: i32, %arg1: i32, %arg2: i32) -> (i32, i32) {
    %c0_i32 = arith.constant 0 : i32
    %c0_i32_0 = arith.constant 0 : i32
    return %c0_i32, %arg1 : i32, i32
  }
  func.func @transform_3(%arg0: i32, %arg1: i32, %arg2: i32) -> (i32, i32) {
    %c0_i32 = arith.constant 0 : i32
    return %arg0, %arg1 : i32, i32
  }
}

module attributes {stable_mosaic.version = 11 : i64} {
  func.func @_linear_kernel(%arg0: i32, %arg1: i32, %arg2: i32, %arg3: memref<16x32xbf16, #tpu.memory_space<vmem>>, %arg4: memref<32x64xbf16, #tpu.memory_space<vmem>>, %arg5: memref<1x64xf32, #tpu.memory_space<vmem>>, %arg6: memref<16x64xbf16, #tpu.memory_space<vmem>>, %arg7: memref<16x64xf32, #tpu.memory_space<vmem>>) attributes {dimension_semantics = [#tpu.dimension_semantics<parallel>, #tpu.dimension_semantics<parallel>, #tpu.dimension_semantics<arbitrary>], iteration_bounds = array<i64: 1, 1, 1>, scalar_prefetch = 0 : i64, scratch_operands = 1 : i64, tpu.core_type = #tpu.core_type<tc>, window_params = [{transform_indices = @transform_0, window_bounds = array<i64: 16, 32>}, {transform_indices = @transform_1, window_bounds = array<i64: 32, 64>}, {transform_indices = @transform_2, window_bounds = array<i64: 1, 64>}, {transform_indices = @transform_3, window_bounds = array<i64: 16, 64>}]} {
    %c0_i32 = arith.constant 0 : i32
    %0 = arith.cmpi eq, %arg2, %c0_i32 : i32
    %1 = arith.extui %0 : i1 to i32
    %c0_i32_0 = arith.constant 0 : i32
    %2 = arith.cmpi ne, %1, %c0_i32_0 : i32
    scf.if %2 {
      %cst_10 = arith.constant 0.000000e+00 : f32
      %12 = vector.broadcast %cst_10 : f32 to vector<16x64xf32>
      %c0_11 = arith.constant 0 : index
      %c0_12 = arith.constant 0 : index
      %13 = vector.load %arg7[%c0_11, %c0_12] : memref<16x64xf32, #tpu.memory_space<vmem>>, vector<16x64xf32>
      tpu.vector_store %arg7[%c0_11, %c0_12], %12 {strides = array<i32>} : memref<16x64xf32, #tpu.memory_space<vmem>>, vector<16x64xf32>,
    } else {
    }
    %c0 = arith.constant 0 : index
    %c0_1 = arith.constant 0 : index
    %3 = vector.load %arg7[%c0, %c0_1] : memref<16x64xf32, #tpu.memory_space<vmem>>, vector<16x64xf32>
    %c0_2 = arith.constant 0 : index
    %c0_3 = arith.constant 0 : index
    %4 = vector.load %arg3[%c0_2, %c0_3] : memref<16x32xbf16, #tpu.memory_space<vmem>>, vector<16x32xbf16>
    %c0_4 = arith.constant 0 : index
    %c0_5 = arith.constant 0 : index
    %5 = vector.load %arg4[%c0_4, %c0_5] : memref<32x64xbf16, #tpu.memory_space<vmem>>, vector<32x64xbf16>
    %cst = arith.constant dense<0.000000e+00> : vector<16x64xf32>
    %6 = tpu.matmul %4, %5, %cst {dimension_numbers = #tpu.dot_dimension_numbers<[1], [0], [0], [1], [0, 0, 1, 1], [], []>} : vector<16x32xbf16>, vector<32x64xbf16>, vector<16x64xf32> -> vector<16x64xf32>
    %7 = arith.addf %3, %6 : vector<16x64xf32>
    %c0_6 = arith.constant 0 : index
    %c0_7 = arith.constant 0 : index
    %8 = vector.load %arg7[%c0_6, %c0_7] : memref<16x64xf32, #tpu.memory_space<vmem>>, vector<16x64xf32>
    tpu.vector_store %arg7[%c0_6, %c0_7], %7 {strides = array<i32>} : memref<16x64xf32, #tpu.memory_space<vmem>>, vector<16x64xf32>,
    %c0_i32_8 = arith.constant 0 : i32
    %9 = arith.cmpi eq, %arg2, %c0_i32_8 : i32
    %10 = arith.extui %9 : i1 to i32
    %c0_i32_9 = arith.constant 0 : i32
    %11 = arith.cmpi ne, %10, %c0_i32_9 : i32
    scf.if %11 {
      %c0_10 = arith.constant 0 : index
      %c0_11 = arith.constant 0 : index
      %12 = vector.load %arg7[%c0_10, %c0_11] : memref<16x64xf32, #tpu.memory_space<vmem>>, vector<16x64xf32>
      %c0_12 = arith.constant 0 : index
      %c0_13 = arith.constant 0 : index
      %13 = vector.load %arg5[%c0_12, %c0_13] : memref<1x64xf32, #tpu.memory_space<vmem>>, vector<1x64xf32>
      %14 = vector.broadcast %13 : vector<1x64xf32> to vector<16x64xf32>
      %15 = arith.addf %12, %14 : vector<16x64xf32>
      %cst_14 = arith.constant 0.000000e+00 : f32
      %16 = vector.broadcast %cst_14 : f32 to vector<16x64xf32>
      %17 = arith.maximumf %15, %16 : vector<16x64xf32>
      %18 = arith.truncf %17 : vector<16x64xf32> to vector<16x64xbf16>
      %c0_15 = arith.constant 0 : index
      %c0_16 = arith.constant 0 : index
      %19 = vector.load %arg6[%c0_15, %c0_16] : memref<16x64xbf16, #tpu.memory_space<vmem>>, vector<16x64xbf16>
      tpu.vector_store %arg6[%c0_15, %c0_16], %18 {strides = array<i32>} : memref<16x64xbf16, #tpu.memory_space<vmem>>, vector<16x64xbf16>,
    } else {
    }
    return
  }
  func.func @transform_0(%arg0: i32, %arg1: i32, %arg2: i32) -> (i32, i32) {
    %c0_i32 = arith.constant 0 : i32
    return %arg0, %arg2 : i32, i32
  }
  func.func @transform_1(%arg0: i32, %arg1: i32, %arg2: i32) -> (i32, i32) {
    %c0_i32 = arith.constant 0 : i32
    return %arg2, %arg1 : i32, i32
  }
  func.func @transform_2(%arg0: i32, %arg1: i32, %arg2: i32) -> (i32, i32) {
    %c0_i32 = arith.constant 0 : i32
    %c0_i32_0 = arith.constant 0 : i32
    return %c0_i32, %arg1 : i32, i32
  }
  func.func @transform_3(%arg0: i32, %arg1: i32, %arg2: i32) -> (i32, i32) {
    %c0_i32 = arith.constant 0 : i32
    return %arg0, %arg1 : i32, i32
  }
}

module attributes {stable_mosaic.version = 11 : i64} {
  func.func @_attn_kernel(%arg0: i32, %arg1: i32, %arg2: i32, %arg3: memref<1x1x8x8xbf16, #tpu.memory_space<vmem>>, %arg4: memref<1x1x16x8xbf16, #tpu.memory_space<vmem>>, %arg5: memref<1x1x16x8xbf16, #tpu.memory_space<vmem>>, %arg6: memref<1x1x16xf32, #tpu.memory_space<vmem>>, %arg7: memref<1x1x8x8xbf16, #tpu.memory_space<vmem>>, %arg8: memref<8x1xf32, #tpu.memory_space<vmem>>, %arg9: memref<8x1xf32, #tpu.memory_space<vmem>>, %arg10: memref<8x8xf32, #tpu.memory_space<vmem>>) attributes {dimension_semantics = [#tpu.dimension_semantics<parallel>, #tpu.dimension_semantics<parallel>, #tpu.dimension_semantics<arbitrary>], iteration_bounds = array<i64: 2, 4, 1>, scalar_prefetch = 0 : i64, scratch_operands = 3 : i64, tpu.core_type = #tpu.core_type<tc>, window_params = [{transform_indices = @transform_0, window_bounds = array<i64: 1, 1, 8, 8>}, {transform_indices = @transform_1, window_bounds = array<i64: 1, 1, 16, 8>}, {transform_indices = @transform_2, window_bounds = array<i64: 1, 1, 16, 8>}, {transform_indices = @transform_3, window_bounds = array<i64: 1, 1, 16>}, {transform_indices = @transform_4, window_bounds = array<i64: 1, 1, 8, 8>}]} {
    %c0_i32 = arith.constant 0 : i32
    %0 = arith.cmpi eq, %arg2, %c0_i32 : i32
    %1 = arith.extui %0 : i1 to i32
    %c0_i32_0 = arith.constant 0 : i32
    %2 = arith.cmpi ne, %1, %c0_i32_0 : i32
    scf.if %2 {
      %cst_33 = arith.constant -1.000000e+30 : f32
      %43 = vector.broadcast %cst_33 : f32 to vector<8x1xf32>
      %c0_34 = arith.constant 0 : index
      %c0_35 = arith.constant 0 : index
      %44 = vector.load %arg8[%c0_34, %c0_35] : memref<8x1xf32, #tpu.memory_space<vmem>>, vector<8x1xf32>
      tpu.vector_store %arg8[%c0_34, %c0_35], %43 {strides = array<i32>} : memref<8x1xf32, #tpu.memory_space<vmem>>, vector<8x1xf32>,
      %cst_36 = arith.constant 0.000000e+00 : f32
      %45 = vector.broadcast %cst_36 : f32 to vector<8x1xf32>
      %c0_37 = arith.constant 0 : index
      %c0_38 = arith.constant 0 : index
      %46 = vector.load %arg9[%c0_37, %c0_38] : memref<8x1xf32, #tpu.memory_space<vmem>>, vector<8x1xf32>
      tpu.vector_store %arg9[%c0_37, %c0_38], %45 {strides = array<i32>} : memref<8x1xf32, #tpu.memory_space<vmem>>, vector<8x1xf32>,
      %cst_39 = arith.constant 0.000000e+00 : f32
      %47 = vector.broadcast %cst_39 : f32 to vector<8x8xf32>
      %c0_40 = arith.constant 0 : index
      %c0_41 = arith.constant 0 : index
      %48 = vector.load %arg10[%c0_40, %c0_41] : memref<8x8xf32, #tpu.memory_space<vmem>>, vector<8x8xf32>
      tpu.vector_store %arg10[%c0_40, %c0_41], %47 {strides = array<i32>} : memref<8x8xf32, #tpu.memory_space<vmem>>, vector<8x8xf32>,
    } else {
    }
    %c0 = arith.constant 0 : index
    %c0_1 = arith.constant 0 : index
    %c0_2 = arith.constant 0 : index
    %c0_3 = arith.constant 0 : index
    %3 = vector.load %arg3[%c0, %c0_1, %c0_2, %c0_3] : memref<1x1x8x8xbf16, #tpu.memory_space<vmem>>, vector<1x1x8x8xbf16>
    %4 = vector.shape_cast %3 : vector<1x1x8x8xbf16> to vector<8x8xbf16>
    %c0_4 = arith.constant 0 : index
    %c0_5 = arith.constant 0 : index
    %c0_6 = arith.constant 0 : index
    %c0_7 = arith.constant 0 : index
    %5 = vector.load %arg4[%c0_4, %c0_5, %c0_6, %c0_7] : memref<1x1x16x8xbf16, #tpu.memory_space<vmem>>, vector<1x1x16x8xbf16>
    %6 = vector.shape_cast %5 : vector<1x1x16x8xbf16> to vector<16x8xbf16>
    %c0_8 = arith.constant 0 : index
    %c0_9 = arith.constant 0 : index
    %c0_10 = arith.constant 0 : index
    %c0_11 = arith.constant 0 : index
    %7 = vector.load %arg5[%c0_8, %c0_9, %c0_10, %c0_11] : memref<1x1x16x8xbf16, #tpu.memory_space<vmem>>, vector<1x1x16x8xbf16>
    %8 = vector.shape_cast %7 : vector<1x1x16x8xbf16> to vector<16x8xbf16>
    %cst = arith.constant dense<0.000000e+00> : vector<8x16xf32>
    %9 = tpu.matmul %4, %6, %cst {dimension_numbers = #tpu.dot_dimension_numbers<[1], [1], [0], [0], [0, 0, 1, 0], [], []>} : vector<8x8xbf16>, vector<16x8xbf16>, vector<8x16xf32> -> vector<8x16xf32>
    %cst_12 = arith.constant 0.353553385 : f32
    %10 = vector.broadcast %cst_12 : f32 to vector<8x16xf32>
    %11 = arith.mulf %9, %10 : vector<8x16xf32>
    %c0_13 = arith.constant 0 : index
    %c0_14 = arith.constant 0 : index
    %c0_15 = arith.constant 0 : index
    %12 = vector.load %arg6[%c0_13, %c0_14, %c0_15] : memref<1x1x16xf32, #tpu.memory_space<vmem>>, vector<1x1x16xf32>
    %13 = vector.shape_cast %12 : vector<1x1x16xf32> to vector<16xf32>
    %14 = vector.shape_cast %13 : vector<16xf32> to vector<1x16xf32>
    %15 = vector.broadcast %14 : vector<1x16xf32> to vector<8x16xf32>
    %16 = arith.addf %11, %15 : vector<8x16xf32>
    %c0_16 = arith.constant 0 : index
    %c0_17 = arith.constant 0 : index
    %17 = vector.load %arg8[%c0_16, %c0_17] : memref<8x1xf32, #tpu.memory_space<vmem>>, vector<8x1xf32>
    %cst_18 = arith.constant dense<0xFF800000> : vector<8xf32>
    %18 = vector.multi_reduction <maximumf>, %16, %cst_18 [1] : vector<8x16xf32> to vector<8xf32>
    %19 = vector.shape_cast %18 : vector<8xf32> to vector<8x1xf32>
    %20 = arith.maximumf %17, %19 : vector<8x1xf32>
    %21 = arith.subf %17, %20 : vector<8x1xf32>
    %22 = math.exp %21 : vector<8x1xf32>
    %23 = vector.broadcast %20 : vector<8x1xf32> to vector<8x16xf32>
    %24 = arith.subf %16, %23 : vector<8x16xf32>
    %25 = math.exp %24 : vector<8x16xf32>
    %c0_19 = arith.constant 0 : index
    %c0_20 = arith.constant 0 : index
    %26 = vector.load %arg9[%c0_19, %c0_20] : memref<8x1xf32, #tpu.memory_space<vmem>>, vector<8x1xf32>
    %27 = arith.mulf %26, %22 : vector<8x1xf32>
    %cst_21 = arith.constant dense<0.000000e+00> : vector<8xf32>
    %28 = vector.multi_reduction <add>, %25, %cst_21 [1] : vector<8x16xf32> to vector<8xf32>
    %29 = vector.shape_cast %28 : vector<8xf32> to vector<8x1xf32>
    %30 = arith.addf %27, %29 : vector<8x1xf32>
    %c0_22 = arith.constant 0 : index
    %c0_23 = arith.constant 0 : index
    %31 = vector.load %arg9[%c0_22, %c0_23] : memref<8x1xf32, #tpu.memory_space<vmem>>, vector<8x1xf32>
    tpu.vector_store %arg9[%c0_22, %c0_23], %30 {strides = array<i32>} : memref<8x1xf32, #tpu.memory_space<vmem>>, vector<8x1xf32>,
    %c0_24 = arith.constant 0 : index
    %c0_25 = arith.constant 0 : index
    %32 = vector.load %arg10[%c0_24, %c0_25] : memref<8x8xf32, #tpu.memory_space<vmem>>, vector<8x8xf32>
    %33 = vector.broadcast %22 : vector<8x1xf32> to vector<8x8xf32>
    %34 = arith.mulf %32, %33 : vector<8x8xf32>
    %35 = arith.truncf %25 : vector<8x16xf32> to vector<8x16xbf16>
    %cst_26 = arith.constant dense<0.000000e+00> : vector<8x8xf32>
    %36 = tpu.matmul %35, %8, %cst_26 {dimension_numbers = #tpu.dot_dimension_numbers<[1], [0], [0], [1], [0, 0, 1, 1], [], []>} : vector<8x16xbf16>, vector<16x8xbf16>, vector<8x8xf32> -> vector<8x8xf32>
    %37 = arith.addf %34, %36 : vector<8x8xf32>
    %c0_27 = arith.constant 0 : index
    %c0_28 = arith.constant 0 : index
    %38 = vector.load %arg10[%c0_27, %c0_28] : memref<8x8xf32, #tpu.memory_space<vmem>>, vector<8x8xf32>
    tpu.vector_store %arg10[%c0_27, %c0_28], %37 {strides = array<i32>} : memref<8x8xf32, #tpu.memory_space<vmem>>, vector<8x8xf32>,
    %c0_29 = arith.constant 0 : index
    %c0_30 = arith.constant 0 : index
    %39 = vector.load %arg8[%c0_29, %c0_30] : memref<8x1xf32, #tpu.memory_space<vmem>>, vector<8x1xf32>
    tpu.vector_store %arg8[%c0_29, %c0_30], %20 {strides = array<i32>} : memref<8x1xf32, #tpu.memory_space<vmem>>, vector<8x1xf32>,
    %c0_i32_31 = arith.constant 0 : i32
    %40 = arith.cmpi eq, %arg2, %c0_i32_31 : i32
    %41 = arith.extui %40 : i1 to i32
    %c0_i32_32 = arith.constant 0 : i32
    %42 = arith.cmpi ne, %41, %c0_i32_32 : i32
    scf.if %42 {
      %c0_33 = arith.constant 0 : index
      %c0_34 = arith.constant 0 : index
      %43 = vector.load %arg10[%c0_33, %c0_34] : memref<8x8xf32, #tpu.memory_space<vmem>>, vector<8x8xf32>
      %c0_35 = arith.constant 0 : index
      %c0_36 = arith.constant 0 : index
      %44 = vector.load %arg9[%c0_35, %c0_36] : memref<8x1xf32, #tpu.memory_space<vmem>>, vector<8x1xf32>
      %45 = tpu.reciprocal %44 {approx = true} : vector<8x1xf32> -> vector<8x1xf32>
      %46 = vector.broadcast %45 : vector<8x1xf32> to vector<8x8xf32>
      %47 = arith.mulf %43, %46 : vector<8x8xf32>
      %48 = arith.truncf %47 : vector<8x8xf32> to vector<8x8xbf16>
      %c0_37 = arith.constant 0 : index
      %c0_38 = arith.constant 0 : index
      %c0_39 = arith.constant 0 : index
      %c0_40 = arith.constant 0 : index
      %49 = vector.load %arg7[%c0_37, %c0_38, %c0_39, %c0_40] : memref<1x1x8x8xbf16, #tpu.memory_space<vmem>>, vector<1x1x8x8xbf16>
      %50 = vector.shape_cast %49 : vector<1x1x8x8xbf16> to vector<8x8xbf16>
      %51 = vector.shape_cast %48 : vector<8x8xbf16> to vector<1x1x8x8xbf16>
      tpu.vector_store %arg7[%c0_37, %c0_38, %c0_39, %c0_40], %51 {strides = array<i32>} : memref<1x1x8x8xbf16, #tpu.memory_space<vmem>>, vector<1x1x8x8xbf16>,
    } else {
    }
    return
  }
  func.func @transform_0(%arg0: i32, %arg1: i32, %arg2: i32) -> (i32, i32, i32, i32) {
    %c0_i32 = arith.constant 0 : i32
    %c0_i32_0 = arith.constant 0 : i32
    %c0_i32_1 = arith.constant 0 : i32
    return %arg0, %arg1, %c0_i32, %c0_i32_0 : i32, i32, i32, i32
  }
  func.func @transform_1(%arg0: i32, %arg1: i32, %arg2: i32) -> (i32, i32, i32, i32) {
    %c0_i32 = arith.constant 0 : i32
    %c0_i32_0 = arith.constant 0 : i32
    return %arg0, %arg1, %arg2, %c0_i32 : i32, i32, i32, i32
  }
  func.func @transform_2(%arg0: i32, %arg1: i32, %arg2: i32) -> (i32, i32, i32, i32) {
    %c0_i32 = arith.constant 0 : i32
    %c0_i32_0 = arith.constant 0 : i32
    return %arg0, %arg1, %arg2, %c0_i32 : i32, i32, i32, i32
  }
  func.func @transform_3(%arg0: i32, %arg1: i32, %arg2: i32) -> (i32, i32, i32) {
    %c0_i32 = arith.constant 0 : i32
    %c0_i32_0 = arith.constant 0 : i32
    return %arg0, %c0_i32, %arg2 : i32, i32, i32
  }
  func.func @transform_4(%arg0: i32, %arg1: i32, %arg2: i32) -> (i32, i32, i32, i32) {
    %c0_i32 = arith.constant 0 : i32
    %c0_i32_0 = arith.constant 0 : i32
    %c0_i32_1 = arith.constant 0 : i32
    return %arg0, %arg1, %c0_i32, %c0_i32_0 : i32, i32, i32, i32
  }
}

module attributes {stable_mosaic.version = 11 : i64} {
  func.func @_linear_res_ln_kernel(%arg0: i32, %arg1: i32, %arg2: memref<16x64xbf16, #tpu.memory_space<vmem>>, %arg3: memref<64x32xbf16, #tpu.memory_space<vmem>>, %arg4: memref<1x32xf32, #tpu.memory_space<vmem>>, %arg5: memref<16x32xbf16, #tpu.memory_space<vmem>>, %arg6: memref<1x32xf32, #tpu.memory_space<vmem>>, %arg7: memref<1x32xf32, #tpu.memory_space<vmem>>, %arg8: memref<16x32xbf16, #tpu.memory_space<vmem>>, %arg9: memref<16x32xf32, #tpu.memory_space<vmem>>) attributes {dimension_semantics = [#tpu.dimension_semantics<parallel>, #tpu.dimension_semantics<arbitrary>], iteration_bounds = array<i64: 1, 1>, scalar_prefetch = 0 : i64, scratch_operands = 1 : i64, tpu.core_type = #tpu.core_type<tc>, window_params = [{transform_indices = @transform_0, window_bounds = array<i64: 16, 64>}, {transform_indices = @transform_1, window_bounds = array<i64: 64, 32>}, {pipeline_mode = #tpu.pipeline_mode<synchronous>, transform_indices = @transform_2, window_bounds = array<i64: 1, 32>}, {transform_indices = @transform_3, window_bounds = array<i64: 16, 32>}, {pipeline_mode = #tpu.pipeline_mode<synchronous>, transform_indices = @transform_4, window_bounds = array<i64: 1, 32>}, {pipeline_mode = #tpu.pipeline_mode<synchronous>, transform_indices = @transform_5, window_bounds = array<i64: 1, 32>}, {transform_indices = @transform_6, window_bounds = array<i64: 16, 32>}]} {
    %c0_i32 = arith.constant 0 : i32
    %0 = arith.cmpi eq, %arg1, %c0_i32 : i32
    %1 = arith.extui %0 : i1 to i32
    %c0_i32_0 = arith.constant 0 : i32
    %2 = arith.cmpi ne, %1, %c0_i32_0 : i32
    scf.if %2 {
      %cst_10 = arith.constant 0.000000e+00 : f32
      %12 = vector.broadcast %cst_10 : f32 to vector<16x32xf32>
      %c0_11 = arith.constant 0 : index
      %c0_12 = arith.constant 0 : index
      %13 = vector.load %arg9[%c0_11, %c0_12] : memref<16x32xf32, #tpu.memory_space<vmem>>, vector<16x32xf32>
      tpu.vector_store %arg9[%c0_11, %c0_12], %12 {strides = array<i32>} : memref<16x32xf32, #tpu.memory_space<vmem>>, vector<16x32xf32>,
    } else {
    }
    %c0 = arith.constant 0 : index
    %c0_1 = arith.constant 0 : index
    %3 = vector.load %arg9[%c0, %c0_1] : memref<16x32xf32, #tpu.memory_space<vmem>>, vector<16x32xf32>
    %c0_2 = arith.constant 0 : index
    %c0_3 = arith.constant 0 : index
    %4 = vector.load %arg2[%c0_2, %c0_3] : memref<16x64xbf16, #tpu.memory_space<vmem>>, vector<16x64xbf16>
    %c0_4 = arith.constant 0 : index
    %c0_5 = arith.constant 0 : index
    %5 = vector.load %arg3[%c0_4, %c0_5] : memref<64x32xbf16, #tpu.memory_space<vmem>>, vector<64x32xbf16>
    %cst = arith.constant dense<0.000000e+00> : vector<16x32xf32>
    %6 = tpu.matmul %4, %5, %cst {dimension_numbers = #tpu.dot_dimension_numbers<[1], [0], [0], [1], [0, 0, 1, 1], [], []>} : vector<16x64xbf16>, vector<64x32xbf16>, vector<16x32xf32> -> vector<16x32xf32>
    %7 = arith.addf %3, %6 : vector<16x32xf32>
    %c0_6 = arith.constant 0 : index
    %c0_7 = arith.constant 0 : index
    %8 = vector.load %arg9[%c0_6, %c0_7] : memref<16x32xf32, #tpu.memory_space<vmem>>, vector<16x32xf32>
    tpu.vector_store %arg9[%c0_6, %c0_7], %7 {strides = array<i32>} : memref<16x32xf32, #tpu.memory_space<vmem>>, vector<16x32xf32>,
    %c0_i32_8 = arith.constant 0 : i32
    %9 = arith.cmpi eq, %arg1, %c0_i32_8 : i32
    %10 = arith.extui %9 : i1 to i32
    %c0_i32_9 = arith.constant 0 : i32
    %11 = arith.cmpi ne, %10, %c0_i32_9 : i32
    scf.if %11 {
      %c0_10 = arith.constant 0 : index
      %c0_11 = arith.constant 0 : index
      %12 = vector.load %arg9[%c0_10, %c0_11] : memref<16x32xf32, #tpu.memory_space<vmem>>, vector<16x32xf32>
      %c0_12 = arith.constant 0 : index
      %c0_13 = arith.constant 0 : index
      %13 = vector.load %arg4[%c0_12, %c0_13] : memref<1x32xf32, #tpu.memory_space<vmem>>, vector<1x32xf32>
      %14 = vector.broadcast %13 : vector<1x32xf32> to vector<16x32xf32>
      %15 = arith.addf %12, %14 : vector<16x32xf32>
      %c0_14 = arith.constant 0 : index
      %c0_15 = arith.constant 0 : index
      %16 = vector.load %arg5[%c0_14, %c0_15] : memref<16x32xbf16, #tpu.memory_space<vmem>>, vector<16x32xbf16>
      %17 = arith.extf %16 : vector<16x32xbf16> to vector<16x32xf32>
      %18 = arith.addf %15, %17 : vector<16x32xf32>
      %cst_16 = arith.constant dense<0.000000e+00> : vector<16xf32>
      %19 = vector.multi_reduction <add>, %18, %cst_16 [1] : vector<16x32xf32> to vector<16xf32>
      %20 = vector.shape_cast %19 : vector<16xf32> to vector<16x1xf32>
      %cst_17 = arith.constant 3.200000e+01 : f32
      %21 = vector.broadcast %cst_17 : f32 to vector<16x1xf32>
      %22 = arith.divf %20, %21 : vector<16x1xf32>
      %23 = vector.broadcast %22 : vector<16x1xf32> to vector<16x32xf32>
      %24 = arith.subf %18, %23 : vector<16x32xf32>
      %25 = arith.mulf %24, %24 : vector<16x32xf32>
      %cst_18 = arith.constant dense<0.000000e+00> : vector<16xf32>
      %26 = vector.multi_reduction <add>, %25, %cst_18 [1] : vector<16x32xf32> to vector<16xf32>
      %27 = vector.shape_cast %26 : vector<16xf32> to vector<16x1xf32>
      %cst_19 = arith.constant 3.200000e+01 : f32
      %28 = vector.broadcast %cst_19 : f32 to vector<16x1xf32>
      %29 = arith.divf %27, %28 : vector<16x1xf32>
      %30 = vector.broadcast %22 : vector<16x1xf32> to vector<16x32xf32>
      %31 = arith.subf %18, %30 : vector<16x32xf32>
      %cst_20 = arith.constant 9.99999974E-6 : f32
      %32 = vector.broadcast %cst_20 : f32 to vector<16x1xf32>
      %33 = arith.addf %29, %32 : vector<16x1xf32>
      %34 = math.rsqrt %33 : vector<16x1xf32>
      %35 = vector.broadcast %34 : vector<16x1xf32> to vector<16x32xf32>
      %36 = arith.mulf %31, %35 : vector<16x32xf32>
      %c0_21 = arith.constant 0 : index
      %c0_22 = arith.constant 0 : index
      %37 = vector.load %arg6[%c0_21, %c0_22] : memref<1x32xf32, #tpu.memory_space<vmem>>, vector<1x32xf32>
      %38 = vector.broadcast %37 : vector<1x32xf32> to vector<16x32xf32>
      %39 = arith.mulf %36, %38 : vector<16x32xf32>
      %c0_23 = arith.constant 0 : index
      %c0_24 = arith.constant 0 : index
      %40 = vector.load %arg7[%c0_23, %c0_24] : memref<1x32xf32, #tpu.memory_space<vmem>>, vector<1x32xf32>
      %41 = vector.broadcast %40 : vector<1x32xf32> to vector<16x32xf32>
      %42 = arith.addf %39, %41 : vector<16x32xf32>
      %43 = arith.truncf %42 : vector<16x32xf32> to vector<16x32xbf16>
      %c0_25 = arith.constant 0 : index
      %c0_26 = arith.constant 0 : index
      %44 = vector.load %arg8[%c0_25, %c0_26] : memref<16x32xbf16, #tpu.memory_space<vmem>>, vector<16x32xbf16>
      tpu.vector_store %arg8[%c0_25, %c0_26], %43 {strides = array<i32>} : memref<16x32xbf16, #tpu.memory_space<vmem>>, vector<16x32xbf16>,
    } else {
    }
    return
  }
  func.func @transform_0(%arg0: i32, %arg1: i32) -> (i32, i32) {
    %c0_i32 = arith.constant 0 : i32
    return %arg0, %arg1 : i32, i32
  }
  func.func @transform_1(%arg0: i32, %arg1: i32) -> (i32, i32) {
    %c0_i32 = arith.constant 0 : i32
    %c0_i32_0 = arith.constant 0 : i32
    return %arg1, %c0_i32 : i32, i32
  }
  func.func @transform_2(%arg0: i32, %arg1: i32) -> (i32, i32) {
    %c0_i32 = arith.constant 0 : i32
    %c0_i32_0 = arith.constant 0 : i32
    %c0_i32_1 = arith.constant 0 : i32
    return %c0_i32, %c0_i32_0 : i32, i32
  }
  func.func @transform_3(%arg0: i32, %arg1: i32) -> (i32, i32) {
    %c0_i32 = arith.constant 0 : i32
    %c0_i32_0 = arith.constant 0 : i32
    return %arg0, %c0_i32 : i32, i32
  }
  func.func @transform_4(%arg0: i32, %arg1: i32) -> (i32, i32) {
    %c0_i32 = arith.constant 0 : i32
    %c0_i32_0 = arith.constant 0 : i32
    %c0_i32_1 = arith.constant 0 : i32
    return %c0_i32, %c0_i32_0 : i32, i32
  }
  func.func @transform_5(%arg0: i32, %arg1: i32) -> (i32, i32) {
    %c0_i32 = arith.constant 0 : i32
    %c0_i32_0 = arith.constant 0 : i32
    %c0_i32_1 = arith.constant 0 : i32
    return %c0_i32, %c0_i32_0 : i32, i32
  }
  func.func @transform_6(%arg0: i32, %arg1: i32) -> (i32, i32) {
    %c0_i32 = arith.constant 0 : i32
    %c0_i32_0 = arith.constant 0 : i32
    return %arg0, %c0_i32 : i32, i32
  }
}

module attributes {stable_mosaic.version = 11 : i64} {
  func.func @_linear_kernel(%arg0: i32, %arg1: i32, %arg2: i32, %arg3: memref<16x32xbf16, #tpu.memory_space<vmem>>, %arg4: memref<32x32xbf16, #tpu.memory_space<vmem>>, %arg5: memref<1x32xf32, #tpu.memory_space<vmem>>, %arg6: memref<16x32xbf16, #tpu.memory_space<vmem>>, %arg7: memref<16x32xf32, #tpu.memory_space<vmem>>) attributes {dimension_semantics = [#tpu.dimension_semantics<parallel>, #tpu.dimension_semantics<parallel>, #tpu.dimension_semantics<arbitrary>], iteration_bounds = array<i64: 1, 1, 1>, scalar_prefetch = 0 : i64, scratch_operands = 1 : i64, tpu.core_type = #tpu.core_type<tc>, window_params = [{transform_indices = @transform_0, window_bounds = array<i64: 16, 32>}, {transform_indices = @transform_1, window_bounds = array<i64: 32, 32>}, {transform_indices = @transform_2, window_bounds = array<i64: 1, 32>}, {transform_indices = @transform_3, window_bounds = array<i64: 16, 32>}]} {
    %c0_i32 = arith.constant 0 : i32
    %0 = arith.cmpi eq, %arg2, %c0_i32 : i32
    %1 = arith.extui %0 : i1 to i32
    %c0_i32_0 = arith.constant 0 : i32
    %2 = arith.cmpi ne, %1, %c0_i32_0 : i32
    scf.if %2 {
      %cst_10 = arith.constant 0.000000e+00 : f32
      %12 = vector.broadcast %cst_10 : f32 to vector<16x32xf32>
      %c0_11 = arith.constant 0 : index
      %c0_12 = arith.constant 0 : index
      %13 = vector.load %arg7[%c0_11, %c0_12] : memref<16x32xf32, #tpu.memory_space<vmem>>, vector<16x32xf32>
      tpu.vector_store %arg7[%c0_11, %c0_12], %12 {strides = array<i32>} : memref<16x32xf32, #tpu.memory_space<vmem>>, vector<16x32xf32>,
    } else {
    }
    %c0 = arith.constant 0 : index
    %c0_1 = arith.constant 0 : index
    %3 = vector.load %arg7[%c0, %c0_1] : memref<16x32xf32, #tpu.memory_space<vmem>>, vector<16x32xf32>
    %c0_2 = arith.constant 0 : index
    %c0_3 = arith.constant 0 : index
    %4 = vector.load %arg3[%c0_2, %c0_3] : memref<16x32xbf16, #tpu.memory_space<vmem>>, vector<16x32xbf16>
    %c0_4 = arith.constant 0 : index
    %c0_5 = arith.constant 0 : index
    %5 = vector.load %arg4[%c0_4, %c0_5] : memref<32x32xbf16, #tpu.memory_space<vmem>>, vector<32x32xbf16>
    %cst = arith.constant dense<0.000000e+00> : vector<16x32xf32>
    %6 = tpu.matmul %4, %5, %cst {dimension_numbers = #tpu.dot_dimension_numbers<[1], [0], [0], [1], [0, 0, 1, 1], [], []>} : vector<16x32xbf16>, vector<32x32xbf16>, vector<16x32xf32> -> vector<16x32xf32>
    %7 = arith.addf %3, %6 : vector<16x32xf32>
    %c0_6 = arith.constant 0 : index
    %c0_7 = arith.constant 0 : index
    %8 = vector.load %arg7[%c0_6, %c0_7] : memref<16x32xf32, #tpu.memory_space<vmem>>, vector<16x32xf32>
    tpu.vector_store %arg7[%c0_6, %c0_7], %7 {strides = array<i32>} : memref<16x32xf32, #tpu.memory_space<vmem>>, vector<16x32xf32>,
    %c0_i32_8 = arith.constant 0 : i32
    %9 = arith.cmpi eq, %arg2, %c0_i32_8 : i32
    %10 = arith.extui %9 : i1 to i32
    %c0_i32_9 = arith.constant 0 : i32
    %11 = arith.cmpi ne, %10, %c0_i32_9 : i32
    scf.if %11 {
      %c0_10 = arith.constant 0 : index
      %c0_11 = arith.constant 0 : index
      %12 = vector.load %arg7[%c0_10, %c0_11] : memref<16x32xf32, #tpu.memory_space<vmem>>, vector<16x32xf32>
      %c0_12 = arith.constant 0 : index
      %c0_13 = arith.constant 0 : index
      %13 = vector.load %arg5[%c0_12, %c0_13] : memref<1x32xf32, #tpu.memory_space<vmem>>, vector<1x32xf32>
      %14 = vector.broadcast %13 : vector<1x32xf32> to vector<16x32xf32>
      %15 = arith.addf %12, %14 : vector<16x32xf32>
      %16 = math.tanh %15 : vector<16x32xf32>
      %17 = arith.truncf %16 : vector<16x32xf32> to vector<16x32xbf16>
      %c0_14 = arith.constant 0 : index
      %c0_15 = arith.constant 0 : index
      %18 = vector.load %arg6[%c0_14, %c0_15] : memref<16x32xbf16, #tpu.memory_space<vmem>>, vector<16x32xbf16>
      tpu.vector_store %arg6[%c0_14, %c0_15], %17 {strides = array<i32>} : memref<16x32xbf16, #tpu.memory_space<vmem>>, vector<16x32xbf16>,
    } else {
    }
    return
  }
  func.func @transform_0(%arg0: i32, %arg1: i32, %arg2: i32) -> (i32, i32) {
    %c0_i32 = arith.constant 0 : i32
    return %arg0, %arg2 : i32, i32
  }
  func.func @transform_1(%arg0: i32, %arg1: i32, %arg2: i32) -> (i32, i32) {
    %c0_i32 = arith.constant 0 : i32
    return %arg2, %arg1 : i32, i32
  }
  func.func @transform_2(%arg0: i32, %arg1: i32, %arg2: i32) -> (i32, i32) {
    %c0_i32 = arith.constant 0 : i32
    %c0_i32_0 = arith.constant 0 : i32
    return %c0_i32, %arg1 : i32, i32
  }
  func.func @transform_3(%arg0: i32, %arg1: i32, %arg2: i32) -> (i32, i32) {
    %c0_i32 = arith.constant 0 : i32
    return %arg0, %arg1 : i32, i32
  }
}

module attributes {stable_mosaic.version = 11 : i64} {
  func.func @_lmhead_xent_kernel(%arg0: i32, %arg1: i32, %arg2: memref<1x14xi32, #tpu.memory_space<vmem>>, %arg3: memref<14x32xbf16, #tpu.memory_space<vmem>>, %arg4: memref<64x32xbf16, #tpu.memory_space<vmem>>, %arg5: memref<1x14xf32, #tpu.memory_space<vmem>>, %arg6: memref<1x14xf32, #tpu.memory_space<vmem>>, %arg7: memref<1x14xf32, #tpu.memory_space<vmem>>, %arg8: memref<1x14xf32, #tpu.memory_space<vmem>>) attributes {dimension_semantics = [#tpu.dimension_semantics<parallel>, #tpu.dimension_semantics<arbitrary>], iteration_bounds = array<i64: 1, 1>, scalar_prefetch = 0 : i64, scratch_operands = 3 : i64, tpu.core_type = #tpu.core_type<tc>, window_params = [{transform_indices = @transform_0, window_bounds = array<i64: 1, 14>}, {transform_indices = @transform_1, window_bounds = array<i64: 14, 32>}, {transform_indices = @transform_2, window_bounds = array<i64: 64, 32>}, {transform_indices = @transform_3, window_bounds = array<i64: 1, 14>}]} {
    %c0_i32 = arith.constant 0 : i32
    %0 = arith.cmpi eq, %arg1, %c0_i32 : i32
    %1 = arith.extui %0 : i1 to i32
    %c0_i32_0 = arith.constant 0 : i32
    %2 = arith.cmpi ne, %1, %c0_i32_0 : i32
    scf.if %2 {
      %cst_24 = arith.constant -1.000000e+30 : f32
      %40 = vector.broadcast %cst_24 : f32 to vector<1x14xf32>
      %c0_25 = arith.constant 0 : index
      %c0_26 = arith.constant 0 : index
      %41 = vector.load %arg6[%c0_25, %c0_26] : memref<1x14xf32, #tpu.memory_space<vmem>>, vector<1x14xf32>
      tpu.vector_store %arg6[%c0_25, %c0_26], %40 {strides = array<i32>} : memref<1x14xf32, #tpu.memory_space<vmem>>, vector<1x14xf32>,
      %cst_27 = arith.constant 0.000000e+00 : f32
      %42 = vector.broadcast %cst_27 : f32 to vector<1x14xf32>
      %c0_28 = arith.constant 0 : index
      %c0_29 = arith.constant 0 : index
      %43 = vector.load %arg7[%c0_28, %c0_29] : memref<1x14xf32, #tpu.memory_space<vmem>>, vector<1x14xf32>
      tpu.vector_store %arg7[%c0_28, %c0_29], %42 {strides = array<i32>} : memref<1x14xf32, #tpu.memory_space<vmem>>, vector<1x14xf32>,
      %cst_30 = arith.constant 0.000000e+00 : f32
      %44 = vector.broadcast %cst_30 : f32 to vector<1x14xf32>
      %c0_31 = arith.constant 0 : index
      %c0_32 = arith.constant 0 : index
      %45 = vector.load %arg8[%c0_31, %c0_32] : memref<1x14xf32, #tpu.memory_space<vmem>>, vector<1x14xf32>
      tpu.vector_store %arg8[%c0_31, %c0_32], %44 {strides = array<i32>} : memref<1x14xf32, #tpu.memory_space<vmem>>, vector<1x14xf32>,
    } else {
    }
    %c0 = arith.constant 0 : index
    %c0_1 = arith.constant 0 : index
    %3 = vector.load %arg4[%c0, %c0_1] : memref<64x32xbf16, #tpu.memory_space<vmem>>, vector<64x32xbf16>
    %c0_2 = arith.constant 0 : index
    %c0_3 = arith.constant 0 : index
    %4 = vector.load %arg3[%c0_2, %c0_3] : memref<14x32xbf16, #tpu.memory_space<vmem>>, vector<14x32xbf16>
    %cst = arith.constant dense<0.000000e+00> : vector<64x14xf32>
    %5 = tpu.matmul %3, %4, %cst {dimension_numbers = #tpu.dot_dimension_numbers<[1], [1], [0], [0], [0, 0, 1, 0], [], []>} : vector<64x32xbf16>, vector<14x32xbf16>, vector<64x14xf32> -> vector<64x14xf32>
    %6 = tpu.iota {dimensions = array<i32: 0>} : vector<64x1xi32>
    %c0_4 = arith.constant 0 : index
    %c0_5 = arith.constant 0 : index
    %7 = vector.load %arg6[%c0_4, %c0_5] : memref<1x14xf32, #tpu.memory_space<vmem>>, vector<1x14xf32>
    %cst_6 = arith.constant dense<0xFF800000> : vector<14xf32>
    %8 = vector.multi_reduction <maximumf>, %5, %cst_6 [0] : vector<64x14xf32> to vector<14xf32>
    %9 = vector.shape_cast %8 : vector<14xf32> to vector<1x14xf32>
    %10 = arith.maximumf %7, %9 : vector<1x14xf32>
    %11 = arith.subf %7, %10 : vector<1x14xf32>
    %12 = math.exp %11 : vector<1x14xf32>
    %c0_7 = arith.constant 0 : index
    %c0_8 = arith.constant 0 : index
    %13 = vector.load %arg7[%c0_7, %c0_8] : memref<1x14xf32, #tpu.memory_space<vmem>>, vector<1x14xf32>
    %14 = arith.mulf %13, %12 : vector<1x14xf32>
    %15 = vector.broadcast %10 : vector<1x14xf32> to vector<64x14xf32>
    %16 = arith.subf %5, %15 : vector<64x14xf32>
    %17 = math.exp %16 : vector<64x14xf32>
    %cst_9 = arith.constant dense<0.000000e+00> : vector<14xf32>
    %18 = vector.multi_reduction <add>, %17, %cst_9 [0] : vector<64x14xf32> to vector<14xf32>
    %19 = vector.shape_cast %18 : vector<14xf32> to vector<1x14xf32>
    %20 = arith.addf %14, %19 : vector<1x14xf32>
    %c0_10 = arith.constant 0 : index
    %c0_11 = arith.constant 0 : index
    %21 = vector.load %arg7[%c0_10, %c0_11] : memref<1x14xf32, #tpu.memory_space<vmem>>, vector<1x14xf32>
    tpu.vector_store %arg7[%c0_10, %c0_11], %20 {strides = array<i32>} : memref<1x14xf32, #tpu.memory_space<vmem>>, vector<1x14xf32>,
    %c0_12 = arith.constant 0 : index
    %c0_13 = arith.constant 0 : index
    %22 = vector.load %arg6[%c0_12, %c0_13] : memref<1x14xf32, #tpu.memory_space<vmem>>, vector<1x14xf32>
    tpu.vector_store %arg6[%c0_12, %c0_13], %10 {strides = array<i32>} : memref<1x14xf32, #tpu.memory_space<vmem>>, vector<1x14xf32>,
    %c0_14 = arith.constant 0 : index
    %c0_15 = arith.constant 0 : index
    %23 = vector.load %arg2[%c0_14, %c0_15] : memref<1x14xi32, #tpu.memory_space<vmem>>, vector<1x14xi32>
    %c64_i32 = arith.constant 64 : i32
    %24 = arith.muli %arg1, %c64_i32 : i32
    %25 = vector.broadcast %24 : i32 to vector<1x14xi32>
    %26 = arith.subi %23, %25 : vector<1x14xi32>
    %c0_16 = arith.constant 0 : index
    %c0_17 = arith.constant 0 : index
    %27 = vector.load %arg8[%c0_16, %c0_17] : memref<1x14xf32, #tpu.memory_space<vmem>>, vector<1x14xf32>
    %28 = vector.broadcast %6 : vector<64x1xi32> to vector<64x14xi32>
    %29 = vector.broadcast %26 : vector<1x14xi32> to vector<64x14xi32>
    %30 = arith.cmpi eq, %28, %29 : vector<64x14xi32>
    %cst_18 = arith.constant 0.000000e+00 : f32
    %31 = vector.broadcast %cst_18 : f32 to vector<64x14xf32>
    %32 = arith.select %30, %5, %31 : vector<64x14xi1>, vector<64x14xf32>
    %cst_19 = arith.constant dense<0.000000e+00> : vector<14xf32>
    %33 = vector.multi_reduction <add>, %32, %cst_19 [0] : vector<64x14xf32> to vector<14xf32>
    %34 = vector.shape_cast %33 : vector<14xf32> to vector<1x14xf32>
    %35 = arith.addf %27, %34 : vector<1x14xf32>
    %c0_20 = arith.constant 0 : index
    %c0_21 = arith.constant 0 : index
    %36 = vector.load %arg8[%c0_20, %c0_21] : memref<1x14xf32, #tpu.memory_space<vmem>>, vector<1x14xf32>
    tpu.vector_store %arg8[%c0_20, %c0_21], %35 {strides = array<i32>} : memref<1x14xf32, #tpu.memory_space<vmem>>, vector<1x14xf32>,
    %c0_i32_22 = arith.constant 0 : i32
    %37 = arith.cmpi eq, %arg1, %c0_i32_22 : i32
    %38 = arith.extui %37 : i1 to i32
    %c0_i32_23 = arith.constant 0 : i32
    %39 = arith.cmpi ne, %38, %c0_i32_23 : i32
    scf.if %39 {
      %c0_24 = arith.constant 0 : index
      %c0_25 = arith.constant 0 : index
      %40 = vector.load %arg6[%c0_24, %c0_25] : memref<1x14xf32, #tpu.memory_space<vmem>>, vector<1x14xf32>
      %c0_26 = arith.constant 0 : index
      %c0_27 = arith.constant 0 : index
      %41 = vector.load %arg7[%c0_26, %c0_27] : memref<1x14xf32, #tpu.memory_space<vmem>>, vector<1x14xf32>
      %42 = math.log %41 : vector<1x14xf32>
      %43 = arith.addf %40, %42 : vector<1x14xf32>
      %c0_28 = arith.constant 0 : index
      %c0_29 = arith.constant 0 : index
      %44 = vector.load %arg8[%c0_28, %c0_29] : memref<1x14xf32, #tpu.memory_space<vmem>>, vector<1x14xf32>
      %45 = arith.subf %43, %44 : vector<1x14xf32>
      %c0_30 = arith.constant 0 : index
      %c0_31 = arith.constant 0 : index
      %46 = vector.load %arg5[%c0_30, %c0_31] : memref<1x14xf32, #tpu.memory_space<vmem>>, vector<1x14xf32>
      tpu.vector_store %arg5[%c0_30, %c0_31], %45 {strides = array<i32>} : memref<1x14xf32, #tpu.memory_space<vmem>>, vector<1x14xf32>,
    } else {
    }
    return
  }
  func.func @transform_0(%arg0: i32, %arg1: i32) -> (i32, i32) {
    %c0_i32 = arith.constant 0 : i32
    %c0_i32_0 = arith.constant 0 : i32
    return %c0_i32, %arg0 : i32, i32
  }
  func.func @transform_1(%arg0: i32, %arg1: i32) -> (i32, i32) {
    %c0_i32 = arith.constant 0 : i32
    %c0_i32_0 = arith.constant 0 : i32
    return %arg0, %c0_i32 : i32, i32
  }
  func.func @transform_2(%arg0: i32, %arg1: i32) -> (i32, i32) {
    %c0_i32 = arith.constant 0 : i32
    %c0_i32_0 = arith.constant 0 : i32
    return %arg1, %c0_i32 : i32, i32
  }
  func.func @transform_3(%arg0: i32, %arg1: i32) -> (i32, i32) {
    %c0_i32 = arith.constant 0 : i32
    %c0_i32_0 = arith.constant 0 : i32
    return %c0_i32, %arg0 : i32, i32
  }
}

</mosaic_0001>

<llo_original>
// kernel: seq2seq_forward.20
$region0: #{seq2seq_forward.20}
  #allocation0 [shape = 'u32[]', space=smem, size = 0x4, offset = 0x4, fixed_abs, tag = 'smem constant byte address 0x4 - core index']
  #allocation1 [shape = 'u32[144,128]{1,0:T(1,128)}', space=vmem, size = 0x12000, scoped, tag = 'internal scratch']
  #allocation2 [shape = 'f32[16,96]{1,0:T(8,128)}', space=vmem, size = 0x2000, scoped, tag = 'scratch operand']
  %s0 = inlined_call_operand.vmem [shape: bf16[16,32], index: 0, kind: input, shape index: {}]
  %s1 = inlined_call_operand.vmem [shape: bf16[32,96], index: 1, kind: input, shape index: {}]
  %s2 = inlined_call_operand.vmem [shape: f32[1,96], index: 2, kind: input, shape index: {}]
  %s3 = inlined_call_operand.vmem [shape: bf16[16,96], index: 3, kind: output, shape index: {}]
  %s4 = sld [smem:[#allocation0]]
  $region30: #{seq2seq_forward.20} parent=0
    _
  %s6 = ssub.s32 1, %s4
  %s7 = scalar_select 0, %s6, %s4
  // Predicated region
  $region2: #{seq2seq_forward.20} parent=0 // pred_check
    _
  $region3: #{seq2seq_forward.20} parent=0 // pred_check_branch
    %9 = sbr.rel (0) target = $region5
  $region4: #{seq2seq_forward.20} parent=0 // pred_region
    _
  $region5: #{seq2seq_forward.20} parent=0 // pred_fallthru
    _
  // Predicated region
  $region6: #{seq2seq_forward.20} parent=0 // pred_check
    _
  $region7: #{seq2seq_forward.20} parent=0 // pred_check_branch
    %11 = sbr.rel (0) target = $region9
  $region8: #{seq2seq_forward.20} parent=0 // pred_region
    _
  $region9: #{seq2seq_forward.20} parent=0 // pred_fallthru
    _
  // Predicated region
  $region10: #{seq2seq_forward.20} parent=0 // pred_check
    _
  $region11: #{seq2seq_forward.20} parent=0 // pred_check_branch
    %13 = sbr.rel (0) target = $region13
  $region12: #{seq2seq_forward.20} parent=0 // pred_region
    _
  $region13: #{seq2seq_forward.20} parent=0 // pred_fallthru
    _
  %p15 = scmp.eq.s32.totalorder 0, 0
  // Predicated region
  $region14: #{seq2seq_forward.20} parent=0 // pred_check
    %p16 = pneg %p15
  $region15: #{seq2seq_forward.20} parent=0 // pred_check_branch
    %18 = sbr.rel (%p16) target = $region17
  $region16: #{seq2seq_forward.20} parent=0 // pred_region
    %vm19 = vcmask 785408
    %20 = vst.msk [vmem:[#allocation2] sm:$0xff] %vm19, 0.0
    %21 = vst.msk [vmem:[#allocation2 + $0x8] sm:$0xff] %vm19, 0.0
  $region17: #{seq2seq_forward.20} parent=0 // pred_fallthru
    _
  %v22 = vld [vmem:[#allocation2] sm:$0xff]
  %v23 = vld [vmem:[#allocation2 + $0x8] sm:$0xff]
  %v24 = vld [vmem:[%s0] sm:$0xf]
  %v25 = vld [vmem:[%s0 + $0x4] sm:$0xf]
  %v26 = vld [vmem:[%s1] sm:$0xf]
  %v27 = vld [vmem:[%s1 + $0x4] sm:$0xf]
  %v28 = vld [vmem:[%s1 + $0x8] sm:$0xf]
  %v29 = vld [vmem:[%s1 + $0xc] sm:$0xf]
  %v32 = vunpack.c.l.b16 %v24
  %v33 = vunpack.c.l.b16 %v25
  %v34 = vpack.c.b16 %v33, %v32
  %v39 = vunpack.c.l.b16 %v26
  %v40 = vunpack.c.l.b16 %v27
  %v41 = vunpack.c.l.b16 %v28
  %v42 = vunpack.c.l.b16 %v29
  %v43 = vpack.c.b16 %v40, %v39
  %v44 = vpack.c.b16 %v42, %v41
  %vm47 = vcmask 261120
  %v49 = vsel %vm47, %v34, 0
  %51 = vmatprep.subr.bf16.mxu0 0
  %52 = vmatpush1.bf16.msra.mxu0 0
  %53 = vmatprep.subr.bf16.mxu0 0
  %54 = vmatpush1.bf16.msra.mxu0 0
  %55 = vmatprep.subr.bf16.mxu0 0
  %56 = vmatpush1.bf16.msra.mxu0 0
  %57 = vmatprep.subr.bf16.mxu0 0
  %58 = vmatpush1.bf16.msra.mxu0 0
  %59 = vmatprep.subr.bf16.mxu0 0
  %60 = vmatpush1.bf16.msra.mxu0 0
  %61 = vmatprep.subr.bf16.mxu0 0
  %62 = vmatpush1.bf16.msra.mxu0 0
  %63 = vmatprep.subr.bf16.mxu0 0
  %64 = vmatpush1.bf16.msra.mxu0 %v44
  %65 = vmatprep.subr.bf16.mxu0 0
  %66 = vmatpush1.bf16.msra.mxu0 %v43
  %67 = vmatprep.subr.bf16.mxu0 0
  %68 = vmatpush2.bf16.msra.mxu0 0
  %69 = vmatprep.subr.bf16.mxu0 0
  %70 = vmatpush2.bf16.msra.mxu0 0
  %71 = vmatprep.subr.bf16.mxu0 0
  %72 = vmatpush2.bf16.msra.mxu0 0
  %73 = vmatprep.subr.bf16.mxu0 0
  %74 = vmatpush2.bf16.msra.mxu0 0
  %75 = vmatprep.subr.bf16.mxu0 0
  %76 = vmatpush2.bf16.msra.mxu0 0
  %77 = vmatprep.subr.bf16.mxu0 0
  %78 = vmatpush2.bf16.msra.mxu0 0
  %79 = vmatprep.subr.bf16.mxu0 0
  %80 = vmatpush2.bf16.msra.mxu0 0
  %81 = vmatprep.subr.bf16.mxu0 0
  %82 = vmatpush2.bf16.msra.mxu0 0
  %83 = vmatprep.mubr.bf16.mxu0 0
  %84 = vmatmul.mubr.bf16.gmra.mxu0 %v49
  %v85 = vpop.f32.mrf.mxu0
  %v86 = vadd.f32 0.0, %v85
  %v87 = vpop.f32.mrf.mxu0
  %v88 = vpop.f32.mrf.mxu0
  %v89 = vadd.f32 0.0, %v88
  %v90 = vpop.f32.mrf.mxu0
  %91 = vdwg.mxu0
  %v92 = vadd.f32 %v22, %v86
  %v93 = vadd.f32 %v23, %v89
  %vm94 = vcmask 785408
  %95 = vst.msk [vmem:[#allocation2] sm:$0xff] %vm94, %v92
  %96 = vst.msk [vmem:[#allocation2 + $0x8] sm:$0xff] %vm94, %v93
  // Predicated region
  $region18: #{seq2seq_forward.20} parent=0 // pred_check
    %p97 = pneg %p15
  $region19: #{seq2seq_forward.20} parent=0 // pred_check_branch
    %99 = sbr.rel (%p97) target = $region21
  $region20: #{seq2seq_forward.20} parent=0 // pred_region
    %v100 = vld [vmem:[#allocation2] sm:$0xff]
    %v101 = vld [vmem:[#allocation2 + $0x8] sm:$0xff]
    %v102 = vld [vmem:[%s2] sm:$0x1]
    %v104 = vlaneseq
    %v105 = vshrl.u32 %v104, 7
    %v106 = vsub.s32 0, %v105
    %v107 = vrot.slane %v102, %v106
    %v109 = vadd.f32 %v100, %v107
    %v110 = vadd.f32 %v101, %v107
    %v111 = vpack.c.bf16 %v110, %v109
    %v113 = vunpack.c.l.b16 %v111
    %v114 = vunpack.c.h.b16 %v111
    %v115 = vpack.c.b16 %v113, %v113
    %v116 = vpack.c.b16 %v114, %v114
    %vm119 = vcmask 781312
    %120 = vst.msk [vmem:[%s3] sm:$0xf] %vm119, %v115
    %121 = vst.msk [vmem:[%s3 + $0x4] sm:$0xf] %vm119, %v116
  $region21: #{seq2seq_forward.20} parent=0 // pred_fallthru
    _
  // Predicated region
  $region22: #{seq2seq_forward.20} parent=0 // pred_check
    _
  $region23: #{seq2seq_forward.20} parent=0 // pred_check_branch
    %123 = sbr.rel (0) target = $region25
  $region24: #{seq2seq_forward.20} parent=0 // pred_region
    _
  $region25: #{seq2seq_forward.20} parent=0 // pred_fallthru
    _
  // Predicated region
  $region26: #{seq2seq_forward.20} parent=0 // pred_check
    _
  $region27: #{seq2seq_forward.20} parent=0 // pred_check_branch
    %125 = sbr.rel (0) target = $region29
  $region28: #{seq2seq_forward.20} parent=0 // pred_region
    _
  $region29: #{seq2seq_forward.20} parent=0 // pred_fallthru
    _

// kernel: seq2seq_forward.21
$region0: #{seq2seq_forward.21}
  #allocation0 [shape = 'u32[]', space=smem, size = 0x4, offset = 0x4, fixed_abs, tag = 'smem constant byte address 0x4 - core index']
  #allocation1 [shape = 'u32[144,128]{1,0:T(1,128)}', space=vmem, size = 0x12000, scoped, tag = 'internal scratch']
  #allocation2 [shape = 'f32[8,1]{1,0:T(8,128)}', space=vmem, size = 0x1000, scoped, tag = 'scratch operand']
  #allocation3 [shape = 'f32[8,1]{1,0:T(8,128)}', space=vmem, size = 0x1000, scoped, tag = 'scratch operand']
  #allocation4 [shape = 'f32[8,8]{1,0:T(8,128)}', space=vmem, size = 0x1000, scoped, tag = 'scratch operand']
  %s0 = inlined_call_operand.vmem [shape: bf16[2,4,8,8], index: 0, kind: input, shape index: {}]
  %s1 = inlined_call_operand.vmem [shape: bf16[2,4,8,8], index: 1, kind: input, shape index: {}]
  %s2 = inlined_call_operand.vmem [shape: bf16[2,4,8,8], index: 2, kind: input, shape index: {}]
  %s3 = inlined_call_operand.vmem [shape: bf16[2,4,8,8], index: 3, kind: output, shape index: {}]
  %s4 = sld [smem:[#allocation0]]
  $region53: #{seq2seq_forward.21} parent=0
    _
  %s6 = ssub.s32 1, %s4
  %s7 = scalar_select 0, %s6, %s4
  loop: start=0, step=1, limit=10
  $region2: #{seq2seq_forward.21} parent=0 // loop_pre_header
    _
  $region3: #{seq2seq_forward.21} parent=0 // loop_header
    %s9 = sphi 0, %s13
    %p10 = scmp.ge.s32.totalorder %s9, 10
    %s16 = sphi 0, %s35
    %s17 = sphi 0, %s31
    %s18 = sphi 0, %s27
    %s19 = sphi 0, %s16
    %s20 = sphi 0, %s17
    %s21 = sphi 0, %s18
    %s22 = sphi 0, %s19
    %s23 = sphi 0, %s20
    %s24 = sphi 0, %s21
    %s40 = sphi 0, %s42
    %s43 = sphi 0, %s40
    %s44 = sphi 0, %s43
    %s60 = sphi 0, %s44
    %s70 = sphi 0, %s72
    %s73 = sphi 0, %s70
    %s74 = sphi 0, %s73
    %s90 = sphi 0, %s74
    %s100 = sphi 0, %s102
    %s103 = sphi 0, %s100
    %s104 = sphi 0, %s103
    %s120 = sphi 0, %s104
    %s128 = sphi 0, %s130
    %s131 = sphi 0, %s128
    %s132 = sphi 0, %s131
    %s148 = sphi 0, %s132
  $region4: #{seq2seq_forward.21} parent=0 // loop_header_branch
    %12 = sbr.rel (%p10) target = $region8
  $region5: #{seq2seq_forward.21} parent=0 // loop_body
    %s14 = ssub.s32 %s9, 1
    %s15 = ssub.s32 %s9, 2
    %s25 = sadd.s32 1, %s18
    %p26 = scmp.ge.s32.totalorder %s25, 1
    %s27 = scalar_select %p26, 0, %s25
    %s28 = sadd.s32 1, %s17
    %s29 = scalar_select %p26, %s28, %s17
    %p30 = scmp.ge.s32.totalorder %s29, 4
    %s31 = scalar_select %p30, 0, %s29
    %s32 = sadd.s32 1, %s16
    %s33 = scalar_select %p30, %s32, %s16
    %p34 = scmp.ge.s32.totalorder %s33, 2
    %s35 = scalar_select %p34, 0, %s33
    %s36 = ssub.s32 %s16, %s35
    %s37 = ssub.s32 %s17, %s31
    %s38 = sor.u32 %s36, %s37
    %p39 = scmp.eq.s32.totalorder %s38, 0
    %s41 = sadd.s32 %s40, 1
    %s42 = scalar_select %p39, %s40, %s41
    %p45 = pneg %p39
    %p46 = scmp.eq.s32.totalorder %s9, 7
    %p47 = por %p45, %p46
    %p48 = scmp.ne.s32.totalorder %s40, %s43
    %p49 = scmp.eq.s32.totalorder %s9, 0
    %p50 = por %p48, %p49
    %p51 = scmp.ne.s32.totalorder %s40, %s43
    %p52 = scmp.eq.s32.totalorder %s14, 7
    %p53 = por %p51, %p52
    %p54 = scmp.ne.s32.totalorder %s43, %s44
    %p55 = scmp.eq.s32.totalorder %s14, 0
    %p56 = por %p54, %p55
    %p57 = scmp.ne.s32.totalorder %s43, %s44
    %p58 = scmp.eq.s32.totalorder %s15, 7
    %p59 = por %p57, %p58
    %p61 = scmp.ne.s32.totalorder %s44, %s60
    %p62 = scmp.eq.s32.totalorder %s15, 0
    %p63 = por %p61, %p62
    %s64 = ssub.s32 %s16, %s35
    %s65 = ssub.s32 %s17, %s31
    %s66 = sor.u32 %s64, %s65
    %s67 = ssub.s32 %s18, %s27
    %s68 = sor.u32 %s66, %s67
    %p69 = scmp.eq.s32.totalorder %s68, 0
    %s71 = sadd.s32 %s70, 1
    %s72 = scalar_select %p69, %s70, %s71
    %p75 = pneg %p69
    %p76 = scmp.eq.s32.totalorder %s9, 7
    %p77 = por %p75, %p76
    %p78 = scmp.ne.s32.totalorder %s70, %s73
    %p79 = scmp.eq.s32.totalorder %s9, 0
    %p80 = por %p78, %p79
    %p81 = scmp.ne.s32.totalorder %s70, %s73
    %p82 = scmp.eq.s32.totalorder %s14, 7
    %p83 = por %p81, %p82
    %p84 = scmp.ne.s32.totalorder %s73, %s74
    %p85 = scmp.eq.s32.totalorder %s14, 0
    %p86 = por %p84, %p85
    %p87 = scmp.ne.s32.totalorder %s73, %s74
    %p88 = scmp.eq.s32.totalorder %s15, 7
    %p89 = por %p87, %p88
    %p91 = scmp.ne.s32.totalorder %s74, %s90
    %p92 = scmp.eq.s32.totalorder %s15, 0
    %p93 = por %p91, %p92
    %s94 = ssub.s32 %s16, %s35
    %s95 = ssub.s32 %s17, %s31
    %s96 = sor.u32 %s94, %s95
    %s97 = ssub.s32 %s18, %s27
    %s98 = sor.u32 %s96, %s97
    %p99 = scmp.eq.s32.totalorder %s98, 0
    %s101 = sadd.s32 %s100, 1
    %s102 = scalar_select %p99, %s100, %s101
    %p105 = pneg %p99
    %p106 = scmp.eq.s32.totalorder %s9, 7
    %p107 = por %p105, %p106
    %p108 = scmp.ne.s32.totalorder %s100, %s103
    %p109 = scmp.eq.s32.totalorder %s9, 0
    %p110 = por %p108, %p109
    %p111 = scmp.ne.s32.totalorder %s100, %s103
    %p112 = scmp.eq.s32.totalorder %s14, 7
    %p113 = por %p111, %p112
    %p114 = scmp.ne.s32.totalorder %s103, %s104
    %p115 = scmp.eq.s32.totalorder %s14, 0
    %p116 = por %p114, %p115
    %p117 = scmp.ne.s32.totalorder %s103, %s104
    %p118 = scmp.eq.s32.totalorder %s15, 7
    %p119 = por %p117, %p118
    %p121 = scmp.ne.s32.totalorder %s104, %s120
    %p122 = scmp.eq.s32.totalorder %s15, 0
    %p123 = por %p121, %p122
    %s124 = ssub.s32 %s16, %s35
    %s125 = ssub.s32 %s17, %s31
    %s126 = sor.u32 %s124, %s125
    %p127 = scmp.eq.s32.totalorder %s126, 0
    %s129 = sadd.s32 %s128, 1
    %s130 = scalar_select %p127, %s128, %s129
    %p133 = pneg %p127
    %p134 = scmp.eq.s32.totalorder %s9, 7
    %p135 = por %p133, %p134
    %p136 = scmp.ne.s32.totalorder %s128, %s131
    %p137 = scmp.eq.s32.totalorder %s9, 0
    %p138 = por %p136, %p137
    %p139 = scmp.ne.s32.totalorder %s128, %s131
    %p140 = scmp.eq.s32.totalorder %s14, 7
    %p141 = por %p139, %p140
    %p142 = scmp.ne.s32.totalorder %s131, %s132
    %p143 = scmp.eq.s32.totalorder %s14, 0
    %p144 = por %p142, %p143
    %p145 = scmp.ne.s32.totalorder %s131, %s132
    %p146 = scmp.eq.s32.totalorder %s15, 7
    %p147 = por %p145, %p146
    %p149 = scmp.ne.s32.totalorder %s132, %s148
    %p150 = scmp.eq.s32.totalorder %s15, 0
    %p151 = por %p149, %p150
    %p152 = scmp.le.s32.totalorder 1, %s9
    %p153 = scmp.lt.s32.totalorder %s9, 9
    %p154 = pnand %p152, %p153
    %p155 = pneg %p154
    // Predicated region
    $region9: #{seq2seq_forward.21} parent=5 // pred_check
      _
    $region10: #{seq2seq_forward.21} parent=5 // pred_check_branch
      %157 = sbr.rel (%p154) target = $region12
    $region11: #{seq2seq_forward.21} parent=5 // pred_region
      %s158 = ssub.s32 %s9, 1
    $region12: #{seq2seq_forward.21} parent=5 // pred_fallthru
      _
    %p159 = scmp.lt.s32.totalorder %s9, 8
    // Predicated region
    $region13: #{seq2seq_forward.21} parent=5 // pred_check
      %p160 = pneg %p159
    $region14: #{seq2seq_forward.21} parent=5 // pred_check_branch
      %162 = sbr.rel (%p160) target = $region16
    $region15: #{seq2seq_forward.21} parent=5 // pred_region
      // Predicated region
      $region17: #{seq2seq_forward.21} parent=15 // pred_check
        %p163 = pneg %p50
      $region18: #{seq2seq_forward.21} parent=15 // pred_check_branch
        %165 = sbr.rel (%p163) target = $region20
      $region19: #{seq2seq_forward.21} parent=15 // pred_region
        %p166 = scmp.lt.s32.totalorder %s16, 1
        %s167 = scalar_select %p166, %s16, 1
        %p168 = scmp.lt.s32.totalorder %s17, 3
        %s169 = scalar_select %p168, %s17, 3
        %s170 = smul.addr %s167, 4
        %s171 = sadd.s32 %s169, %s170
        %s172 = smul.addr %s171, 4
        %s173 = scalar_lea.vmem %s0, %s172
      $region20: #{seq2seq_forward.21} parent=15 // pred_fallthru
        _
      // Predicated region
      $region21: #{seq2seq_forward.21} parent=15 // pred_check
        %p174 = pneg %p80
      $region22: #{seq2seq_forward.21} parent=15 // pred_check_branch
        %176 = sbr.rel (%p174) target = $region24
      $region23: #{seq2seq_forward.21} parent=15 // pred_region
        %p177 = scmp.lt.s32.totalorder %s16, 1
        %s178 = scalar_select %p177, %s16, 1
        %p179 = scmp.lt.s32.totalorder %s17, 3
        %s180 = scalar_select %p179, %s17, 3
        %p181 = scmp.lt.s32.totalorder %s18, 0
        %s182 = scalar_select %p181, %s18, 0
        %s183 = sadd.s32 %s182, %s180
        %s184 = smul.addr %s178, 4
        %s185 = sadd.s32 %s183, %s184
        %s186 = smul.addr %s185, 4
        %s187 = scalar_lea.vmem %s1, %s186
      $region24: #{seq2seq_forward.21} parent=15 // pred_fallthru
        _
      // Predicated region
      $region25: #{seq2seq_forward.21} parent=15 // pred_check
        %p188 = pneg %p110
      $region26: #{seq2seq_forward.21} parent=15 // pred_check_branch
        %190 = sbr.rel (%p188) target = $region28
      $region27: #{seq2seq_forward.21} parent=15 // pred_region
        %p191 = scmp.lt.s32.totalorder %s16, 1
        %s192 = scalar_select %p191, %s16, 1
        %p193 = scmp.lt.s32.totalorder %s17, 3
        %s194 = scalar_select %p193, %s17, 3
        %p195 = scmp.lt.s32.totalorder %s18, 0
        %s196 = scalar_select %p195, %s18, 0
        %s197 = sadd.s32 %s196, %s194
        %s198 = smul.addr %s192, 4
        %s199 = sadd.s32 %s197, %s198
        %s200 = smul.addr %s199, 4
        %s201 = scalar_lea.vmem %s2, %s200
      $region28: #{seq2seq_forward.21} parent=15 // pred_fallthru
        _
    $region16: #{seq2seq_forward.21} parent=5 // pred_fallthru
      _
    %p202 = scmp.le.s32.totalorder 1, %s9
    %p203 = scmp.lt.s32.totalorder %s9, 9
    %p204 = pnand %p202, %p203
    %p205 = pneg %p204
    // Predicated region
    $region29: #{seq2seq_forward.21} parent=5 // pred_check
      _
    $region30: #{seq2seq_forward.21} parent=5 // pred_check_branch
      %207 = sbr.rel (%p204) target = $region32
    $region31: #{seq2seq_forward.21} parent=5 // pred_region
      %s208 = ssub.s32 %s9, 1
      %p209 = scmp.lt.s32.totalorder %s19, 1
      %s210 = scalar_select %p209, %s19, 1
      %p211 = scmp.lt.s32.totalorder %s20, 3
      %s212 = scalar_select %p211, %s20, 3
      %s213 = smul.addr %s210, 4
      %s214 = sadd.s32 %s212, %s213
      %s215 = smul.addr %s214, 4
      %s216 = scalar_lea.vmem %s0, %s215
      %p217 = pneg %p56
      %p218 = pneg %p53
      %p219 = scmp.lt.s32.totalorder %s19, 1
      %s220 = scalar_select %p219, %s19, 1
      %p221 = scmp.lt.s32.totalorder %s20, 3
      %s222 = scalar_select %p221, %s20, 3
      %p223 = scmp.lt.s32.totalorder %s21, 0
      %s224 = scalar_select %p223, %s21, 0
      %s225 = sadd.s32 %s224, %s222
      %s226 = smul.addr %s220, 4
      %s227 = sadd.s32 %s225, %s226
      %s228 = smul.addr %s227, 4
      %s229 = scalar_lea.vmem %s1, %s228
      %p230 = pneg %p86
      %p231 = pneg %p83
      %p232 = scmp.lt.s32.totalorder %s19, 1
      %s233 = scalar_select %p232, %s19, 1
      %p234 = scmp.lt.s32.totalorder %s20, 3
      %s235 = scalar_select %p234, %s20, 3
      %p236 = scmp.lt.s32.totalorder %s21, 0
      %s237 = scalar_select %p236, %s21, 0
      %s238 = sadd.s32 %s237, %s235
      %s239 = smul.addr %s233, 4
      %s240 = sadd.s32 %s238, %s239
      %s241 = smul.addr %s240, 4
      %s242 = scalar_lea.vmem %s2, %s241
      %p243 = pneg %p116
      %p244 = pneg %p113
      %p245 = pneg %p144
      %p246 = pneg %p141
      %p247 = scmp.lt.s32.totalorder %s19, 1
      %s248 = scalar_select %p247, %s19, 1
      %p249 = scmp.lt.s32.totalorder %s20, 3
      %s250 = scalar_select %p249, %s20, 3
      %s251 = smul.addr %s248, 4
      %s252 = sadd.s32 %s250, %s251
      %s253 = smul.addr %s252, 4
      %s254 = scalar_lea.vmem %s3, %s253
      %p255 = scmp.lt.s32.totalorder %s19, 1
      %s256 = scalar_select %p255, %s19, 1
      %p257 = scmp.lt.s32.totalorder %s20, 3
      %s258 = scalar_select %p257, %s20, 3
      %s259 = smul.addr %s256, 4
      %s260 = sadd.s32 %s258, %s259
      %s261 = smul.addr %s260, 4
      %s262 = scalar_lea.vmem %s0, %s261
      %p263 = scmp.lt.s32.totalorder %s19, 1
      %s264 = scalar_select %p263, %s19, 1
      %p265 = scmp.lt.s32.totalorder %s20, 3
      %s266 = scalar_select %p265, %s20, 3
      %p267 = scmp.lt.s32.totalorder %s21, 0
      %s268 = scalar_select %p267, %s21, 0
      %s269 = sadd.s32 %s268, %s266
      %s270 = smul.addr %s264, 4
      %s271 = sadd.s32 %s269, %s270
      %s272 = smul.addr %s271, 4
      %s273 = scalar_lea.vmem %s1, %s272
      %p274 = scmp.lt.s32.totalorder %s19, 1
      %s275 = scalar_select %p274, %s19, 1
      %p276 = scmp.lt.s32.totalorder %s20, 3
      %s277 = scalar_select %p276, %s20, 3
      %p278 = scmp.lt.s32.totalorder %s21, 0
      %s279 = scalar_select %p278, %s21, 0
      %s280 = sadd.s32 %s279, %s277
      %s281 = smul.addr %s275, 4
      %s282 = sadd.s32 %s280, %s281
      %s283 = smul.addr %s282, 4
      %s284 = scalar_lea.vmem %s2, %s283
      %p285 = scmp.lt.s32.totalorder %s19, 1
      %s286 = scalar_select %p285, %s19, 1
      %p287 = scmp.lt.s32.totalorder %s20, 3
      %s288 = scalar_select %p287, %s20, 3
      %s289 = smul.addr %s286, 4
      %s290 = sadd.s32 %s288, %s289
      %s291 = smul.addr %s290, 4
      %s292 = scalar_lea.vmem %s3, %s291
      %p294 = scmp.eq.s32.totalorder %s21, 0
      // Predicated region
      $region33: #{seq2seq_forward.21} parent=31 // pred_check
        %p295 = pneg %p294
      $region34: #{seq2seq_forward.21} parent=31 // pred_check_branch
        %297 = sbr.rel (%p295) target = $region36
      $region35: #{seq2seq_forward.21} parent=31 // pred_region
        %vm298 = vcmask 7168
        %299 = vst.msk [vmem:[#allocation2] sm:$0xff] %vm298, -1e+30
        %300 = vst.msk [vmem:[#allocation3] sm:$0xff] %vm298, 0.0
        %vm301 = vcmask 64512
        %302 = vst.msk [vmem:[#allocation4] sm:$0xff] %vm301, 0.0
      $region36: #{seq2seq_forward.21} parent=31 // pred_fallthru
        _
      %v303 = vld [vmem:[%s262] sm:$0xf]
      %v304 = vld [vmem:[%s273] sm:$0xf]
      %v305 = vld [vmem:[%s284] sm:$0xf]
      %vm306 = vcmask 64512
      %v308 = vsel %vm306, %v303, 0
      %v311 = vsel %vm306, %v304, 0
      %313 = vmatprep.subr.bf16.mxu0 0
      %314 = vmatpush1.bf16.xpose.msra.mxu0 0
      %315 = vmatprep.subr.bf16.mxu0 0
      %316 = vmatpush1.bf16.xpose.msra.mxu0 0
      %317 = vmatprep.subr.bf16.mxu0 0
      %318 = vmatpush1.bf16.xpose.msra.mxu0 0
      %319 = vmatprep.subr.bf16.mxu0 0
      %320 = vmatpush1.bf16.xpose.msra.mxu0 0
      %321 = vmatprep.subr.bf16.mxu0 0
      %322 = vmatpush1.bf16.xpose.msra.mxu0 0
      %323 = vmatprep.subr.bf16.mxu0 0
      %324 = vmatpush1.bf16.xpose.msra.mxu0 0
      %325 = vmatprep.subr.bf16.mxu0 0
      %326 = vmatpush1.bf16.xpose.msra.mxu0 0
      %327 = vmatprep.subr.bf16.mxu0 0
      %328 = vmatpush1.bf16.xpose.msra.mxu0 %v311
      %329 = vmatprep.subr.bf16.mxu0 0
      %330 = vmatpush2.bf16.xpose.msra.mxu0 0
      %331 = vmatprep.subr.bf16.mxu0 0
      %332 = vmatpush2.bf16.xpose.msra.mxu0 0
      %333 = vmatprep.subr.bf16.mxu0 0
      %334 = vmatpush2.bf16.xpose.msra.mxu0 0
      %335 = vmatprep.subr.bf16.mxu0 0
      %336 = vmatpush2.bf16.xpose.msra.mxu0 0
      %337 = vmatprep.subr.bf16.mxu0 0
      %338 = vmatpush2.bf16.xpose.msra.mxu0 0
      %339 = vmatprep.subr.bf16.mxu0 0
      %340 = vmatpush2.bf16.xpose.msra.mxu0 0
      %341 = vmatprep.subr.bf16.mxu0 0
      %342 = vmatpush2.bf16.xpose.msra.mxu0 0
      %343 = vmatprep.subr.bf16.mxu0 0
      %344 = vmatpush2.bf16.xpose.msra.mxu0 0
      %345 = vmatprep.mubr.bf16.mxu0 0
      %346 = vmatmul.mubr.bf16.gmra.mxu0 %v308
      %v347 = vpop.f32.mrf.mxu0
      %v348 = vadd.f32 0.0, %v347
      %v349 = vpop.f32.mrf.mxu0
      %v350 = vpop.f32.mrf.mxu0
      %v351 = vpop.f32.mrf.mxu0
      %352 = vdwg.mxu0
      %v353 = vmul.f32 %v348, 0.35355338
      %v354 = vlaneseq
      %v355 = vshrl.u32 %v354, 7
      %s356 = smul.u32 %s21, 8
      %v357 = vlaneseq
      %v358 = vand.u32 %v357, 127
      %v359 = vstv %s356
      %v360 = vadd.s32 %v359, %v358
      %vm361 = vcmp.ge.s32.totalorder %v355, %v360
      %v362 = vsel %vm361, 0.0, -10000.0
      %v363 = vadd.f32 %v353, %v362
      %v364 = vld [vmem:[#allocation2] sm:$0xff]
      %v365 = vsel %vm306, %v363, -inf
      %366 = vmax.xlane.f32.xlu0 %v365
      %v367 = vpop.xlane.xlu0 %366
      %v368 = vmax.f32 %v364, %v367
      %v369 = vsub.f32 %v364, %v368
      %v370 = vmul.f32 %v369, 1.442695
      %v371 = vpow.pop %v370
      %373 = vset.pattern.permute.xlu0 0
      %374 = vperm.xlu0 %373, %v368
      %v375 = vpop.permute.xlu0 %374
      %v377 = vsub.f32 %v363, %v375
      %v378 = vmul.f32 %v377, 1.442695
      %v379 = vpow.pop %v378
      %v380 = vld [vmem:[#allocation3] sm:$0xff]
      %v381 = vmul.f32 %v380, %v371
      %v382 = vsel %vm306, %v379, 0.0
      %383 = vadd.xlane.f32.xlu0 %v382
      %v384 = vpop.xlane.xlu0 %383
      %v385 = vadd.f32 %v381, %v384
      %vm386 = vcmask 7168
      %387 = vst.msk [vmem:[#allocation3] sm:$0xff] %vm386, %v385
      %v388 = vld [vmem:[#allocation4] sm:$0xff]
      %390 = vset.pattern.permute.xlu0 0
      %391 = vperm.xlu0 %390, %v371
      %v392 = vpop.permute.xlu0 %391
      %v394 = vmul.f32 %v388, %v392
      %v395 = vpack.c.bf16 %v379, %v379
      %v397 = vsel %vm306, %v395, 0
      %vm399 = vcmask 1043456
      %v401 = vsel %vm399, %v305, 0
      %403 = vmatprep.subr.bf16.mxu0 0
      %404 = vmatpush1.bf16.msra.mxu0 0
      %405 = vmatprep.subr.bf16.mxu0 0
      %406 = vmatpush1.bf16.msra.mxu0 0
      %407 = vmatprep.subr.bf16.mxu0 0
      %408 = vmatpush1.bf16.msra.mxu0 0
      %409 = vmatprep.subr.bf16.mxu0 0
      %410 = vmatpush1.bf16.msra.mxu0 0
      %411 = vmatprep.subr.bf16.mxu0 0
      %412 = vmatpush1.bf16.msra.mxu0 0
      %413 = vmatprep.subr.bf16.mxu0 0
      %414 = vmatpush1.bf16.msra.mxu0 0
      %415 = vmatprep.subr.bf16.mxu0 0
      %416 = vmatpush1.bf16.msra.mxu0 0
      %417 = vmatprep.subr.bf16.mxu0 0
      %418 = vmatpush1.bf16.msra.mxu0 %v401
      %419 = vmatprep.subr.bf16.mxu0 0
      %420 = vmatpush2.bf16.msra.mxu0 0
      %421 = vmatprep.subr.bf16.mxu0 0
      %422 = vmatpush2.bf16.msra.mxu0 0
      %423 = vmatprep.subr.bf16.mxu0 0
      %424 = vmatpush2.bf16.msra.mxu0 0
      %425 = vmatprep.subr.bf16.mxu0 0
      %426 = vmatpush2.bf16.msra.mxu0 0
      %427 = vmatprep.subr.bf16.mxu0 0
      %428 = vmatpush2.bf16.msra.mxu0 0
      %429 = vmatprep.subr.bf16.mxu0 0
      %430 = vmatpush2.bf16.msra.mxu0 0
      %431 = vmatprep.subr.bf16.mxu0 0
      %432 = vmatpush2.bf16.msra.mxu0 0
      %433 = vmatprep.subr.bf16.mxu0 0
      %434 = vmatpush2.bf16.msra.mxu0 0
      %435 = vmatprep.mubr.bf16.mxu0 0
      %436 = vmatmul.mubr.bf16.gmra.mxu0 %v397
      %v437 = vpop.f32.mrf.mxu0
      %v438 = vadd.f32 0.0, %v437
      %v439 = vpop.f32.mrf.mxu0
      %v440 = vpop.f32.mrf.mxu0
      %v441 = vpop.f32.mrf.mxu0
      %442 = vdwg.mxu0
      %v443 = vadd.f32 %v394, %v438
      %444 = vst.msk [vmem:[#allocation4] sm:$0xff] %vm306, %v443
      %445 = vst.msk [vmem:[#allocation2] sm:$0xff] %vm386, %v368
      // Predicated region
      $region37: #{seq2seq_forward.21} parent=31 // pred_check
        %p446 = pneg %p294
      $region38: #{seq2seq_forward.21} parent=31 // pred_check_branch
        %448 = sbr.rel (%p446) target = $region40
      $region39: #{seq2seq_forward.21} parent=31 // pred_region
        %v449 = vld [vmem:[#allocation4] sm:$0xff]
        %v450 = vld [vmem:[#allocation3] sm:$0xff]
        %v451 = vrcp.pop %v450
        %453 = vset.pattern.permute.xlu0 0
        %454 = vperm.xlu0 %453, %v451
        %v455 = vpop.permute.xlu0 %454
        %v457 = vmul.f32 %v449, %v455
        %v458 = vpack.c.bf16 %v457, %v457
        %vm459 = vcmask 60416
        %460 = vst.msk [vmem:[%s292] sm:$0xf] %vm459, %v458
      $region40: #{seq2seq_forward.21} parent=31 // pred_fallthru
        _
      %p461 = scmp.lt.s32.totalorder %s19, 1
      %s462 = scalar_select %p461, %s19, 1
      %p463 = scmp.lt.s32.totalorder %s20, 3
      %s464 = scalar_select %p463, %s20, 3
      %s465 = smul.addr %s462, 4
      %s466 = sadd.s32 %s464, %s465
      %s467 = smul.addr %s466, 4
      %s468 = scalar_lea.vmem %s3, %s467
      // Predicated region
      $region41: #{seq2seq_forward.21} parent=31 // pred_check
        %p469 = pneg %p141
      $region42: #{seq2seq_forward.21} parent=31 // pred_check_branch
        %471 = sbr.rel (%p469) target = $region44
      $region43: #{seq2seq_forward.21} parent=31 // pred_region
        _
      $region44: #{seq2seq_forward.21} parent=31 // pred_fallthru
        _
    $region32: #{seq2seq_forward.21} parent=5 // pred_fallthru
      _
    %p472 = scmp.le.s32.totalorder 2, %s9
    // Predicated region
    $region45: #{seq2seq_forward.21} parent=5 // pred_check
      %p473 = pneg %p472
    $region46: #{seq2seq_forward.21} parent=5 // pred_check_branch
      %475 = sbr.rel (%p473) target = $region48
    $region47: #{seq2seq_forward.21} parent=5 // pred_region
      %s476 = ssub.s32 %s9, 2
      // Predicated region
      $region49: #{seq2seq_forward.21} parent=47 // pred_check
        %p477 = pneg %p147
      $region50: #{seq2seq_forward.21} parent=47 // pred_check_branch
        %479 = sbr.rel (%p477) target = $region52
      $region51: #{seq2seq_forward.21} parent=47 // pred_region
        %p480 = scmp.lt.s32.totalorder %s22, 1
        %s481 = scalar_select %p480, %s22, 1
        %p482 = scmp.lt.s32.totalorder %s23, 3
        %s483 = scalar_select %p482, %s23, 3
        %s484 = smul.addr %s481, 4
        %s485 = sadd.s32 %s483, %s484
        %s486 = smul.addr %s485, 4
        %s487 = scalar_lea.vmem %s3, %s486
      $region52: #{seq2seq_forward.21} parent=47 // pred_fallthru
        _
    $region48: #{seq2seq_forward.21} parent=5 // pred_fallthru
      _
  $region6: #{seq2seq_forward.21} parent=0 // loop_footer
    %s13 = sadd.s32 1, %s9
  $region7: #{seq2seq_forward.21} parent=0 // loop_footer_branch
    %8 = sbr.rel target = $region3
  $region8: #{seq2seq_forward.21} parent=0 // loop_exit
    _

// kernel: seq2seq_forward.22
$region0: #{seq2seq_forward.22}
  #allocation0 [shape = 'u32[]', space=smem, size = 0x4, offset = 0x4, fixed_abs, tag = 'smem constant byte address 0x4 - core index']
  #allocation1 [shape = 'u32[144,128]{1,0:T(1,128)}', space=vmem, size = 0x12000, scoped, tag = 'internal scratch']
  #allocation2 [shape = 'f32[16,32]{1,0:T(8,128)}', space=vmem, size = 0x2000, scoped, tag = 'scratch operand']
  %s0 = inlined_call_operand.vmem [shape: bf16[16,32], index: 0, kind: input, shape index: {}]
  %s1 = inlined_call_operand.vmem [shape: bf16[32,32], index: 1, kind: input, shape index: {}]
  %s2 = inlined_call_operand.vmem [shape: f32[1,32], index: 2, kind: input, shape index: {}]
  %s3 = inlined_call_operand.vmem [shape: bf16[16,32], index: 3, kind: input, shape index: {}]
  %s4 = inlined_call_operand.vmem [shape: f32[1,32], index: 4, kind: input, shape index: {}]
  %s5 = inlined_call_operand.vmem [shape: f32[1,32], index: 5, kind: input, shape index: {}]
  %s6 = inlined_call_operand.vmem [shape: bf16[16,32], index: 6, kind: output, shape index: {}]
  %s7 = sld [smem:[#allocation0]]
  $region42: #{seq2seq_forward.22} parent=0
    _
  %s9 = ssub.s32 1, %s7
  %s10 = scalar_select 0, %s9, %s7
  // Predicated region
  $region2: #{seq2seq_forward.22} parent=0 // pred_check
    _
  $region3: #{seq2seq_forward.22} parent=0 // pred_check_branch
    %12 = sbr.rel (0) target = $region5
  $region4: #{seq2seq_forward.22} parent=0 // pred_region
    _
  $region5: #{seq2seq_forward.22} parent=0 // pred_fallthru
    _
  // Predicated region
  $region6: #{seq2seq_forward.22} parent=0 // pred_check
    _
  $region7: #{seq2seq_forward.22} parent=0 // pred_check_branch
    %14 = sbr.rel (0) target = $region9
  $region8: #{seq2seq_forward.22} parent=0 // pred_region
    _
  $region9: #{seq2seq_forward.22} parent=0 // pred_fallthru
    _
  // Predicated region
  $region10: #{seq2seq_forward.22} parent=0 // pred_check
    _
  $region11: #{seq2seq_forward.22} parent=0 // pred_check_branch
    %16 = sbr.rel (0) target = $region13
  $region12: #{seq2seq_forward.22} parent=0 // pred_region
    _
  $region13: #{seq2seq_forward.22} parent=0 // pred_fallthru
    _
  // Predicated region
  $region14: #{seq2seq_forward.22} parent=0 // pred_check
    _
  $region15: #{seq2seq_forward.22} parent=0 // pred_check_branch
    %18 = sbr.rel (0) target = $region17
  $region16: #{seq2seq_forward.22} parent=0 // pred_region
    _
  $region17: #{seq2seq_forward.22} parent=0 // pred_fallthru
    _
  // Predicated region
  $region18: #{seq2seq_forward.22} parent=0 // pred_check
    _
  $region19: #{seq2seq_forward.22} parent=0 // pred_check_branch
    %20 = sbr.rel (0) target = $region21
  $region20: #{seq2seq_forward.22} parent=0 // pred_region
    _
  $region21: #{seq2seq_forward.22} parent=0 // pred_fallthru
    _
  // Predicated region
  $region22: #{seq2seq_forward.22} parent=0 // pred_check
    _
  $region23: #{seq2seq_forward.22} parent=0 // pred_check_branch
    %22 = sbr.rel (0) target = $region25
  $region24: #{seq2seq_forward.22} parent=0 // pred_region
    _
  $region25: #{seq2seq_forward.22} parent=0 // pred_fallthru
    _
  %p24 = scmp.eq.s32.totalorder 0, 0
  // Predicated region
  $region26: #{seq2seq_forward.22} parent=0 // pred_check
    %p25 = pneg %p24
  $region27: #{seq2seq_forward.22} parent=0 // pred_check_branch
    %27 = sbr.rel (%p25) target = $region29
  $region28: #{seq2seq_forward.22} parent=0 // pred_region
    %vm28 = vcmask 261120
    %29 = vst.msk [vmem:[#allocation2] sm:$0xff] %vm28, 0.0
    %30 = vst.msk [vmem:[#allocation2 + $0x8] sm:$0xff] %vm28, 0.0
  $region29: #{seq2seq_forward.22} parent=0 // pred_fallthru
    _
  %v31 = vld [vmem:[#allocation2] sm:$0xff]
  %v32 = vld [vmem:[#allocation2 + $0x8] sm:$0xff]
  %v33 = vld [vmem:[%s0] sm:$0xf]
  %v34 = vld [vmem:[%s0 + $0x4] sm:$0xf]
  %v35 = vld [vmem:[%s1] sm:$0xf]
  %v36 = vld [vmem:[%s1 + $0x4] sm:$0xf]
  %v37 = vld [vmem:[%s1 + $0x8] sm:$0xf]
  %v38 = vld [vmem:[%s1 + $0xc] sm:$0xf]
  %v41 = vunpack.c.l.b16 %v33
  %v42 = vunpack.c.l.b16 %v34
  %v43 = vpack.c.b16 %v42, %v41
  %v48 = vunpack.c.l.b16 %v35
  %v49 = vunpack.c.l.b16 %v36
  %v50 = vunpack.c.l.b16 %v37
  %v51 = vunpack.c.l.b16 %v38
  %v52 = vpack.c.b16 %v49, %v48
  %v53 = vpack.c.b16 %v51, %v50
  %vm56 = vcmask 261120
  %v58 = vsel %vm56, %v43, 0
  %60 = vmatprep.subr.bf16.mxu0 0
  %61 = vmatpush1.bf16.msra.mxu0 0
  %62 = vmatprep.subr.bf16.mxu0 0
  %63 = vmatpush1.bf16.msra.mxu0 0
  %64 = vmatprep.subr.bf16.mxu0 0
  %65 = vmatpush1.bf16.msra.mxu0 0
  %66 = vmatprep.subr.bf16.mxu0 0
  %67 = vmatpush1.bf16.msra.mxu0 0
  %68 = vmatprep.subr.bf16.mxu0 0
  %69 = vmatpush1.bf16.msra.mxu0 0
  %70 = vmatprep.subr.bf16.mxu0 0
  %71 = vmatpush1.bf16.msra.mxu0 0
  %72 = vmatprep.subr.bf16.mxu0 0
  %73 = vmatpush1.bf16.msra.mxu0 %v53
  %74 = vmatprep.subr.bf16.mxu0 0
  %75 = vmatpush1.bf16.msra.mxu0 %v52
  %76 = vmatprep.subr.bf16.mxu0 0
  %77 = vmatpush2.bf16.msra.mxu0 0
  %78 = vmatprep.subr.bf16.mxu0 0
  %79 = vmatpush2.bf16.msra.mxu0 0
  %80 = vmatprep.subr.bf16.mxu0 0
  %81 = vmatpush2.bf16.msra.mxu0 0
  %82 = vmatprep.subr.bf16.mxu0 0
  %83 = vmatpush2.bf16.msra.mxu0 0
  %84 = vmatprep.subr.bf16.mxu0 0
  %85 = vmatpush2.bf16.msra.mxu0 0
  %86 = vmatprep.subr.bf16.mxu0 0
  %87 = vmatpush2.bf16.msra.mxu0 0
  %88 = vmatprep.subr.bf16.mxu0 0
  %89 = vmatpush2.bf16.msra.mxu0 0
  %90 = vmatprep.subr.bf16.mxu0 0
  %91 = vmatpush2.bf16.msra.mxu0 0
  %92 = vmatprep.mubr.bf16.mxu0 0
  %93 = vmatmul.mubr.bf16.gmra.mxu0 %v58
  %v94 = vpop.f32.mrf.mxu0
  %v95 = vadd.f32 0.0, %v94
  %v96 = vpop.f32.mrf.mxu0
  %v97 = vpop.f32.mrf.mxu0
  %v98 = vadd.f32 0.0, %v97
  %v99 = vpop.f32.mrf.mxu0
  %100 = vdwg.mxu0
  %v101 = vadd.f32 %v31, %v95
  %v102 = vadd.f32 %v32, %v98
  %103 = vst.msk [vmem:[#allocation2] sm:$0xff] %vm56, %v101
  %104 = vst.msk [vmem:[#allocation2 + $0x8] sm:$0xff] %vm56, %v102
  // Predicated region
  $region30: #{seq2seq_forward.22} parent=0 // pred_check
    %p105 = pneg %p24
  $region31: #{seq2seq_forward.22} parent=0 // pred_check_branch
    %107 = sbr.rel (%p105) target = $region33
  $region32: #{seq2seq_forward.22} parent=0 // pred_region
    %v108 = vld [vmem:[#allocation2] sm:$0xff]
    %v109 = vld [vmem:[#allocation2 + $0x8] sm:$0xff]
    %v110 = vld [vmem:[%s2] sm:$0x1]
    %v112 = vlaneseq
    %v113 = vshrl.u32 %v112, 7
    %v114 = vsub.s32 0, %v113
    %v115 = vrot.slane %v110, %v114
    %v117 = vadd.f32 %v108, %v115
    %v118 = vadd.f32 %v109, %v115
    %v119 = vld [vmem:[%s3] sm:$0xf]
    %v120 = vld [vmem:[%s3 + $0x4] sm:$0xf]
    %v121 = vunpack.c.l.bf16 %v119
    %v122 = vunpack.c.l.bf16 %v120
    %v123 = vadd.f32 %v117, %v121
    %v124 = vadd.f32 %v118, %v122
    %v125 = vsel %vm56, %v123, 0.0
    %126 = vadd.xlane.f32.xlu0 %v125
    %v127 = vpop.xlane.xlu0 %126
    %v128 = vsel %vm56, %v124, 0.0
    %129 = vadd.xlane.f32.xlu0 %v128
    %v130 = vpop.xlane.xlu0 %129
    %v131 = vrcp.pop 32.0
    %v132 = vmul.f32 %v127, %v131
    %v133 = vmul.f32 %v130, %v131
    %v134 = vsub.f32 %v123, %v132
    %v135 = vsub.f32 %v124, %v133
    %v136 = vmul.f32 %v134, %v134
    %v137 = vmul.f32 %v135, %v135
    %v138 = vsel %vm56, %v136, 0.0
    %139 = vadd.xlane.f32.xlu0 %v138
    %v140 = vpop.xlane.xlu0 %139
    %v141 = vsel %vm56, %v137, 0.0
    %142 = vadd.xlane.f32.xlu0 %v141
    %v143 = vpop.xlane.xlu0 %142
    %v144 = vmul.f32 %v140, %v131
    %v145 = vmul.f32 %v143, %v131
    %v146 = vadd.f32 %v144, 1e-05
    %v147 = vadd.f32 %v145, 1e-05
    %v148 = vrsqrt.pop %v146
    %v149 = vrsqrt.pop %v147
    %v150 = vmul.f32 %v134, %v148
    %v151 = vmul.f32 %v135, %v149
    %v152 = vld [vmem:[%s4] sm:$0x1]
    %v154 = vlaneseq
    %v155 = vshrl.u32 %v154, 7
    %v156 = vsub.s32 0, %v155
    %v157 = vrot.slane %v152, %v156
    %v159 = vmul.f32 %v150, %v157
    %v160 = vmul.f32 %v151, %v157
    %v161 = vld [vmem:[%s5] sm:$0x1]
    %v163 = vlaneseq
    %v164 = vshrl.u32 %v163, 7
    %v165 = vsub.s32 0, %v164
    %v166 = vrot.slane %v161, %v165
    %v168 = vadd.f32 %v159, %v166
    %v169 = vadd.f32 %v160, %v166
    %v170 = vpack.c.bf16 %v169, %v168
    %v172 = vunpack.c.l.b16 %v170
    %v173 = vunpack.c.h.b16 %v170
    %v174 = vpack.c.b16 %v172, %v172
    %v175 = vpack.c.b16 %v173, %v173
    %vm178 = vcmask 257024
    %179 = vst.msk [vmem:[%s6] sm:$0xf] %vm178, %v174
    %180 = vst.msk [vmem:[%s6 + $0x4] sm:$0xf] %vm178, %v175
  $region33: #{seq2seq_forward.22} parent=0 // pred_fallthru
    _
  // Predicated region
  $region34: #{seq2seq_forward.22} parent=0 // pred_check
    _
  $region35: #{seq2seq_forward.22} parent=0 // pred_check_branch
    %182 = sbr.rel (0) target = $region37
  $region36: #{seq2seq_forward.22} parent=0 // pred_region
    _
  $region37: #{seq2seq_forward.22} parent=0 // pred_fallthru
    _
  // Predicated region
  $region38: #{seq2seq_forward.22} parent=0 // pred_check
    _
  $region39: #{seq2seq_forward.22} parent=0 // pred_check_branch
    %184 = sbr.rel (0) target = $region41
  $region40: #{seq2seq_forward.22} parent=0 // pred_region
    _
  $region41: #{seq2seq_forward.22} parent=0 // pred_fallthru
    _

// kernel: seq2seq_forward.23
$region0: #{seq2seq_forward.23}
  #allocation0 [shape = 'u32[]', space=smem, size = 0x4, offset = 0x4, fixed_abs, tag = 'smem constant byte address 0x4 - core index']
  #allocation1 [shape = 'u32[144,128]{1,0:T(1,128)}', space=vmem, size = 0x12000, scoped, tag = 'internal scratch']
  #allocation2 [shape = 'f32[16,32]{1,0:T(8,128)}', space=vmem, size = 0x2000, scoped, tag = 'scratch operand']
  %s0 = inlined_call_operand.vmem [shape: bf16[16,32], index: 0, kind: input, shape index: {}]
  %s1 = inlined_call_operand.vmem [shape: bf16[32,32], index: 1, kind: input, shape index: {}]
  %s2 = inlined_call_operand.vmem [shape: f32[1,32], index: 2, kind: input, shape index: {}]
  %s3 = inlined_call_operand.vmem [shape: bf16[16,32], index: 3, kind: output, shape index: {}]
  %s4 = sld [smem:[#allocation0]]
  $region30: #{seq2seq_forward.23} parent=0
    _
  %s6 = ssub.s32 1, %s4
  %s7 = scalar_select 0, %s6, %s4
  // Predicated region
  $region2: #{seq2seq_forward.23} parent=0 // pred_check
    _
  $region3: #{seq2seq_forward.23} parent=0 // pred_check_branch
    %9 = sbr.rel (0) target = $region5
  $region4: #{seq2seq_forward.23} parent=0 // pred_region
    _
  $region5: #{seq2seq_forward.23} parent=0 // pred_fallthru
    _
  // Predicated region
  $region6: #{seq2seq_forward.23} parent=0 // pred_check
    _
  $region7: #{seq2seq_forward.23} parent=0 // pred_check_branch
    %11 = sbr.rel (0) target = $region9
  $region8: #{seq2seq_forward.23} parent=0 // pred_region
    _
  $region9: #{seq2seq_forward.23} parent=0 // pred_fallthru
    _
  // Predicated region
  $region10: #{seq2seq_forward.23} parent=0 // pred_check
    _
  $region11: #{seq2seq_forward.23} parent=0 // pred_check_branch
    %13 = sbr.rel (0) target = $region13
  $region12: #{seq2seq_forward.23} parent=0 // pred_region
    _
  $region13: #{seq2seq_forward.23} parent=0 // pred_fallthru
    _
  %p15 = scmp.eq.s32.totalorder 0, 0
  // Predicated region
  $region14: #{seq2seq_forward.23} parent=0 // pred_check
    %p16 = pneg %p15
  $region15: #{seq2seq_forward.23} parent=0 // pred_check_branch
    %18 = sbr.rel (%p16) target = $region17
  $region16: #{seq2seq_forward.23} parent=0 // pred_region
    %vm19 = vcmask 261120
    %20 = vst.msk [vmem:[#allocation2] sm:$0xff] %vm19, 0.0
    %21 = vst.msk [vmem:[#allocation2 + $0x8] sm:$0xff] %vm19, 0.0
  $region17: #{seq2seq_forward.23} parent=0 // pred_fallthru
    _
  %v22 = vld [vmem:[#allocation2] sm:$0xff]
  %v23 = vld [vmem:[#allocation2 + $0x8] sm:$0xff]
  %v24 = vld [vmem:[%s0] sm:$0xf]
  %v25 = vld [vmem:[%s0 + $0x4] sm:$0xf]
  %v26 = vld [vmem:[%s1] sm:$0xf]
  %v27 = vld [vmem:[%s1 + $0x4] sm:$0xf]
  %v28 = vld [vmem:[%s1 + $0x8] sm:$0xf]
  %v29 = vld [vmem:[%s1 + $0xc] sm:$0xf]
  %v32 = vunpack.c.l.b16 %v24
  %v33 = vunpack.c.l.b16 %v25
  %v34 = vpack.c.b16 %v33, %v32
  %v39 = vunpack.c.l.b16 %v26
  %v40 = vunpack.c.l.b16 %v27
  %v41 = vunpack.c.l.b16 %v28
  %v42 = vunpack.c.l.b16 %v29
  %v43 = vpack.c.b16 %v40, %v39
  %v44 = vpack.c.b16 %v42, %v41
  %vm47 = vcmask 261120
  %v49 = vsel %vm47, %v34, 0
  %51 = vmatprep.subr.bf16.mxu0 0
  %52 = vmatpush1.bf16.msra.mxu0 0
  %53 = vmatprep.subr.bf16.mxu0 0
  %54 = vmatpush1.bf16.msra.mxu0 0
  %55 = vmatprep.subr.bf16.mxu0 0
  %56 = vmatpush1.bf16.msra.mxu0 0
  %57 = vmatprep.subr.bf16.mxu0 0
  %58 = vmatpush1.bf16.msra.mxu0 0
  %59 = vmatprep.subr.bf16.mxu0 0
  %60 = vmatpush1.bf16.msra.mxu0 0
  %61 = vmatprep.subr.bf16.mxu0 0
  %62 = vmatpush1.bf16.msra.mxu0 0
  %63 = vmatprep.subr.bf16.mxu0 0
  %64 = vmatpush1.bf16.msra.mxu0 %v44
  %65 = vmatprep.subr.bf16.mxu0 0
  %66 = vmatpush1.bf16.msra.mxu0 %v43
  %67 = vmatprep.subr.bf16.mxu0 0
  %68 = vmatpush2.bf16.msra.mxu0 0
  %69 = vmatprep.subr.bf16.mxu0 0
  %70 = vmatpush2.bf16.msra.mxu0 0
  %71 = vmatprep.subr.bf16.mxu0 0
  %72 = vmatpush2.bf16.msra.mxu0 0
  %73 = vmatprep.subr.bf16.mxu0 0
  %74 = vmatpush2.bf16.msra.mxu0 0
  %75 = vmatprep.subr.bf16.mxu0 0
  %76 = vmatpush2.bf16.msra.mxu0 0
  %77 = vmatprep.subr.bf16.mxu0 0
  %78 = vmatpush2.bf16.msra.mxu0 0
  %79 = vmatprep.subr.bf16.mxu0 0
  %80 = vmatpush2.bf16.msra.mxu0 0
  %81 = vmatprep.subr.bf16.mxu0 0
  %82 = vmatpush2.bf16.msra.mxu0 0
  %83 = vmatprep.mubr.bf16.mxu0 0
  %84 = vmatmul.mubr.bf16.gmra.mxu0 %v49
  %v85 = vpop.f32.mrf.mxu0
  %v86 = vadd.f32 0.0, %v85
  %v87 = vpop.f32.mrf.mxu0
  %v88 = vpop.f32.mrf.mxu0
  %v89 = vadd.f32 0.0, %v88
  %v90 = vpop.f32.mrf.mxu0
  %91 = vdwg.mxu0
  %v92 = vadd.f32 %v22, %v86
  %v93 = vadd.f32 %v23, %v89
  %94 = vst.msk [vmem:[#allocation2] sm:$0xff] %vm47, %v92
  %95 = vst.msk [vmem:[#allocation2 + $0x8] sm:$0xff] %vm47, %v93
  // Predicated region
  $region18: #{seq2seq_forward.23} parent=0 // pred_check
    %p96 = pneg %p15
  $region19: #{seq2seq_forward.23} parent=0 // pred_check_branch
    %98 = sbr.rel (%p96) target = $region21
  $region20: #{seq2seq_forward.23} parent=0 // pred_region
    %v99 = vld [vmem:[#allocation2] sm:$0xff]
    %v100 = vld [vmem:[#allocation2 + $0x8] sm:$0xff]
    %v101 = vld [vmem:[%s2] sm:$0x1]
    %v103 = vlaneseq
    %v104 = vshrl.u32 %v103, 7
    %v105 = vsub.s32 0, %v104
    %v106 = vrot.slane %v101, %v105
    %v108 = vadd.f32 %v99, %v106
    %v109 = vadd.f32 %v100, %v106
    %v110 = vpack.c.bf16 %v109, %v108
    %v112 = vunpack.c.l.b16 %v110
    %v113 = vunpack.c.h.b16 %v110
    %v114 = vpack.c.b16 %v112, %v112
    %v115 = vpack.c.b16 %v113, %v113
    %vm118 = vcmask 257024
    %119 = vst.msk [vmem:[%s3] sm:$0xf] %vm118, %v114
    %120 = vst.msk [vmem:[%s3 + $0x4] sm:$0xf] %vm118, %v115
  $region21: #{seq2seq_forward.23} parent=0 // pred_fallthru
    _
  // Predicated region
  $region22: #{seq2seq_forward.23} parent=0 // pred_check
    _
  $region23: #{seq2seq_forward.23} parent=0 // pred_check_branch
    %122 = sbr.rel (0) target = $region25
  $region24: #{seq2seq_forward.23} parent=0 // pred_region
    _
  $region25: #{seq2seq_forward.23} parent=0 // pred_fallthru
    _
  // Predicated region
  $region26: #{seq2seq_forward.23} parent=0 // pred_check
    _
  $region27: #{seq2seq_forward.23} parent=0 // pred_check_branch
    %124 = sbr.rel (0) target = $region29
  $region28: #{seq2seq_forward.23} parent=0 // pred_region
    _
  $region29: #{seq2seq_forward.23} parent=0 // pred_fallthru
    _

// kernel: seq2seq_forward.24
$region0: #{seq2seq_forward.24}
  #allocation0 [shape = 'u32[]', space=smem, size = 0x4, offset = 0x4, fixed_abs, tag = 'smem constant byte address 0x4 - core index']
  #allocation1 [shape = 'u32[144,128]{1,0:T(1,128)}', space=vmem, size = 0x12000, scoped, tag = 'internal scratch']
  #allocation2 [shape = 'f32[32,64]{1,0:T(8,128)}', space=vmem, size = 0x4000, scoped, tag = 'scratch operand']
  %s0 = inlined_call_operand.vmem [shape: bf16[32,32], index: 0, kind: input, shape index: {}]
  %s1 = inlined_call_operand.vmem [shape: bf16[32,64], index: 1, kind: input, shape index: {}]
  %s2 = inlined_call_operand.vmem [shape: f32[1,64], index: 2, kind: input, shape index: {}]
  %s3 = inlined_call_operand.vmem [shape: bf16[32,64], index: 3, kind: output, shape index: {}]
  %s4 = sld [smem:[#allocation0]]
  $region30: #{seq2seq_forward.24} parent=0
    _
  %s6 = ssub.s32 1, %s4
  %s7 = scalar_select 0, %s6, %s4
  // Predicated region
  $region2: #{seq2seq_forward.24} parent=0 // pred_check
    _
  $region3: #{seq2seq_forward.24} parent=0 // pred_check_branch
    %9 = sbr.rel (0) target = $region5
  $region4: #{seq2seq_forward.24} parent=0 // pred_region
    _
  $region5: #{seq2seq_forward.24} parent=0 // pred_fallthru
    _
  // Predicated region
  $region6: #{seq2seq_forward.24} parent=0 // pred_check
    _
  $region7: #{seq2seq_forward.24} parent=0 // pred_check_branch
    %11 = sbr.rel (0) target = $region9
  $region8: #{seq2seq_forward.24} parent=0 // pred_region
    _
  $region9: #{seq2seq_forward.24} parent=0 // pred_fallthru
    _
  // Predicated region
  $region10: #{seq2seq_forward.24} parent=0 // pred_check
    _
  $region11: #{seq2seq_forward.24} parent=0 // pred_check_branch
    %13 = sbr.rel (0) target = $region13
  $region12: #{seq2seq_forward.24} parent=0 // pred_region
    _
  $region13: #{seq2seq_forward.24} parent=0 // pred_fallthru
    _
  %p15 = scmp.eq.s32.totalorder 0, 0
  // Predicated region
  $region14: #{seq2seq_forward.24} parent=0 // pred_check
    %p16 = pneg %p15
  $region15: #{seq2seq_forward.24} parent=0 // pred_check_branch
    %18 = sbr.rel (%p16) target = $region17
  $region16: #{seq2seq_forward.24} parent=0 // pred_region
    %vm19 = vcmask 523264
    %20 = vst.msk [vmem:[#allocation2] sm:$0xff] %vm19, 0.0
    %21 = vst.msk [vmem:[#allocation2 + $0x8] sm:$0xff] %vm19, 0.0
    %22 = vst.msk [vmem:[#allocation2 + $0x10] sm:$0xff] %vm19, 0.0
    %23 = vst.msk [vmem:[#allocation2 + $0x18] sm:$0xff] %vm19, 0.0
  $region17: #{seq2seq_forward.24} parent=0 // pred_fallthru
    _
  %v24 = vld [vmem:[#allocation2] sm:$0xff]
  %v25 = vld [vmem:[#allocation2 + $0x8] sm:$0xff]
  %v26 = vld [vmem:[#allocation2 + $0x10] sm:$0xff]
  %v27 = vld [vmem:[#allocation2 + $0x18] sm:$0xff]
  %v28 = vld [vmem:[%s0] sm:$0xf]
  %v29 = vld [vmem:[%s0 + $0x4] sm:$0xf]
  %v30 = vld [vmem:[%s0 + $0x8] sm:$0xf]
  %v31 = vld [vmem:[%s0 + $0xc] sm:$0xf]
  %v32 = vld [vmem:[%s1] sm:$0xf]
  %v33 = vld [vmem:[%s1 + $0x4] sm:$0xf]
  %v34 = vld [vmem:[%s1 + $0x8] sm:$0xf]
  %v35 = vld [vmem:[%s1 + $0xc] sm:$0xf]
  %v40 = vunpack.c.l.b16 %v28
  %v41 = vunpack.c.l.b16 %v29
  %v42 = vunpack.c.l.b16 %v30
  %v43 = vunpack.c.l.b16 %v31
  %v44 = vpack.c.b16 %v41, %v40
  %v45 = vpack.c.b16 %v43, %v42
  %v50 = vunpack.c.l.b16 %v32
  %v51 = vunpack.c.l.b16 %v33
  %v52 = vunpack.c.l.b16 %v34
  %v53 = vunpack.c.l.b16 %v35
  %v54 = vpack.c.b16 %v51, %v50
  %v55 = vpack.c.b16 %v53, %v52
  %vm58 = vcmask 261120
  %v60 = vsel %vm58, %v44, 0
  %v63 = vsel %vm58, %v45, 0
  %65 = vmatprep.subr.bf16.mxu0 0
  %66 = vmatpush1.bf16.msra.mxu0 0
  %67 = vmatprep.subr.bf16.mxu0 0
  %68 = vmatpush1.bf16.msra.mxu0 0
  %69 = vmatprep.subr.bf16.mxu0 0
  %70 = vmatpush1.bf16.msra.mxu0 0
  %71 = vmatprep.subr.bf16.mxu0 0
  %72 = vmatpush1.bf16.msra.mxu0 0
  %73 = vmatprep.subr.bf16.mxu0 0
  %74 = vmatpush1.bf16.msra.mxu0 0
  %75 = vmatprep.subr.bf16.mxu0 0
  %76 = vmatpush1.bf16.msra.mxu0 0
  %77 = vmatprep.subr.bf16.mxu0 0
  %78 = vmatpush1.bf16.msra.mxu0 %v55
  %79 = vmatprep.subr.bf16.mxu0 0
  %80 = vmatpush1.bf16.msra.mxu0 %v54
  %81 = vmatprep.subr.bf16.mxu0 0
  %82 = vmatpush2.bf16.msra.mxu0 0
  %83 = vmatprep.subr.bf16.mxu0 0
  %84 = vmatpush2.bf16.msra.mxu0 0
  %85 = vmatprep.subr.bf16.mxu0 0
  %86 = vmatpush2.bf16.msra.mxu0 0
  %87 = vmatprep.subr.bf16.mxu0 0
  %88 = vmatpush2.bf16.msra.mxu0 0
  %89 = vmatprep.subr.bf16.mxu0 0
  %90 = vmatpush2.bf16.msra.mxu0 0
  %91 = vmatprep.subr.bf16.mxu0 0
  %92 = vmatpush2.bf16.msra.mxu0 0
  %93 = vmatprep.subr.bf16.mxu0 0
  %94 = vmatpush2.bf16.msra.mxu0 0
  %95 = vmatprep.subr.bf16.mxu0 0
  %96 = vmatpush2.bf16.msra.mxu0 0
  %97 = vmatprep.mubr.bf16.mxu0 0
  %98 = vmatmul.mubr.bf16.gmra.mxu0 %v60
  %v99 = vpop.f32.mrf.mxu0
  %v100 = vadd.f32 0.0, %v99
  %v101 = vpop.f32.mrf.mxu0
  %v102 = vpop.f32.mrf.mxu0
  %v103 = vadd.f32 0.0, %v102
  %v104 = vpop.f32.mrf.mxu0
  %105 = vmatprep.mubr.bf16.mxu0 0
  %106 = vmatmul.mubr.bf16.gmra.mxu0 %v63
  %v107 = vpop.f32.mrf.mxu0
  %v108 = vadd.f32 0.0, %v107
  %v109 = vpop.f32.mrf.mxu0
  %v110 = vpop.f32.mrf.mxu0
  %v111 = vadd.f32 0.0, %v110
  %v112 = vpop.f32.mrf.mxu0
  %113 = vdwg.mxu0
  %v114 = vadd.f32 %v24, %v100
  %v115 = vadd.f32 %v25, %v103
  %v116 = vadd.f32 %v26, %v108
  %v117 = vadd.f32 %v27, %v111
  %vm118 = vcmask 523264
  %119 = vst.msk [vmem:[#allocation2] sm:$0xff] %vm118, %v114
  %120 = vst.msk [vmem:[#allocation2 + $0x8] sm:$0xff] %vm118, %v115
  %121 = vst.msk [vmem:[#allocation2 + $0x10] sm:$0xff] %vm118, %v116
  %122 = vst.msk [vmem:[#allocation2 + $0x18] sm:$0xff] %vm118, %v117
  // Predicated region
  $region18: #{seq2seq_forward.24} parent=0 // pred_check
    %p123 = pneg %p15
  $region19: #{seq2seq_forward.24} parent=0 // pred_check_branch
    %125 = sbr.rel (%p123) target = $region21
  $region20: #{seq2seq_forward.24} parent=0 // pred_region
    %v126 = vld [vmem:[#allocation2] sm:$0xff]
    %v127 = vld [vmem:[#allocation2 + $0x8] sm:$0xff]
    %v128 = vld [vmem:[#allocation2 + $0x10] sm:$0xff]
    %v129 = vld [vmem:[#allocation2 + $0x18] sm:$0xff]
    %v130 = vld [vmem:[%s2] sm:$0x1]
    %v132 = vlaneseq
    %v133 = vshrl.u32 %v132, 7
    %v134 = vsub.s32 0, %v133
    %v135 = vrot.slane %v130, %v134
    %v137 = vadd.f32 %v126, %v135
    %v138 = vadd.f32 %v127, %v135
    %v139 = vadd.f32 %v128, %v135
    %v140 = vadd.f32 %v129, %v135
    %v141 = vpack.c.bf16 %v138, %v137
    %v142 = vpack.c.bf16 %v140, %v139
    %v145 = vunpack.c.l.b16 %v141
    %v146 = vunpack.c.h.b16 %v141
    %v147 = vunpack.c.l.b16 %v142
    %v148 = vunpack.c.h.b16 %v142
    %v149 = vpack.c.b16 %v145, %v145
    %v150 = vpack.c.b16 %v146, %v146
    %v151 = vpack.c.b16 %v147, %v147
    %v152 = vpack.c.b16 %v148, %v148
    %vm157 = vcmask 519168
    %158 = vst.msk [vmem:[%s3] sm:$0xf] %vm157, %v149
    %159 = vst.msk [vmem:[%s3 + $0x4] sm:$0xf] %vm157, %v150
    %160 = vst.msk [vmem:[%s3 + $0x8] sm:$0xf] %vm157, %v151
    %161 = vst.msk [vmem:[%s3 + $0xc] sm:$0xf] %vm157, %v152
  $region21: #{seq2seq_forward.24} parent=0 // pred_fallthru
    _
  // Predicated region
  $region22: #{seq2seq_forward.24} parent=0 // pred_check
    _
  $region23: #{seq2seq_forward.24} parent=0 // pred_check_branch
    %163 = sbr.rel (0) target = $region25
  $region24: #{seq2seq_forward.24} parent=0 // pred_region
    _
  $region25: #{seq2seq_forward.24} parent=0 // pred_fallthru
    _
  // Predicated region
  $region26: #{seq2seq_forward.24} parent=0 // pred_check
    _
  $region27: #{seq2seq_forward.24} parent=0 // pred_check_branch
    %165 = sbr.rel (0) target = $region29
  $region28: #{seq2seq_forward.24} parent=0 // pred_region
    _
  $region29: #{seq2seq_forward.24} parent=0 // pred_fallthru
    _

// kernel: seq2seq_forward.27
$region0: #{seq2seq_forward.27}
  #allocation0 [shape = 'u32[]', space=smem, size = 0x4, offset = 0x4, fixed_abs, tag = 'smem constant byte address 0x4 - core index']
  #allocation1 [shape = 'u32[144,128]{1,0:T(1,128)}', space=vmem, size = 0x12000, scoped, tag = 'internal scratch']
  #allocation2 [shape = 'f32[16,64]{1,0:T(8,128)}', space=vmem, size = 0x2000, scoped, tag = 'scratch operand']
  %s0 = inlined_call_operand.vmem [shape: bf16[16,32], index: 0, kind: input, shape index: {}]
  %s1 = inlined_call_operand.vmem [shape: bf16[32,64], index: 1, kind: input, shape index: {}]
  %s2 = inlined_call_operand.vmem [shape: f32[1,64], index: 2, kind: input, shape index: {}]
  %s3 = inlined_call_operand.vmem [shape: bf16[16,64], index: 3, kind: output, shape index: {}]
  %s4 = sld [smem:[#allocation0]]
  $region30: #{seq2seq_forward.27} parent=0
    _
  %s6 = ssub.s32 1, %s4
  %s7 = scalar_select 0, %s6, %s4
  // Predicated region
  $region2: #{seq2seq_forward.27} parent=0 // pred_check
    _
  $region3: #{seq2seq_forward.27} parent=0 // pred_check_branch
    %9 = sbr.rel (0) target = $region5
  $region4: #{seq2seq_forward.27} parent=0 // pred_region
    _
  $region5: #{seq2seq_forward.27} parent=0 // pred_fallthru
    _
  // Predicated region
  $region6: #{seq2seq_forward.27} parent=0 // pred_check
    _
  $region7: #{seq2seq_forward.27} parent=0 // pred_check_branch
    %11 = sbr.rel (0) target = $region9
  $region8: #{seq2seq_forward.27} parent=0 // pred_region
    _
  $region9: #{seq2seq_forward.27} parent=0 // pred_fallthru
    _
  // Predicated region
  $region10: #{seq2seq_forward.27} parent=0 // pred_check
    _
  $region11: #{seq2seq_forward.27} parent=0 // pred_check_branch
    %13 = sbr.rel (0) target = $region13
  $region12: #{seq2seq_forward.27} parent=0 // pred_region
    _
  $region13: #{seq2seq_forward.27} parent=0 // pred_fallthru
    _
  %p15 = scmp.eq.s32.totalorder 0, 0
  // Predicated region
  $region14: #{seq2seq_forward.27} parent=0 // pred_check
    %p16 = pneg %p15
  $region15: #{seq2seq_forward.27} parent=0 // pred_check_branch
    %18 = sbr.rel (%p16) target = $region17
  $region16: #{seq2seq_forward.27} parent=0 // pred_region
    %vm19 = vcmask 523264
    %20 = vst.msk [vmem:[#allocation2] sm:$0xff] %vm19, 0.0
    %21 = vst.msk [vmem:[#allocation2 + $0x8] sm:$0xff] %vm19, 0.0
  $region17: #{seq2seq_forward.27} parent=0 // pred_fallthru
    _
  %v22 = vld [vmem:[#allocation2] sm:$0xff]
  %v23 = vld [vmem:[#allocation2 + $0x8] sm:$0xff]
  %v24 = vld [vmem:[%s0] sm:$0xf]
  %v25 = vld [vmem:[%s0 + $0x4] sm:$0xf]
  %v26 = vld [vmem:[%s1] sm:$0xf]
  %v27 = vld [vmem:[%s1 + $0x4] sm:$0xf]
  %v28 = vld [vmem:[%s1 + $0x8] sm:$0xf]
  %v29 = vld [vmem:[%s1 + $0xc] sm:$0xf]
  %v32 = vunpack.c.l.b16 %v24
  %v33 = vunpack.c.l.b16 %v25
  %v34 = vpack.c.b16 %v33, %v32
  %v39 = vunpack.c.l.b16 %v26
  %v40 = vunpack.c.l.b16 %v27
  %v41 = vunpack.c.l.b16 %v28
  %v42 = vunpack.c.l.b16 %v29
  %v43 = vpack.c.b16 %v40, %v39
  %v44 = vpack.c.b16 %v42, %v41
  %vm47 = vcmask 261120
  %v49 = vsel %vm47, %v34, 0
  %51 = vmatprep.subr.bf16.mxu0 0
  %52 = vmatpush1.bf16.msra.mxu0 0
  %53 = vmatprep.subr.bf16.mxu0 0
  %54 = vmatpush1.bf16.msra.mxu0 0
  %55 = vmatprep.subr.bf16.mxu0 0
  %56 = vmatpush1.bf16.msra.mxu0 0
  %57 = vmatprep.subr.bf16.mxu0 0
  %58 = vmatpush1.bf16.msra.mxu0 0
  %59 = vmatprep.subr.bf16.mxu0 0
  %60 = vmatpush1.bf16.msra.mxu0 0
  %61 = vmatprep.subr.bf16.mxu0 0
  %62 = vmatpush1.bf16.msra.mxu0 0
  %63 = vmatprep.subr.bf16.mxu0 0
  %64 = vmatpush1.bf16.msra.mxu0 %v44
  %65 = vmatprep.subr.bf16.mxu0 0
  %66 = vmatpush1.bf16.msra.mxu0 %v43
  %67 = vmatprep.subr.bf16.mxu0 0
  %68 = vmatpush2.bf16.msra.mxu0 0
  %69 = vmatprep.subr.bf16.mxu0 0
  %70 = vmatpush2.bf16.msra.mxu0 0
  %71 = vmatprep.subr.bf16.mxu0 0
  %72 = vmatpush2.bf16.msra.mxu0 0
  %73 = vmatprep.subr.bf16.mxu0 0
  %74 = vmatpush2.bf16.msra.mxu0 0
  %75 = vmatprep.subr.bf16.mxu0 0
  %76 = vmatpush2.bf16.msra.mxu0 0
  %77 = vmatprep.subr.bf16.mxu0 0
  %78 = vmatpush2.bf16.msra.mxu0 0
  %79 = vmatprep.subr.bf16.mxu0 0
  %80 = vmatpush2.bf16.msra.mxu0 0
  %81 = vmatprep.subr.bf16.mxu0 0
  %82 = vmatpush2.bf16.msra.mxu0 0
  %83 = vmatprep.mubr.bf16.mxu0 0
  %84 = vmatmul.mubr.bf16.gmra.mxu0 %v49
  %v85 = vpop.f32.mrf.mxu0
  %v86 = vadd.f32 0.0, %v85
  %v87 = vpop.f32.mrf.mxu0
  %v88 = vpop.f32.mrf.mxu0
  %v89 = vadd.f32 0.0, %v88
  %v90 = vpop.f32.mrf.mxu0
  %91 = vdwg.mxu0
  %v92 = vadd.f32 %v22, %v86
  %v93 = vadd.f32 %v23, %v89
  %vm94 = vcmask 523264
  %95 = vst.msk [vmem:[#allocation2] sm:$0xff] %vm94, %v92
  %96 = vst.msk [vmem:[#allocation2 + $0x8] sm:$0xff] %vm94, %v93
  // Predicated region
  $region18: #{seq2seq_forward.27} parent=0 // pred_check
    %p97 = pneg %p15
  $region19: #{seq2seq_forward.27} parent=0 // pred_check_branch
    %99 = sbr.rel (%p97) target = $region21
  $region20: #{seq2seq_forward.27} parent=0 // pred_region
    %v100 = vld [vmem:[#allocation2] sm:$0xff]
    %v101 = vld [vmem:[#allocation2 + $0x8] sm:$0xff]
    %v102 = vld [vmem:[%s2] sm:$0x1]
    %v104 = vlaneseq
    %v105 = vshrl.u32 %v104, 7
    %v106 = vsub.s32 0, %v105
    %v107 = vrot.slane %v102, %v106
    %v109 = vadd.f32 %v100, %v107
    %v110 = vadd.f32 %v101, %v107
    %v111 = vmax.f32 %v109, 0.0
    %v112 = vmax.f32 %v110, 0.0
    %v113 = vpack.c.bf16 %v112, %v111
    %v115 = vunpack.c.l.b16 %v113
    %v116 = vunpack.c.h.b16 %v113
    %v117 = vpack.c.b16 %v115, %v115
    %v118 = vpack.c.b16 %v116, %v116
    %vm121 = vcmask 519168
    %122 = vst.msk [vmem:[%s3] sm:$0xf] %vm121, %v117
    %123 = vst.msk [vmem:[%s3 + $0x4] sm:$0xf] %vm121, %v118
  $region21: #{seq2seq_forward.27} parent=0 // pred_fallthru
    _
  // Predicated region
  $region22: #{seq2seq_forward.27} parent=0 // pred_check
    _
  $region23: #{seq2seq_forward.27} parent=0 // pred_check_branch
    %125 = sbr.rel (0) target = $region25
  $region24: #{seq2seq_forward.27} parent=0 // pred_region
    _
  $region25: #{seq2seq_forward.27} parent=0 // pred_fallthru
    _
  // Predicated region
  $region26: #{seq2seq_forward.27} parent=0 // pred_check
    _
  $region27: #{seq2seq_forward.27} parent=0 // pred_check_branch
    %127 = sbr.rel (0) target = $region29
  $region28: #{seq2seq_forward.27} parent=0 // pred_region
    _
  $region29: #{seq2seq_forward.27} parent=0 // pred_fallthru
    _

// kernel: seq2seq_forward.38
$region0: #{seq2seq_forward.38}
  #allocation0 [shape = 'u32[]', space=smem, size = 0x4, offset = 0x4, fixed_abs, tag = 'smem constant byte address 0x4 - core index']
  #allocation1 [shape = 'u32[144,128]{1,0:T(1,128)}', space=vmem, size = 0x12000, scoped, tag = 'internal scratch']
  #allocation2 [shape = 'f32[16,32]{1,0:T(8,128)}', space=vmem, size = 0x2000, scoped, tag = 'scratch operand']
  %s0 = inlined_call_operand.vmem [shape: bf16[16,32], index: 0, kind: input, shape index: {}]
  %s1 = inlined_call_operand.vmem [shape: bf16[32,32], index: 1, kind: input, shape index: {}]
  %s2 = inlined_call_operand.vmem [shape: f32[1,32], index: 2, kind: input, shape index: {}]
  %s3 = inlined_call_operand.vmem [shape: bf16[16,32], index: 3, kind: output, shape index: {}]
  %s4 = sld [smem:[#allocation0]]
  $region30: #{seq2seq_forward.38} parent=0
    _
  %s6 = ssub.s32 1, %s4
  %s7 = scalar_select 0, %s6, %s4
  // Predicated region
  $region2: #{seq2seq_forward.38} parent=0 // pred_check
    _
  $region3: #{seq2seq_forward.38} parent=0 // pred_check_branch
    %9 = sbr.rel (0) target = $region5
  $region4: #{seq2seq_forward.38} parent=0 // pred_region
    _
  $region5: #{seq2seq_forward.38} parent=0 // pred_fallthru
    _
  // Predicated region
  $region6: #{seq2seq_forward.38} parent=0 // pred_check
    _
  $region7: #{seq2seq_forward.38} parent=0 // pred_check_branch
    %11 = sbr.rel (0) target = $region9
  $region8: #{seq2seq_forward.38} parent=0 // pred_region
    _
  $region9: #{seq2seq_forward.38} parent=0 // pred_fallthru
    _
  // Predicated region
  $region10: #{seq2seq_forward.38} parent=0 // pred_check
    _
  $region11: #{seq2seq_forward.38} parent=0 // pred_check_branch
    %13 = sbr.rel (0) target = $region13
  $region12: #{seq2seq_forward.38} parent=0 // pred_region
    _
  $region13: #{seq2seq_forward.38} parent=0 // pred_fallthru
    _
  %p15 = scmp.eq.s32.totalorder 0, 0
  // Predicated region
  $region14: #{seq2seq_forward.38} parent=0 // pred_check
    %p16 = pneg %p15
  $region15: #{seq2seq_forward.38} parent=0 // pred_check_branch
    %18 = sbr.rel (%p16) target = $region17
  $region16: #{seq2seq_forward.38} parent=0 // pred_region
    %vm19 = vcmask 261120
    %20 = vst.msk [vmem:[#allocation2] sm:$0xff] %vm19, 0.0
    %21 = vst.msk [vmem:[#allocation2 + $0x8] sm:$0xff] %vm19, 0.0
  $region17: #{seq2seq_forward.38} parent=0 // pred_fallthru
    _
  %v22 = vld [vmem:[#allocation2] sm:$0xff]
  %v23 = vld [vmem:[#allocation2 + $0x8] sm:$0xff]
  %v24 = vld [vmem:[%s0] sm:$0xf]
  %v25 = vld [vmem:[%s0 + $0x4] sm:$0xf]
  %v26 = vld [vmem:[%s1] sm:$0xf]
  %v27 = vld [vmem:[%s1 + $0x4] sm:$0xf]
  %v28 = vld [vmem:[%s1 + $0x8] sm:$0xf]
  %v29 = vld [vmem:[%s1 + $0xc] sm:$0xf]
  %v32 = vunpack.c.l.b16 %v24
  %v33 = vunpack.c.l.b16 %v25
  %v34 = vpack.c.b16 %v33, %v32
  %v39 = vunpack.c.l.b16 %v26
  %v40 = vunpack.c.l.b16 %v27
  %v41 = vunpack.c.l.b16 %v28
  %v42 = vunpack.c.l.b16 %v29
  %v43 = vpack.c.b16 %v40, %v39
  %v44 = vpack.c.b16 %v42, %v41
  %vm47 = vcmask 261120
  %v49 = vsel %vm47, %v34, 0
  %51 = vmatprep.subr.bf16.mxu0 0
  %52 = vmatpush1.bf16.msra.mxu0 0
  %53 = vmatprep.subr.bf16.mxu0 0
  %54 = vmatpush1.bf16.msra.mxu0 0
  %55 = vmatprep.subr.bf16.mxu0 0
  %56 = vmatpush1.bf16.msra.mxu0 0
  %57 = vmatprep.subr.bf16.mxu0 0
  %58 = vmatpush1.bf16.msra.mxu0 0
  %59 = vmatprep.subr.bf16.mxu0 0
  %60 = vmatpush1.bf16.msra.mxu0 0
  %61 = vmatprep.subr.bf16.mxu0 0
  %62 = vmatpush1.bf16.msra.mxu0 0
  %63 = vmatprep.subr.bf16.mxu0 0
  %64 = vmatpush1.bf16.msra.mxu0 %v44
  %65 = vmatprep.subr.bf16.mxu0 0
  %66 = vmatpush1.bf16.msra.mxu0 %v43
  %67 = vmatprep.subr.bf16.mxu0 0
  %68 = vmatpush2.bf16.msra.mxu0 0
  %69 = vmatprep.subr.bf16.mxu0 0
  %70 = vmatpush2.bf16.msra.mxu0 0
  %71 = vmatprep.subr.bf16.mxu0 0
  %72 = vmatpush2.bf16.msra.mxu0 0
  %73 = vmatprep.subr.bf16.mxu0 0
  %74 = vmatpush2.bf16.msra.mxu0 0
  %75 = vmatprep.subr.bf16.mxu0 0
  %76 = vmatpush2.bf16.msra.mxu0 0
  %77 = vmatprep.subr.bf16.mxu0 0
  %78 = vmatpush2.bf16.msra.mxu0 0
  %79 = vmatprep.subr.bf16.mxu0 0
  %80 = vmatpush2.bf16.msra.mxu0 0
  %81 = vmatprep.subr.bf16.mxu0 0
  %82 = vmatpush2.bf16.msra.mxu0 0
  %83 = vmatprep.mubr.bf16.mxu0 0
  %84 = vmatmul.mubr.bf16.gmra.mxu0 %v49
  %v85 = vpop.f32.mrf.mxu0
  %v86 = vadd.f32 0.0, %v85
  %v87 = vpop.f32.mrf.mxu0
  %v88 = vpop.f32.mrf.mxu0
  %v89 = vadd.f32 0.0, %v88
  %v90 = vpop.f32.mrf.mxu0
  %91 = vdwg.mxu0
  %v92 = vadd.f32 %v22, %v86
  %v93 = vadd.f32 %v23, %v89
  %94 = vst.msk [vmem:[#allocation2] sm:$0xff] %vm47, %v92
  %95 = vst.msk [vmem:[#allocation2 + $0x8] sm:$0xff] %vm47, %v93
  // Predicated region
  $region18: #{seq2seq_forward.38} parent=0 // pred_check
    %p96 = pneg %p15
  $region19: #{seq2seq_forward.38} parent=0 // pred_check_branch
    %98 = sbr.rel (%p96) target = $region21
  $region20: #{seq2seq_forward.38} parent=0 // pred_region
    %v99 = vld [vmem:[#allocation2] sm:$0xff]
    %v100 = vld [vmem:[#allocation2 + $0x8] sm:$0xff]
    %v101 = vld [vmem:[%s2] sm:$0x1]
    %v103 = vlaneseq
    %v104 = vshrl.u32 %v103, 7
    %v105 = vsub.s32 0, %v104
    %v106 = vrot.slane %v101, %v105
    %v108 = vadd.f32 %v99, %v106
    %v109 = vadd.f32 %v100, %v106
    %v110 = vtanh.pop %v108
    %v111 = vtanh.pop %v109
    %v112 = vpack.c.bf16 %v111, %v110
    %v114 = vunpack.c.l.b16 %v112
    %v115 = vunpack.c.h.b16 %v112
    %v116 = vpack.c.b16 %v114, %v114
    %v117 = vpack.c.b16 %v115, %v115
    %vm120 = vcmask 257024
    %121 = vst.msk [vmem:[%s3] sm:$0xf] %vm120, %v116
    %122 = vst.msk [vmem:[%s3 + $0x4] sm:$0xf] %vm120, %v117
  $region21: #{seq2seq_forward.38} parent=0 // pred_fallthru
    _
  // Predicated region
  $region22: #{seq2seq_forward.38} parent=0 // pred_check
    _
  $region23: #{seq2seq_forward.38} parent=0 // pred_check_branch
    %124 = sbr.rel (0) target = $region25
  $region24: #{seq2seq_forward.38} parent=0 // pred_region
    _
  $region25: #{seq2seq_forward.38} parent=0 // pred_fallthru
    _
  // Predicated region
  $region26: #{seq2seq_forward.38} parent=0 // pred_check
    _
  $region27: #{seq2seq_forward.38} parent=0 // pred_check_branch
    %126 = sbr.rel (0) target = $region29
  $region28: #{seq2seq_forward.38} parent=0 // pred_region
    _
  $region29: #{seq2seq_forward.38} parent=0 // pred_fallthru
    _

// kernel: seq2seq_forward.25
$region0: #{seq2seq_forward.25}
  #allocation0 [shape = 'u32[]', space=smem, size = 0x4, offset = 0x4, fixed_abs, tag = 'smem constant byte address 0x4 - core index']
  #allocation1 [shape = 'u32[144,128]{1,0:T(1,128)}', space=vmem, size = 0x12000, scoped, tag = 'internal scratch']
  #allocation2 [shape = 'f32[8,1]{1,0:T(8,128)}', space=vmem, size = 0x1000, scoped, tag = 'scratch operand']
  #allocation3 [shape = 'f32[8,1]{1,0:T(8,128)}', space=vmem, size = 0x1000, scoped, tag = 'scratch operand']
  #allocation4 [shape = 'f32[8,8]{1,0:T(8,128)}', space=vmem, size = 0x1000, scoped, tag = 'scratch operand']
  %s0 = inlined_call_operand.vmem [shape: bf16[2,4,8,8], index: 0, kind: input, shape index: {}]
  %s1 = inlined_call_operand.vmem [shape: bf16[2,4,16,8], index: 1, kind: input, shape index: {}]
  %s2 = inlined_call_operand.vmem [shape: bf16[2,4,16,8], index: 2, kind: input, shape index: {}]
  %s3 = inlined_call_operand.vmem [shape: f32[2,1,16], index: 3, kind: input, shape index: {}]
  %s4 = inlined_call_operand.vmem [shape: bf16[2,4,8,8], index: 4, kind: output, shape index: {}]
  %s5 = sld [smem:[#allocation0]]
  $region57: #{seq2seq_forward.25} parent=0
    _
  %s7 = ssub.s32 1, %s5
  %s8 = scalar_select 0, %s7, %s5
  loop: start=0, step=1, limit=10
  $region2: #{seq2seq_forward.25} parent=0 // loop_pre_header
    _
  $region3: #{seq2seq_forward.25} parent=0 // loop_header
    %s10 = sphi 0, %s14
    %p11 = scmp.ge.s32.totalorder %s10, 10
    %s17 = sphi 0, %s36
    %s18 = sphi 0, %s32
    %s19 = sphi 0, %s28
    %s20 = sphi 0, %s17
    %s21 = sphi 0, %s18
    %s22 = sphi 0, %s19
    %s23 = sphi 0, %s20
    %s24 = sphi 0, %s21
    %s25 = sphi 0, %s22
    %s41 = sphi 0, %s43
    %s44 = sphi 0, %s41
    %s45 = sphi 0, %s44
    %s61 = sphi 0, %s45
    %s71 = sphi 0, %s73
    %s74 = sphi 0, %s71
    %s75 = sphi 0, %s74
    %s91 = sphi 0, %s75
    %s101 = sphi 0, %s103
    %s104 = sphi 0, %s101
    %s105 = sphi 0, %s104
    %s121 = sphi 0, %s105
    %s129 = sphi 0, %s131
    %s132 = sphi 0, %s129
    %s133 = sphi 0, %s132
    %s149 = sphi 0, %s133
    %s157 = sphi 0, %s159
    %s160 = sphi 0, %s157
    %s161 = sphi 0, %s160
    %s177 = sphi 0, %s161
  $region4: #{seq2seq_forward.25} parent=0 // loop_header_branch
    %13 = sbr.rel (%p11) target = $region8
  $region5: #{seq2seq_forward.25} parent=0 // loop_body
    %s15 = ssub.s32 %s10, 1
    %s16 = ssub.s32 %s10, 2
    %s26 = sadd.s32 1, %s19
    %p27 = scmp.ge.s32.totalorder %s26, 1
    %s28 = scalar_select %p27, 0, %s26
    %s29 = sadd.s32 1, %s18
    %s30 = scalar_select %p27, %s29, %s18
    %p31 = scmp.ge.s32.totalorder %s30, 4
    %s32 = scalar_select %p31, 0, %s30
    %s33 = sadd.s32 1, %s17
    %s34 = scalar_select %p31, %s33, %s17
    %p35 = scmp.ge.s32.totalorder %s34, 2
    %s36 = scalar_select %p35, 0, %s34
    %s37 = ssub.s32 %s17, %s36
    %s38 = ssub.s32 %s18, %s32
    %s39 = sor.u32 %s37, %s38
    %p40 = scmp.eq.s32.totalorder %s39, 0
    %s42 = sadd.s32 %s41, 1
    %s43 = scalar_select %p40, %s41, %s42
    %p46 = pneg %p40
    %p47 = scmp.eq.s32.totalorder %s10, 7
    %p48 = por %p46, %p47
    %p49 = scmp.ne.s32.totalorder %s41, %s44
    %p50 = scmp.eq.s32.totalorder %s10, 0
    %p51 = por %p49, %p50
    %p52 = scmp.ne.s32.totalorder %s41, %s44
    %p53 = scmp.eq.s32.totalorder %s15, 7
    %p54 = por %p52, %p53
    %p55 = scmp.ne.s32.totalorder %s44, %s45
    %p56 = scmp.eq.s32.totalorder %s15, 0
    %p57 = por %p55, %p56
    %p58 = scmp.ne.s32.totalorder %s44, %s45
    %p59 = scmp.eq.s32.totalorder %s16, 7
    %p60 = por %p58, %p59
    %p62 = scmp.ne.s32.totalorder %s45, %s61
    %p63 = scmp.eq.s32.totalorder %s16, 0
    %p64 = por %p62, %p63
    %s65 = ssub.s32 %s17, %s36
    %s66 = ssub.s32 %s18, %s32
    %s67 = sor.u32 %s65, %s66
    %s68 = ssub.s32 %s19, %s28
    %s69 = sor.u32 %s67, %s68
    %p70 = scmp.eq.s32.totalorder %s69, 0
    %s72 = sadd.s32 %s71, 1
    %s73 = scalar_select %p70, %s71, %s72
    %p76 = pneg %p70
    %p77 = scmp.eq.s32.totalorder %s10, 7
    %p78 = por %p76, %p77
    %p79 = scmp.ne.s32.totalorder %s71, %s74
    %p80 = scmp.eq.s32.totalorder %s10, 0
    %p81 = por %p79, %p80
    %p82 = scmp.ne.s32.totalorder %s71, %s74
    %p83 = scmp.eq.s32.totalorder %s15, 7
    %p84 = por %p82, %p83
    %p85 = scmp.ne.s32.totalorder %s74, %s75
    %p86 = scmp.eq.s32.totalorder %s15, 0
    %p87 = por %p85, %p86
    %p88 = scmp.ne.s32.totalorder %s74, %s75
    %p89 = scmp.eq.s32.totalorder %s16, 7
    %p90 = por %p88, %p89
    %p92 = scmp.ne.s32.totalorder %s75, %s91
    %p93 = scmp.eq.s32.totalorder %s16, 0
    %p94 = por %p92, %p93
    %s95 = ssub.s32 %s17, %s36
    %s96 = ssub.s32 %s18, %s32
    %s97 = sor.u32 %s95, %s96
    %s98 = ssub.s32 %s19, %s28
    %s99 = sor.u32 %s97, %s98
    %p100 = scmp.eq.s32.totalorder %s99, 0
    %s102 = sadd.s32 %s101, 1
    %s103 = scalar_select %p100, %s101, %s102
    %p106 = pneg %p100
    %p107 = scmp.eq.s32.totalorder %s10, 7
    %p108 = por %p106, %p107
    %p109 = scmp.ne.s32.totalorder %s101, %s104
    %p110 = scmp.eq.s32.totalorder %s10, 0
    %p111 = por %p109, %p110
    %p112 = scmp.ne.s32.totalorder %s101, %s104
    %p113 = scmp.eq.s32.totalorder %s15, 7
    %p114 = por %p112, %p113
    %p115 = scmp.ne.s32.totalorder %s104, %s105
    %p116 = scmp.eq.s32.totalorder %s15, 0
    %p117 = por %p115, %p116
    %p118 = scmp.ne.s32.totalorder %s104, %s105
    %p119 = scmp.eq.s32.totalorder %s16, 7
    %p120 = por %p118, %p119
    %p122 = scmp.ne.s32.totalorder %s105, %s121
    %p123 = scmp.eq.s32.totalorder %s16, 0
    %p124 = por %p122, %p123
    %s125 = ssub.s32 %s17, %s36
    %s126 = ssub.s32 %s19, %s28
    %s127 = sor.u32 %s125, %s126
    %p128 = scmp.eq.s32.totalorder %s127, 0
    %s130 = sadd.s32 %s129, 1
    %s131 = scalar_select %p128, %s129, %s130
    %p134 = pneg %p128
    %p135 = scmp.eq.s32.totalorder %s10, 7
    %p136 = por %p134, %p135
    %p137 = scmp.ne.s32.totalorder %s129, %s132
    %p138 = scmp.eq.s32.totalorder %s10, 0
    %p139 = por %p137, %p138
    %p140 = scmp.ne.s32.totalorder %s129, %s132
    %p141 = scmp.eq.s32.totalorder %s15, 7
    %p142 = por %p140, %p141
    %p143 = scmp.ne.s32.totalorder %s132, %s133
    %p144 = scmp.eq.s32.totalorder %s15, 0
    %p145 = por %p143, %p144
    %p146 = scmp.ne.s32.totalorder %s132, %s133
    %p147 = scmp.eq.s32.totalorder %s16, 7
    %p148 = por %p146, %p147
    %p150 = scmp.ne.s32.totalorder %s133, %s149
    %p151 = scmp.eq.s32.totalorder %s16, 0
    %p152 = por %p150, %p151
    %s153 = ssub.s32 %s17, %s36
    %s154 = ssub.s32 %s18, %s32
    %s155 = sor.u32 %s153, %s154
    %p156 = scmp.eq.s32.totalorder %s155, 0
    %s158 = sadd.s32 %s157, 1
    %s159 = scalar_select %p156, %s157, %s158
    %p162 = pneg %p156
    %p163 = scmp.eq.s32.totalorder %s10, 7
    %p164 = por %p162, %p163
    %p165 = scmp.ne.s32.totalorder %s157, %s160
    %p166 = scmp.eq.s32.totalorder %s10, 0
    %p167 = por %p165, %p166
    %p168 = scmp.ne.s32.totalorder %s157, %s160
    %p169 = scmp.eq.s32.totalorder %s15, 7
    %p170 = por %p168, %p169
    %p171 = scmp.ne.s32.totalorder %s160, %s161
    %p172 = scmp.eq.s32.totalorder %s15, 0
    %p173 = por %p171, %p172
    %p174 = scmp.ne.s32.totalorder %s160, %s161
    %p175 = scmp.eq.s32.totalorder %s16, 7
    %p176 = por %p174, %p175
    %p178 = scmp.ne.s32.totalorder %s161, %s177
    %p179 = scmp.eq.s32.totalorder %s16, 0
    %p180 = por %p178, %p179
    %p181 = scmp.le.s32.totalorder 1, %s10
    %p182 = scmp.lt.s32.totalorder %s10, 9
    %p183 = pnand %p181, %p182
    %p184 = pneg %p183
    // Predicated region
    $region9: #{seq2seq_forward.25} parent=5 // pred_check
      _
    $region10: #{seq2seq_forward.25} parent=5 // pred_check_branch
      %186 = sbr.rel (%p183) target = $region12
    $region11: #{seq2seq_forward.25} parent=5 // pred_region
      %s187 = ssub.s32 %s10, 1
    $region12: #{seq2seq_forward.25} parent=5 // pred_fallthru
      _
    %p188 = scmp.lt.s32.totalorder %s10, 8
    // Predicated region
    $region13: #{seq2seq_forward.25} parent=5 // pred_check
      %p189 = pneg %p188
    $region14: #{seq2seq_forward.25} parent=5 // pred_check_branch
      %191 = sbr.rel (%p189) target = $region16
    $region15: #{seq2seq_forward.25} parent=5 // pred_region
      // Predicated region
      $region17: #{seq2seq_forward.25} parent=15 // pred_check
        %p192 = pneg %p51
      $region18: #{seq2seq_forward.25} parent=15 // pred_check_branch
        %194 = sbr.rel (%p192) target = $region20
      $region19: #{seq2seq_forward.25} parent=15 // pred_region
        %p195 = scmp.lt.s32.totalorder %s17, 1
        %s196 = scalar_select %p195, %s17, 1
        %p197 = scmp.lt.s32.totalorder %s18, 3
        %s198 = scalar_select %p197, %s18, 3
        %s199 = smul.addr %s196, 4
        %s200 = sadd.s32 %s198, %s199
        %s201 = smul.addr %s200, 4
        %s202 = scalar_lea.vmem %s0, %s201
      $region20: #{seq2seq_forward.25} parent=15 // pred_fallthru
        _
      // Predicated region
      $region21: #{seq2seq_forward.25} parent=15 // pred_check
        %p203 = pneg %p81
      $region22: #{seq2seq_forward.25} parent=15 // pred_check_branch
        %205 = sbr.rel (%p203) target = $region24
      $region23: #{seq2seq_forward.25} parent=15 // pred_region
        %s206 = smul.u32 2, %s19
        %p207 = scmp.lt.s32.totalorder %s17, 1
        %s208 = scalar_select %p207, %s17, 1
        %p209 = scmp.lt.s32.totalorder %s18, 3
        %s210 = scalar_select %p209, %s18, 3
        %p211 = scmp.lt.s32.totalorder %s206, 1
        %s212 = scalar_select %p211, %s206, 1
        %s213 = smul.addr %s210, 2
        %s214 = sadd.s32 %s212, %s213
        %s215 = smul.addr %s208, 8
        %s216 = sadd.s32 %s214, %s215
        %s217 = smul.addr %s216, 4
        %s218 = scalar_lea.vmem %s1, %s217
        %s219 = smul.u32 2, %s19
      $region24: #{seq2seq_forward.25} parent=15 // pred_fallthru
        _
      // Predicated region
      $region25: #{seq2seq_forward.25} parent=15 // pred_check
        %p220 = pneg %p111
      $region26: #{seq2seq_forward.25} parent=15 // pred_check_branch
        %222 = sbr.rel (%p220) target = $region28
      $region27: #{seq2seq_forward.25} parent=15 // pred_region
        %s223 = smul.u32 2, %s19
        %p224 = scmp.lt.s32.totalorder %s17, 1
        %s225 = scalar_select %p224, %s17, 1
        %p226 = scmp.lt.s32.totalorder %s18, 3
        %s227 = scalar_select %p226, %s18, 3
        %p228 = scmp.lt.s32.totalorder %s223, 1
        %s229 = scalar_select %p228, %s223, 1
        %s230 = smul.addr %s227, 2
        %s231 = sadd.s32 %s229, %s230
        %s232 = smul.addr %s225, 8
        %s233 = sadd.s32 %s231, %s232
        %s234 = smul.addr %s233, 4
        %s235 = scalar_lea.vmem %s2, %s234
        %s236 = smul.u32 2, %s19
      $region28: #{seq2seq_forward.25} parent=15 // pred_fallthru
        _
      // Predicated region
      $region29: #{seq2seq_forward.25} parent=15 // pred_check
        %p237 = pneg %p139
      $region30: #{seq2seq_forward.25} parent=15 // pred_check_branch
        %239 = sbr.rel (%p237) target = $region32
      $region31: #{seq2seq_forward.25} parent=15 // pred_region
        %p240 = scmp.lt.s32.totalorder %s17, 1
        %s241 = scalar_select %p240, %s17, 1
        %p242 = scmp.lt.s32.totalorder %s19, 0
        %s243 = scalar_select %p242, %s19, 0
        %s244 = sadd.s32 %s243, %s241
        %s245 = scalar_lea.vmem %s3, %s244
      $region32: #{seq2seq_forward.25} parent=15 // pred_fallthru
        _
    $region16: #{seq2seq_forward.25} parent=5 // pred_fallthru
      _
    %p246 = scmp.le.s32.totalorder 1, %s10
    %p247 = scmp.lt.s32.totalorder %s10, 9
    %p248 = pnand %p246, %p247
    %p249 = pneg %p248
    // Predicated region
    $region33: #{seq2seq_forward.25} parent=5 // pred_check
      _
    $region34: #{seq2seq_forward.25} parent=5 // pred_check_branch
      %251 = sbr.rel (%p248) target = $region36
    $region35: #{seq2seq_forward.25} parent=5 // pred_region
      %s252 = ssub.s32 %s10, 1
      %p253 = scmp.lt.s32.totalorder %s20, 1
      %s254 = scalar_select %p253, %s20, 1
      %p255 = scmp.lt.s32.totalorder %s21, 3
      %s256 = scalar_select %p255, %s21, 3
      %s257 = smul.addr %s254, 4
      %s258 = sadd.s32 %s256, %s257
      %s259 = smul.addr %s258, 4
      %s260 = scalar_lea.vmem %s0, %s259
      %p261 = pneg %p57
      %p262 = pneg %p54
      %s263 = smul.u32 2, %s22
      %p264 = scmp.lt.s32.totalorder %s20, 1
      %s265 = scalar_select %p264, %s20, 1
      %p266 = scmp.lt.s32.totalorder %s21, 3
      %s267 = scalar_select %p266, %s21, 3
      %p268 = scmp.lt.s32.totalorder %s263, 1
      %s269 = scalar_select %p268, %s263, 1
      %s270 = smul.addr %s267, 2
      %s271 = sadd.s32 %s269, %s270
      %s272 = smul.addr %s265, 8
      %s273 = sadd.s32 %s271, %s272
      %s274 = smul.addr %s273, 4
      %s275 = scalar_lea.vmem %s1, %s274
      %p276 = pneg %p87
      %p277 = pneg %p84
      %s278 = smul.u32 2, %s22
      %p279 = scmp.lt.s32.totalorder %s20, 1
      %s280 = scalar_select %p279, %s20, 1
      %p281 = scmp.lt.s32.totalorder %s21, 3
      %s282 = scalar_select %p281, %s21, 3
      %p283 = scmp.lt.s32.totalorder %s278, 1
      %s284 = scalar_select %p283, %s278, 1
      %s285 = smul.addr %s282, 2
      %s286 = sadd.s32 %s284, %s285
      %s287 = smul.addr %s280, 8
      %s288 = sadd.s32 %s286, %s287
      %s289 = smul.addr %s288, 4
      %s290 = scalar_lea.vmem %s2, %s289
      %p291 = pneg %p117
      %p292 = pneg %p114
      %p293 = scmp.lt.s32.totalorder %s20, 1
      %s294 = scalar_select %p293, %s20, 1
      %p295 = scmp.lt.s32.totalorder %s22, 0
      %s296 = scalar_select %p295, %s22, 0
      %s297 = sadd.s32 %s296, %s294
      %s298 = scalar_lea.vmem %s3, %s297
      %p299 = pneg %p145
      %p300 = pneg %p142
      %p301 = pneg %p173
      %p302 = pneg %p170
      %p303 = scmp.lt.s32.totalorder %s20, 1
      %s304 = scalar_select %p303, %s20, 1
      %p305 = scmp.lt.s32.totalorder %s21, 3
      %s306 = scalar_select %p305, %s21, 3
      %s307 = smul.addr %s304, 4
      %s308 = sadd.s32 %s306, %s307
      %s309 = smul.addr %s308, 4
      %s310 = scalar_lea.vmem %s4, %s309
      %p311 = scmp.lt.s32.totalorder %s20, 1
      %s312 = scalar_select %p311, %s20, 1
      %p313 = scmp.lt.s32.totalorder %s21, 3
      %s314 = scalar_select %p313, %s21, 3
      %s315 = smul.addr %s312, 4
      %s316 = sadd.s32 %s314, %s315
      %s317 = smul.addr %s316, 4
      %s318 = scalar_lea.vmem %s0, %s317
      %s319 = smul.u32 2, %s22
      %p320 = scmp.lt.s32.totalorder %s20, 1
      %s321 = scalar_select %p320, %s20, 1
      %p322 = scmp.lt.s32.totalorder %s21, 3
      %s323 = scalar_select %p322, %s21, 3
      %p324 = scmp.lt.s32.totalorder %s319, 1
      %s325 = scalar_select %p324, %s319, 1
      %s326 = smul.addr %s323, 2
      %s327 = sadd.s32 %s325, %s326
      %s328 = smul.addr %s321, 8
      %s329 = sadd.s32 %s327, %s328
      %s330 = smul.addr %s329, 4
      %s331 = scalar_lea.vmem %s1, %s330
      %s332 = smul.u32 2, %s22
      %s333 = smul.u32 2, %s22
      %p334 = scmp.lt.s32.totalorder %s20, 1
      %s335 = scalar_select %p334, %s20, 1
      %p336 = scmp.lt.s32.totalorder %s21, 3
      %s337 = scalar_select %p336, %s21, 3
      %p338 = scmp.lt.s32.totalorder %s333, 1
      %s339 = scalar_select %p338, %s333, 1
      %s340 = smul.addr %s337, 2
      %s341 = sadd.s32 %s339, %s340
      %s342 = smul.addr %s335, 8
      %s343 = sadd.s32 %s341, %s342
      %s344 = smul.addr %s343, 4
      %s345 = scalar_lea.vmem %s2, %s344
      %s346 = smul.u32 2, %s22
      %p347 = scmp.lt.s32.totalorder %s20, 1
      %s348 = scalar_select %p347, %s20, 1
      %p349 = scmp.lt.s32.totalorder %s22, 0
      %s350 = scalar_select %p349, %s22, 0
      %s351 = sadd.s32 %s350, %s348
      %s352 = scalar_lea.vmem %s3, %s351
      %p353 = scmp.lt.s32.totalorder %s20, 1
      %s354 = scalar_select %p353, %s20, 1
      %p355 = scmp.lt.s32.totalorder %s21, 3
      %s356 = scalar_select %p355, %s21, 3
      %s357 = smul.addr %s354, 4
      %s358 = sadd.s32 %s356, %s357
      %s359 = smul.addr %s358, 4
      %s360 = scalar_lea.vmem %s4, %s359
      %p362 = scmp.eq.s32.totalorder %s22, 0
      // Predicated region
      $region37: #{seq2seq_forward.25} parent=35 // pred_check
        %p363 = pneg %p362
      $region38: #{seq2seq_forward.25} parent=35 // pred_check_branch
        %365 = sbr.rel (%p363) target = $region40
      $region39: #{seq2seq_forward.25} parent=35 // pred_region
        %vm366 = vcmask 7168
        %367 = vst.msk [vmem:[#allocation2] sm:$0xff] %vm366, -1e+30
        %368 = vst.msk [vmem:[#allocation3] sm:$0xff] %vm366, 0.0
        %vm369 = vcmask 64512
        %370 = vst.msk [vmem:[#allocation4] sm:$0xff] %vm369, 0.0
      $region40: #{seq2seq_forward.25} parent=35 // pred_fallthru
        _
      %v371 = vld [vmem:[%s318] sm:$0xf]
      %v372 = vld [vmem:[%s331] sm:$0xf]
      %v373 = vld [vmem:[%s331 + $0x4] sm:$0xf]
      %v374 = vld [vmem:[%s345] sm:$0xf]
      %v375 = vld [vmem:[%s345 + $0x4] sm:$0xf]
      %v378 = vunpack.c.l.b16 %v372
      %v379 = vunpack.c.l.b16 %v373
      %v380 = vpack.c.b16 %v379, %v378
      %vm381 = vcmask 64512
      %v383 = vsel %vm381, %v371, 0
      %v386 = vsel %vm381, %v380, 0
      %388 = vmatprep.subr.bf16.mxu0 0
      %389 = vmatpush1.bf16.xpose.msra.mxu0 0
      %390 = vmatprep.subr.bf16.mxu0 0
      %391 = vmatpush1.bf16.xpose.msra.mxu0 0
      %392 = vmatprep.subr.bf16.mxu0 0
      %393 = vmatpush1.bf16.xpose.msra.mxu0 0
      %394 = vmatprep.subr.bf16.mxu0 0
      %395 = vmatpush1.bf16.xpose.msra.mxu0 0
      %396 = vmatprep.subr.bf16.mxu0 0
      %397 = vmatpush1.bf16.xpose.msra.mxu0 0
      %398 = vmatprep.subr.bf16.mxu0 0
      %399 = vmatpush1.bf16.xpose.msra.mxu0 0
      %400 = vmatprep.subr.bf16.mxu0 0
      %401 = vmatpush1.bf16.xpose.msra.mxu0 0
      %402 = vmatprep.subr.bf16.mxu0 0
      %403 = vmatpush1.bf16.xpose.msra.mxu0 %v386
      %404 = vmatprep.subr.bf16.mxu0 0
      %405 = vmatpush2.bf16.xpose.msra.mxu0 0
      %406 = vmatprep.subr.bf16.mxu0 0
      %407 = vmatpush2.bf16.xpose.msra.mxu0 0
      %408 = vmatprep.subr.bf16.mxu0 0
      %409 = vmatpush2.bf16.xpose.msra.mxu0 0
      %410 = vmatprep.subr.bf16.mxu0 0
      %411 = vmatpush2.bf16.xpose.msra.mxu0 0
      %412 = vmatprep.subr.bf16.mxu0 0
      %413 = vmatpush2.bf16.xpose.msra.mxu0 0
      %414 = vmatprep.subr.bf16.mxu0 0
      %415 = vmatpush2.bf16.xpose.msra.mxu0 0
      %416 = vmatprep.subr.bf16.mxu0 0
      %417 = vmatpush2.bf16.xpose.msra.mxu0 0
      %418 = vmatprep.subr.bf16.mxu0 0
      %419 = vmatpush2.bf16.xpose.msra.mxu0 0
      %420 = vmatprep.mubr.bf16.mxu0 0
      %421 = vmatmul.mubr.bf16.gmra.mxu0 %v383
      %v422 = vpop.f32.mrf.mxu0
      %v423 = vadd.f32 0.0, %v422
      %v424 = vpop.f32.mrf.mxu0
      %v425 = vpop.f32.mrf.mxu0
      %v426 = vpop.f32.mrf.mxu0
      %427 = vdwg.mxu0
      %v428 = vmul.f32 %v423, 0.35355338
      %v429 = vld [vmem:[%s352] sm:$0x1]
      %v431 = vlaneseq
      %v432 = vshrl.u32 %v431, 7
      %v433 = vsub.s32 0, %v432
      %v434 = vrot.slane %v429, %v433
      %v436 = vadd.f32 %v428, %v434
      %v437 = vld [vmem:[#allocation2] sm:$0xff]
      %vm438 = vcmask 130048
      %v439 = vsel %vm438, %v436, -inf
      %440 = vmax.xlane.f32.xlu0 %v439
      %v441 = vpop.xlane.xlu0 %440
      %v442 = vmax.f32 %v437, %v441
      %v443 = vsub.f32 %v437, %v442
      %v444 = vmul.f32 %v443, 1.442695
      %v445 = vpow.pop %v444
      %447 = vset.pattern.permute.xlu0 0
      %448 = vperm.xlu0 %447, %v442
      %v449 = vpop.permute.xlu0 %448
      %v451 = vsub.f32 %v436, %v449
      %v452 = vmul.f32 %v451, 1.442695
      %v453 = vpow.pop %v452
      %v454 = vld [vmem:[#allocation3] sm:$0xff]
      %v455 = vmul.f32 %v454, %v445
      %v456 = vsel %vm438, %v453, 0.0
      %457 = vadd.xlane.f32.xlu0 %v456
      %v458 = vpop.xlane.xlu0 %457
      %v459 = vadd.f32 %v455, %v458
      %vm460 = vcmask 7168
      %461 = vst.msk [vmem:[#allocation3] sm:$0xff] %vm460, %v459
      %v462 = vld [vmem:[#allocation4] sm:$0xff]
      %464 = vset.pattern.permute.xlu0 0
      %465 = vperm.xlu0 %464, %v445
      %v466 = vpop.permute.xlu0 %465
      %v468 = vmul.f32 %v462, %v466
      %v469 = vpack.c.bf16 %v453, %v453
      %v472 = vunpack.c.l.b16 %v374
      %v473 = vunpack.c.l.b16 %v375
      %v474 = vpack.c.b16 %v473, %v472
      %v477 = vsel %vm438, %v469, 0
      %479 = vmatprep.subr.bf16.mxu0 0
      %480 = vmatpush1.bf16.msra.mxu0 0
      %481 = vmatprep.subr.bf16.mxu0 0
      %482 = vmatpush1.bf16.msra.mxu0 0
      %483 = vmatprep.subr.bf16.mxu0 0
      %484 = vmatpush1.bf16.msra.mxu0 0
      %485 = vmatprep.subr.bf16.mxu0 0
      %486 = vmatpush1.bf16.msra.mxu0 0
      %487 = vmatprep.subr.bf16.mxu0 0
      %488 = vmatpush1.bf16.msra.mxu0 0
      %489 = vmatprep.subr.bf16.mxu0 0
      %490 = vmatpush1.bf16.msra.mxu0 0
      %491 = vmatprep.subr.bf16.mxu0 0
      %492 = vmatpush1.bf16.msra.mxu0 0
      %493 = vmatprep.subr.bf16.mxu0 0
      %494 = vmatpush1.bf16.msra.mxu0 %v474
      %495 = vmatprep.subr.bf16.mxu0 0
      %496 = vmatpush2.bf16.msra.mxu0 0
      %497 = vmatprep.subr.bf16.mxu0 0
      %498 = vmatpush2.bf16.msra.mxu0 0
      %499 = vmatprep.subr.bf16.mxu0 0
      %500 = vmatpush2.bf16.msra.mxu0 0
      %501 = vmatprep.subr.bf16.mxu0 0
      %502 = vmatpush2.bf16.msra.mxu0 0
      %503 = vmatprep.subr.bf16.mxu0 0
      %504 = vmatpush2.bf16.msra.mxu0 0
      %505 = vmatprep.subr.bf16.mxu0 0
      %506 = vmatpush2.bf16.msra.mxu0 0
      %507 = vmatprep.subr.bf16.mxu0 0
      %508 = vmatpush2.bf16.msra.mxu0 0
      %509 = vmatprep.subr.bf16.mxu0 0
      %510 = vmatpush2.bf16.msra.mxu0 0
      %511 = vmatprep.mubr.bf16.mxu0 0
      %512 = vmatmul.mubr.bf16.gmra.mxu0 %v477
      %v513 = vpop.f32.mrf.mxu0
      %v514 = vadd.f32 0.0, %v513
      %v515 = vpop.f32.mrf.mxu0
      %v516 = vpop.f32.mrf.mxu0
      %v517 = vpop.f32.mrf.mxu0
      %518 = vdwg.mxu0
      %v519 = vadd.f32 %v468, %v514
      %520 = vst.msk [vmem:[#allocation4] sm:$0xff] %vm381, %v519
      %521 = vst.msk [vmem:[#allocation2] sm:$0xff] %vm460, %v442
      // Predicated region
      $region41: #{seq2seq_forward.25} parent=35 // pred_check
        %p522 = pneg %p362
      $region42: #{seq2seq_forward.25} parent=35 // pred_check_branch
        %524 = sbr.rel (%p522) target = $region44
      $region43: #{seq2seq_forward.25} parent=35 // pred_region
        %v525 = vld [vmem:[#allocation4] sm:$0xff]
        %v526 = vld [vmem:[#allocation3] sm:$0xff]
        %v527 = vrcp.pop %v526
        %529 = vset.pattern.permute.xlu0 0
        %530 = vperm.xlu0 %529, %v527
        %v531 = vpop.permute.xlu0 %530
        %v533 = vmul.f32 %v525, %v531
        %v534 = vpack.c.bf16 %v533, %v533
        %vm535 = vcmask 60416
        %536 = vst.msk [vmem:[%s360] sm:$0xf] %vm535, %v534
      $region44: #{seq2seq_forward.25} parent=35 // pred_fallthru
        _
      %p537 = scmp.lt.s32.totalorder %s20, 1
      %s538 = scalar_select %p537, %s20, 1
      %p539 = scmp.lt.s32.totalorder %s21, 3
      %s540 = scalar_select %p539, %s21, 3
      %s541 = smul.addr %s538, 4
      %s542 = sadd.s32 %s540, %s541
      %s543 = smul.addr %s542, 4
      %s544 = scalar_lea.vmem %s4, %s543
      // Predicated region
      $region45: #{seq2seq_forward.25} parent=35 // pred_check
        %p545 = pneg %p170
      $region46: #{seq2seq_forward.25} parent=35 // pred_check_branch
        %547 = sbr.rel (%p545) target = $region48
      $region47: #{seq2seq_forward.25} parent=35 // pred_region
        _
      $region48: #{seq2seq_forward.25} parent=35 // pred_fallthru
        _
    $region36: #{seq2seq_forward.25} parent=5 // pred_fallthru
      _
    %p548 = scmp.le.s32.totalorder 2, %s10
    // Predicated region
    $region49: #{seq2seq_forward.25} parent=5 // pred_check
      %p549 = pneg %p548
    $region50: #{seq2seq_forward.25} parent=5 // pred_check_branch
      %551 = sbr.rel (%p549) target = $region52
    $region51: #{seq2seq_forward.25} parent=5 // pred_region
      %s552 = ssub.s32 %s10, 2
      // Predicated region
      $region53: #{seq2seq_forward.25} parent=51 // pred_check
        %p553 = pneg %p176
      $region54: #{seq2seq_forward.25} parent=51 // pred_check_branch
        %555 = sbr.rel (%p553) target = $region56
      $region55: #{seq2seq_forward.25} parent=51 // pred_region
        %p556 = scmp.lt.s32.totalorder %s23, 1
        %s557 = scalar_select %p556, %s23, 1
        %p558 = scmp.lt.s32.totalorder %s24, 3
        %s559 = scalar_select %p558, %s24, 3
        %s560 = smul.addr %s557, 4
        %s561 = sadd.s32 %s559, %s560
        %s562 = smul.addr %s561, 4
        %s563 = scalar_lea.vmem %s4, %s562
      $region56: #{seq2seq_forward.25} parent=51 // pred_fallthru
        _
    $region52: #{seq2seq_forward.25} parent=5 // pred_fallthru
      _
  $region6: #{seq2seq_forward.25} parent=0 // loop_footer
    %s14 = sadd.s32 1, %s10
  $region7: #{seq2seq_forward.25} parent=0 // loop_footer_branch
    %9 = sbr.rel target = $region3
  $region8: #{seq2seq_forward.25} parent=0 // loop_exit
    _

// kernel: seq2seq_forward.28
$region0: #{seq2seq_forward.28}
  #allocation0 [shape = 'u32[]', space=smem, size = 0x4, offset = 0x4, fixed_abs, tag = 'smem constant byte address 0x4 - core index']
  #allocation1 [shape = 'u32[144,128]{1,0:T(1,128)}', space=vmem, size = 0x12000, scoped, tag = 'internal scratch']
  #allocation2 [shape = 'f32[16,32]{1,0:T(8,128)}', space=vmem, size = 0x2000, scoped, tag = 'scratch operand']
  %s0 = inlined_call_operand.vmem [shape: bf16[16,64], index: 0, kind: input, shape index: {}]
  %s1 = inlined_call_operand.vmem [shape: bf16[64,32], index: 1, kind: input, shape index: {}]
  %s2 = inlined_call_operand.vmem [shape: f32[1,32], index: 2, kind: input, shape index: {}]
  %s3 = inlined_call_operand.vmem [shape: bf16[16,32], index: 3, kind: input, shape index: {}]
  %s4 = inlined_call_operand.vmem [shape: f32[1,32], index: 4, kind: input, shape index: {}]
  %s5 = inlined_call_operand.vmem [shape: f32[1,32], index: 5, kind: input, shape index: {}]
  %s6 = inlined_call_operand.vmem [shape: bf16[16,32], index: 6, kind: output, shape index: {}]
  %s7 = sld [smem:[#allocation0]]
  $region42: #{seq2seq_forward.28} parent=0
    _
  %s9 = ssub.s32 1, %s7
  %s10 = scalar_select 0, %s9, %s7
  // Predicated region
  $region2: #{seq2seq_forward.28} parent=0 // pred_check
    _
  $region3: #{seq2seq_forward.28} parent=0 // pred_check_branch
    %12 = sbr.rel (0) target = $region5
  $region4: #{seq2seq_forward.28} parent=0 // pred_region
    _
  $region5: #{seq2seq_forward.28} parent=0 // pred_fallthru
    _
  // Predicated region
  $region6: #{seq2seq_forward.28} parent=0 // pred_check
    _
  $region7: #{seq2seq_forward.28} parent=0 // pred_check_branch
    %14 = sbr.rel (0) target = $region9
  $region8: #{seq2seq_forward.28} parent=0 // pred_region
    _
  $region9: #{seq2seq_forward.28} parent=0 // pred_fallthru
    _
  // Predicated region
  $region10: #{seq2seq_forward.28} parent=0 // pred_check
    _
  $region11: #{seq2seq_forward.28} parent=0 // pred_check_branch
    %16 = sbr.rel (0) target = $region13
  $region12: #{seq2seq_forward.28} parent=0 // pred_region
    _
  $region13: #{seq2seq_forward.28} parent=0 // pred_fallthru
    _
  // Predicated region
  $region14: #{seq2seq_forward.28} parent=0 // pred_check
    _
  $region15: #{seq2seq_forward.28} parent=0 // pred_check_branch
    %18 = sbr.rel (0) target = $region17
  $region16: #{seq2seq_forward.28} parent=0 // pred_region
    _
  $region17: #{seq2seq_forward.28} parent=0 // pred_fallthru
    _
  // Predicated region
  $region18: #{seq2seq_forward.28} parent=0 // pred_check
    _
  $region19: #{seq2seq_forward.28} parent=0 // pred_check_branch
    %20 = sbr.rel (0) target = $region21
  $region20: #{seq2seq_forward.28} parent=0 // pred_region
    _
  $region21: #{seq2seq_forward.28} parent=0 // pred_fallthru
    _
  // Predicated region
  $region22: #{seq2seq_forward.28} parent=0 // pred_check
    _
  $region23: #{seq2seq_forward.28} parent=0 // pred_check_branch
    %22 = sbr.rel (0) target = $region25
  $region24: #{seq2seq_forward.28} parent=0 // pred_region
    _
  $region25: #{seq2seq_forward.28} parent=0 // pred_fallthru
    _
  %p24 = scmp.eq.s32.totalorder 0, 0
  // Predicated region
  $region26: #{seq2seq_forward.28} parent=0 // pred_check
    %p25 = pneg %p24
  $region27: #{seq2seq_forward.28} parent=0 // pred_check_branch
    %27 = sbr.rel (%p25) target = $region29
  $region28: #{seq2seq_forward.28} parent=0 // pred_region
    %vm28 = vcmask 261120
    %29 = vst.msk [vmem:[#allocation2] sm:$0xff] %vm28, 0.0
    %30 = vst.msk [vmem:[#allocation2 + $0x8] sm:$0xff] %vm28, 0.0
  $region29: #{seq2seq_forward.28} parent=0 // pred_fallthru
    _
  %v31 = vld [vmem:[#allocation2] sm:$0xff]
  %v32 = vld [vmem:[#allocation2 + $0x8] sm:$0xff]
  %v33 = vld [vmem:[%s0] sm:$0xf]
  %v34 = vld [vmem:[%s0 + $0x4] sm:$0xf]
  %v35 = vld [vmem:[%s1] sm:$0xf]
  %v36 = vld [vmem:[%s1 + $0x4] sm:$0xf]
  %v37 = vld [vmem:[%s1 + $0x8] sm:$0xf]
  %v38 = vld [vmem:[%s1 + $0xc] sm:$0xf]
  %v39 = vld [vmem:[%s1 + $0x10] sm:$0xf]
  %v40 = vld [vmem:[%s1 + $0x14] sm:$0xf]
  %v41 = vld [vmem:[%s1 + $0x18] sm:$0xf]
  %v42 = vld [vmem:[%s1 + $0x1c] sm:$0xf]
  %v45 = vunpack.c.l.b16 %v33
  %v46 = vunpack.c.l.b16 %v34
  %v47 = vpack.c.b16 %v46, %v45
  %v56 = vunpack.c.l.b16 %v35
  %v57 = vunpack.c.l.b16 %v36
  %v58 = vunpack.c.l.b16 %v37
  %v59 = vunpack.c.l.b16 %v38
  %v60 = vunpack.c.l.b16 %v39
  %v61 = vunpack.c.l.b16 %v40
  %v62 = vunpack.c.l.b16 %v41
  %v63 = vunpack.c.l.b16 %v42
  %v64 = vpack.c.b16 %v57, %v56
  %v65 = vpack.c.b16 %v59, %v58
  %v66 = vpack.c.b16 %v61, %v60
  %v67 = vpack.c.b16 %v63, %v62
  %vm72 = vcmask 523264
  %v74 = vsel %vm72, %v47, 0
  %76 = vmatprep.subr.bf16.mxu0 0
  %77 = vmatpush1.bf16.msra.mxu0 0
  %78 = vmatprep.subr.bf16.mxu0 0
  %79 = vmatpush1.bf16.msra.mxu0 0
  %80 = vmatprep.subr.bf16.mxu0 0
  %81 = vmatpush1.bf16.msra.mxu0 0
  %82 = vmatprep.subr.bf16.mxu0 0
  %83 = vmatpush1.bf16.msra.mxu0 0
  %84 = vmatprep.subr.bf16.mxu0 0
  %85 = vmatpush1.bf16.msra.mxu0 %v67
  %86 = vmatprep.subr.bf16.mxu0 0
  %87 = vmatpush1.bf16.msra.mxu0 %v66
  %88 = vmatprep.subr.bf16.mxu0 0
  %89 = vmatpush1.bf16.msra.mxu0 %v65
  %90 = vmatprep.subr.bf16.mxu0 0
  %91 = vmatpush1.bf16.msra.mxu0 %v64
  %92 = vmatprep.subr.bf16.mxu0 0
  %93 = vmatpush2.bf16.msra.mxu0 0
  %94 = vmatprep.subr.bf16.mxu0 0
  %95 = vmatpush2.bf16.msra.mxu0 0
  %96 = vmatprep.subr.bf16.mxu0 0
  %97 = vmatpush2.bf16.msra.mxu0 0
  %98 = vmatprep.subr.bf16.mxu0 0
  %99 = vmatpush2.bf16.msra.mxu0 0
  %100 = vmatprep.subr.bf16.mxu0 0
  %101 = vmatpush2.bf16.msra.mxu0 0
  %102 = vmatprep.subr.bf16.mxu0 0
  %103 = vmatpush2.bf16.msra.mxu0 0
  %104 = vmatprep.subr.bf16.mxu0 0
  %105 = vmatpush2.bf16.msra.mxu0 0
  %106 = vmatprep.subr.bf16.mxu0 0
  %107 = vmatpush2.bf16.msra.mxu0 0
  %108 = vmatprep.mubr.bf16.mxu0 0
  %109 = vmatmul.mubr.bf16.gmra.mxu0 %v74
  %v110 = vpop.f32.mrf.mxu0
  %v111 = vadd.f32 0.0, %v110
  %v112 = vpop.f32.mrf.mxu0
  %v113 = vpop.f32.mrf.mxu0
  %v114 = vadd.f32 0.0, %v113
  %v115 = vpop.f32.mrf.mxu0
  %116 = vdwg.mxu0
  %v117 = vadd.f32 %v31, %v111
  %v118 = vadd.f32 %v32, %v114
  %vm119 = vcmask 261120
  %120 = vst.msk [vmem:[#allocation2] sm:$0xff] %vm119, %v117
  %121 = vst.msk [vmem:[#allocation2 + $0x8] sm:$0xff] %vm119, %v118
  // Predicated region
  $region30: #{seq2seq_forward.28} parent=0 // pred_check
    %p122 = pneg %p24
  $region31: #{seq2seq_forward.28} parent=0 // pred_check_branch
    %124 = sbr.rel (%p122) target = $region33
  $region32: #{seq2seq_forward.28} parent=0 // pred_region
    %v125 = vld [vmem:[#allocation2] sm:$0xff]
    %v126 = vld [vmem:[#allocation2 + $0x8] sm:$0xff]
    %v127 = vld [vmem:[%s2] sm:$0x1]
    %v129 = vlaneseq
    %v130 = vshrl.u32 %v129, 7
    %v131 = vsub.s32 0, %v130
    %v132 = vrot.slane %v127, %v131
    %v134 = vadd.f32 %v125, %v132
    %v135 = vadd.f32 %v126, %v132
    %v136 = vld [vmem:[%s3] sm:$0xf]
    %v137 = vld [vmem:[%s3 + $0x4] sm:$0xf]
    %v138 = vunpack.c.l.bf16 %v136
    %v139 = vunpack.c.l.bf16 %v137
    %v140 = vadd.f32 %v134, %v138
    %v141 = vadd.f32 %v135, %v139
    %v142 = vsel %vm119, %v140, 0.0
    %143 = vadd.xlane.f32.xlu0 %v142
    %v144 = vpop.xlane.xlu0 %143
    %v145 = vsel %vm119, %v141, 0.0
    %146 = vadd.xlane.f32.xlu0 %v145
    %v147 = vpop.xlane.xlu0 %146
    %v148 = vrcp.pop 32.0
    %v149 = vmul.f32 %v144, %v148
    %v150 = vmul.f32 %v147, %v148
    %v151 = vsub.f32 %v140, %v149
    %v152 = vsub.f32 %v141, %v150
    %v153 = vmul.f32 %v151, %v151
    %v154 = vmul.f32 %v152, %v152
    %v155 = vsel %vm119, %v153, 0.0
    %156 = vadd.xlane.f32.xlu0 %v155
    %v157 = vpop.xlane.xlu0 %156
    %v158 = vsel %vm119, %v154, 0.0
    %159 = vadd.xlane.f32.xlu0 %v158
    %v160 = vpop.xlane.xlu0 %159
    %v161 = vmul.f32 %v157, %v148
    %v162 = vmul.f32 %v160, %v148
    %v163 = vadd.f32 %v161, 1e-05
    %v164 = vadd.f32 %v162, 1e-05
    %v165 = vrsqrt.pop %v163
    %v166 = vrsqrt.pop %v164
    %v167 = vmul.f32 %v151, %v165
    %v168 = vmul.f32 %v152, %v166
    %v169 = vld [vmem:[%s4] sm:$0x1]
    %v171 = vlaneseq
    %v172 = vshrl.u32 %v171, 7
    %v173 = vsub.s32 0, %v172
    %v174 = vrot.slane %v169, %v173
    %v176 = vmul.f32 %v167, %v174
    %v177 = vmul.f32 %v168, %v174
    %v178 = vld [vmem:[%s5] sm:$0x1]
    %v180 = vlaneseq
    %v181 = vshrl.u32 %v180, 7
    %v182 = vsub.s32 0, %v181
    %v183 = vrot.slane %v178, %v182
    %v185 = vadd.f32 %v176, %v183
    %v186 = vadd.f32 %v177, %v183
    %v187 = vpack.c.bf16 %v186, %v185
    %v189 = vunpack.c.l.b16 %v187
    %v190 = vunpack.c.h.b16 %v187
    %v191 = vpack.c.b16 %v189, %v189
    %v192 = vpack.c.b16 %v190, %v190
    %vm195 = vcmask 257024
    %196 = vst.msk [vmem:[%s6] sm:$0xf] %vm195, %v191
    %197 = vst.msk [vmem:[%s6 + $0x4] sm:$0xf] %vm195, %v192
  $region33: #{seq2seq_forward.28} parent=0 // pred_fallthru
    _
  // Predicated region
  $region34: #{seq2seq_forward.28} parent=0 // pred_check
    _
  $region35: #{seq2seq_forward.28} parent=0 // pred_check_branch
    %199 = sbr.rel (0) target = $region37
  $region36: #{seq2seq_forward.28} parent=0 // pred_region
    _
  $region37: #{seq2seq_forward.28} parent=0 // pred_fallthru
    _
  // Predicated region
  $region38: #{seq2seq_forward.28} parent=0 // pred_check
    _
  $region39: #{seq2seq_forward.28} parent=0 // pred_check_branch
    %201 = sbr.rel (0) target = $region41
  $region40: #{seq2seq_forward.28} parent=0 // pred_region
    _
  $region41: #{seq2seq_forward.28} parent=0 // pred_fallthru
    _

// kernel: seq2seq_forward.39
$region0: #{seq2seq_forward.39}
  #allocation0 [shape = 'u32[]', space=smem, size = 0x4, offset = 0x4, fixed_abs, tag = 'smem constant byte address 0x4 - core index']
  #allocation1 [shape = 'u32[144,128]{1,0:T(1,128)}', space=vmem, size = 0x12000, scoped, tag = 'internal scratch']
  #allocation2 [shape = 'f32[1,14]{1,0:T(1,128)}', space=vmem, size = 0x200, scoped, tag = 'scratch operand']
  #allocation3 [shape = 'f32[1,14]{1,0:T(1,128)}', space=vmem, size = 0x200, scoped, tag = 'scratch operand']
  #allocation4 [shape = 'f32[1,14]{1,0:T(1,128)}', space=vmem, size = 0x200, scoped, tag = 'scratch operand']
  %s0 = inlined_call_operand.vmem [shape: s32[1,14], index: 0, kind: input, shape index: {}]
  %s1 = inlined_call_operand.vmem [shape: bf16[14,32], index: 1, kind: input, shape index: {}]
  %s2 = inlined_call_operand.vmem [shape: bf16[64,32], index: 2, kind: input, shape index: {}]
  %s3 = inlined_call_operand.vmem [shape: f32[1,14], index: 3, kind: output, shape index: {}]
  %s4 = sld [smem:[#allocation0]]
  $region30: #{seq2seq_forward.39} parent=0
    _
  %s6 = ssub.s32 1, %s4
  %s7 = scalar_select 0, %s6, %s4
  // Predicated region
  $region2: #{seq2seq_forward.39} parent=0 // pred_check
    _
  $region3: #{seq2seq_forward.39} parent=0 // pred_check_branch
    %9 = sbr.rel (0) target = $region5
  $region4: #{seq2seq_forward.39} parent=0 // pred_region
    _
  $region5: #{seq2seq_forward.39} parent=0 // pred_fallthru
    _
  // Predicated region
  $region6: #{seq2seq_forward.39} parent=0 // pred_check
    _
  $region7: #{seq2seq_forward.39} parent=0 // pred_check_branch
    %11 = sbr.rel (0) target = $region9
  $region8: #{seq2seq_forward.39} parent=0 // pred_region
    _
  $region9: #{seq2seq_forward.39} parent=0 // pred_fallthru
    _
  // Predicated region
  $region10: #{seq2seq_forward.39} parent=0 // pred_check
    _
  $region11: #{seq2seq_forward.39} parent=0 // pred_check_branch
    %13 = sbr.rel (0) target = $region13
  $region12: #{seq2seq_forward.39} parent=0 // pred_region
    _
  $region13: #{seq2seq_forward.39} parent=0 // pred_fallthru
    _
  %p15 = scmp.eq.s32.totalorder 0, 0
  // Predicated region
  $region14: #{seq2seq_forward.39} parent=0 // pred_check
    %p16 = pneg %p15
  $region15: #{seq2seq_forward.39} parent=0 // pred_check_branch
    %18 = sbr.rel (%p16) target = $region17
  $region16: #{seq2seq_forward.39} parent=0 // pred_region
    %vm19 = vcmask 106496
    %20 = vst.msk [vmem:[#allocation2] sm:$0x1] %vm19, -1e+30
    %21 = vst.msk [vmem:[#allocation3] sm:$0x1] %vm19, 0.0
    %22 = vst.msk [vmem:[#allocation4] sm:$0x1] %vm19, 0.0
  $region17: #{seq2seq_forward.39} parent=0 // pred_fallthru
    _
  %v23 = vld [vmem:[%s2] sm:$0xf]
  %v24 = vld [vmem:[%s2 + $0x4] sm:$0xf]
  %v25 = vld [vmem:[%s2 + $0x8] sm:$0xf]
  %v26 = vld [vmem:[%s2 + $0xc] sm:$0xf]
  %v27 = vld [vmem:[%s2 + $0x10] sm:$0xf]
  %v28 = vld [vmem:[%s2 + $0x14] sm:$0xf]
  %v29 = vld [vmem:[%s2 + $0x18] sm:$0xf]
  %v30 = vld [vmem:[%s2 + $0x1c] sm:$0xf]
  %v31 = vld [vmem:[%s1] sm:$0xf]
  %v32 = vld [vmem:[%s1 + $0x4] sm:$0x7]
  %v41 = vunpack.c.l.b16 %v23
  %v42 = vunpack.c.l.b16 %v24
  %v43 = vunpack.c.l.b16 %v25
  %v44 = vunpack.c.l.b16 %v26
  %v45 = vunpack.c.l.b16 %v27
  %v46 = vunpack.c.l.b16 %v28
  %v47 = vunpack.c.l.b16 %v29
  %v48 = vunpack.c.l.b16 %v30
  %v49 = vpack.c.b16 %v42, %v41
  %v50 = vpack.c.b16 %v44, %v43
  %v51 = vpack.c.b16 %v46, %v45
  %v52 = vpack.c.b16 %v48, %v47
  %v55 = vunpack.c.l.b16 %v31
  %v56 = vunpack.c.l.b16 %v32
  %v57 = vpack.c.b16 %v56, %v55
  %vm58 = vcmask 261120
  %v60 = vsel %vm58, %v49, 0
  %v63 = vsel %vm58, %v50, 0
  %v66 = vsel %vm58, %v51, 0
  %v69 = vsel %vm58, %v52, 0
  %v72 = vsel %vm58, %v57, 0
  %74 = vmatprep.subr.bf16.mxu0 0
  %75 = vmatpush1.bf16.xpose.msra.mxu0 0
  %76 = vmatprep.subr.bf16.mxu0 0
  %77 = vmatpush1.bf16.xpose.msra.mxu0 0
  %78 = vmatprep.subr.bf16.mxu0 0
  %79 = vmatpush1.bf16.xpose.msra.mxu0 0
  %80 = vmatprep.subr.bf16.mxu0 0
  %81 = vmatpush1.bf16.xpose.msra.mxu0 0
  %82 = vmatprep.subr.bf16.mxu0 0
  %83 = vmatpush1.bf16.xpose.msra.mxu0 0
  %84 = vmatprep.subr.bf16.mxu0 0
  %85 = vmatpush1.bf16.xpose.msra.mxu0 0
  %86 = vmatprep.subr.bf16.mxu0 0
  %87 = vmatpush1.bf16.xpose.msra.mxu0 0
  %88 = vmatprep.subr.bf16.mxu0 0
  %89 = vmatpush1.bf16.xpose.msra.mxu0 %v72
  %90 = vmatprep.subr.bf16.mxu0 0
  %91 = vmatpush2.bf16.xpose.msra.mxu0 0
  %92 = vmatprep.subr.bf16.mxu0 0
  %93 = vmatpush2.bf16.xpose.msra.mxu0 0
  %94 = vmatprep.subr.bf16.mxu0 0
  %95 = vmatpush2.bf16.xpose.msra.mxu0 0
  %96 = vmatprep.subr.bf16.mxu0 0
  %97 = vmatpush2.bf16.xpose.msra.mxu0 0
  %98 = vmatprep.subr.bf16.mxu0 0
  %99 = vmatpush2.bf16.xpose.msra.mxu0 0
  %100 = vmatprep.subr.bf16.mxu0 0
  %101 = vmatpush2.bf16.xpose.msra.mxu0 0
  %102 = vmatprep.subr.bf16.mxu0 0
  %103 = vmatpush2.bf16.xpose.msra.mxu0 0
  %104 = vmatprep.subr.bf16.mxu0 0
  %105 = vmatpush2.bf16.xpose.msra.mxu0 0
  %106 = vmatprep.mubr.bf16.mxu0 0
  %107 = vmatmul.mubr.bf16.gmra.mxu0 %v60
  %v108 = vpop.f32.mrf.mxu0
  %v109 = vadd.f32 0.0, %v108
  %v110 = vpop.f32.mrf.mxu0
  %v111 = vpop.f32.mrf.mxu0
  %v112 = vadd.f32 0.0, %v111
  %v113 = vpop.f32.mrf.mxu0
  %114 = vmatprep.mubr.bf16.mxu0 0
  %115 = vmatmul.mubr.bf16.gmra.mxu0 %v63
  %v116 = vpop.f32.mrf.mxu0
  %v117 = vadd.f32 0.0, %v116
  %v118 = vpop.f32.mrf.mxu0
  %v119 = vpop.f32.mrf.mxu0
  %v120 = vadd.f32 0.0, %v119
  %v121 = vpop.f32.mrf.mxu0
  %122 = vmatprep.mubr.bf16.mxu0 0
  %123 = vmatmul.mubr.bf16.gmra.mxu0 %v66
  %v124 = vpop.f32.mrf.mxu0
  %v125 = vadd.f32 0.0, %v124
  %v126 = vpop.f32.mrf.mxu0
  %v127 = vpop.f32.mrf.mxu0
  %v128 = vadd.f32 0.0, %v127
  %v129 = vpop.f32.mrf.mxu0
  %130 = vmatprep.mubr.bf16.mxu0 0
  %131 = vmatmul.mubr.bf16.gmra.mxu0 %v69
  %v132 = vpop.f32.mrf.mxu0
  %v133 = vadd.f32 0.0, %v132
  %v134 = vpop.f32.mrf.mxu0
  %v135 = vpop.f32.mrf.mxu0
  %v136 = vadd.f32 0.0, %v135
  %v137 = vpop.f32.mrf.mxu0
  %138 = vdwg.mxu0
  %v139 = vlaneseq
  %v140 = vshrl.u32 %v139, 7
  %v141 = vadd.s32 %v140, 8
  %v142 = vadd.s32 %v140, 16
  %v143 = vadd.s32 %v140, 24
  %v144 = vadd.s32 %v140, 32
  %v145 = vadd.s32 %v140, 40
  %v146 = vadd.s32 %v140, 48
  %v147 = vadd.s32 %v140, 56
  %v148 = vld [vmem:[#allocation2] sm:$0x1]
  %vm149 = vcmask 113664
  %v150 = vsel %vm149, %v109, -inf
  %v151 = vsel %vm149, %v112, -inf
  %v152 = vsel %vm149, %v117, -inf
  %v153 = vsel %vm149, %v120, -inf
  %v154 = vsel %vm149, %v125, -inf
  %v155 = vmax.f32 %v150, %v154
  %v156 = vsel %vm149, %v128, -inf
  %v157 = vmax.f32 %v151, %v156
  %v158 = vsel %vm149, %v133, -inf
  %v159 = vmax.f32 %v152, %v158
  %v160 = vsel %vm149, %v136, -inf
  %v161 = vmax.f32 %v153, %v160
  %v162 = vmax.f32 %v155, %v157
  %v163 = vmax.f32 %v159, %v161
  %v164 = vmax.f32 %v162, %v163
  %v165 = vrot.slane %v164, 4
  %v166 = vmax.f32 %v164, %v165
  %v167 = vrot.slane %v166, 2
  %v168 = vmax.f32 %v166, %v167
  %v169 = vrot.slane %v168, 1
  %v170 = vmax.f32 %v168, %v169
  %v171 = vmax.f32 %v148, %v170
  %v172 = vsub.f32 %v148, %v171
  %v173 = vmul.f32 %v172, 1.442695
  %v174 = vpow.pop %v173
  %v175 = vld [vmem:[#allocation3] sm:$0x1]
  %v176 = vmul.f32 %v175, %v174
  %v178 = vlaneseq
  %v179 = vshrl.u32 %v178, 7
  %v180 = vsub.s32 0, %v179
  %v181 = vrot.slane %v171, %v180
  %v183 = vsub.f32 %v109, %v181
  %v184 = vsub.f32 %v112, %v181
  %v185 = vsub.f32 %v117, %v181
  %v186 = vsub.f32 %v120, %v181
  %v187 = vsub.f32 %v125, %v181
  %v188 = vsub.f32 %v128, %v181
  %v189 = vsub.f32 %v133, %v181
  %v190 = vsub.f32 %v136, %v181
  %v191 = vmul.f32 %v183, 1.442695
  %v192 = vpow.pop %v191
  %v193 = vmul.f32 %v184, 1.442695
  %v194 = vpow.pop %v193
  %v195 = vmul.f32 %v185, 1.442695
  %v196 = vpow.pop %v195
  %v197 = vmul.f32 %v186, 1.442695
  %v198 = vpow.pop %v197
  %v199 = vmul.f32 %v187, 1.442695
  %v200 = vpow.pop %v199
  %v201 = vmul.f32 %v188, 1.442695
  %v202 = vpow.pop %v201
  %v203 = vmul.f32 %v189, 1.442695
  %v204 = vpow.pop %v203
  %v205 = vmul.f32 %v190, 1.442695
  %v206 = vpow.pop %v205
  %v207 = vsel %vm149, %v192, 0.0
  %v208 = vsel %vm149, %v194, 0.0
  %v209 = vadd.f32 %v207, %v208
  %v210 = vsel %vm149, %v196, 0.0
  %v211 = vadd.f32 %v209, %v210
  %v212 = vsel %vm149, %v198, 0.0
  %v213 = vadd.f32 %v211, %v212
  %v214 = vsel %vm149, %v200, 0.0
  %v215 = vadd.f32 %v213, %v214
  %v216 = vsel %vm149, %v202, 0.0
  %v217 = vadd.f32 %v215, %v216
  %v218 = vsel %vm149, %v204, 0.0
  %v219 = vadd.f32 %v217, %v218
  %v220 = vsel %vm149, %v206, 0.0
  %v221 = vadd.f32 %v219, %v220
  %v222 = vrot.slane %v221, 4
  %v223 = vadd.f32 %v221, %v222
  %v224 = vrot.slane %v223, 2
  %v225 = vadd.f32 %v223, %v224
  %v226 = vrot.slane %v225, 1
  %v227 = vadd.f32 %v225, %v226
  %v228 = vadd.f32 %v176, %v227
  %vm229 = vcmask 106496
  %230 = vst.msk [vmem:[#allocation3] sm:$0x1] %vm229, %v228
  %231 = vst.msk [vmem:[#allocation2] sm:$0x1] %vm229, %v171
  %v232 = vld [vmem:[%s0] sm:$0x1]
  %s233 = smul.u32 0, 64
  %v234 = vstv %s233
  %v235 = vsub.s32 %v232, %v234
  %v236 = vld [vmem:[#allocation4] sm:$0x1]
  %v237 = vlaneseq
  %v238 = vshrl.u32 %v237, 7
  %v239 = vsub.s32 0, %v238
  %v240 = vrot.slane %v235, %v239
  %vm241 = vcmp.eq.s32.totalorder %v140, %v240
  %vm242 = vcmp.eq.s32.totalorder %v141, %v240
  %vm243 = vcmp.eq.s32.totalorder %v142, %v240
  %vm244 = vcmp.eq.s32.totalorder %v143, %v240
  %vm245 = vcmp.eq.s32.totalorder %v144, %v240
  %vm246 = vcmp.eq.s32.totalorder %v145, %v240
  %vm247 = vcmp.eq.s32.totalorder %v146, %v240
  %vm248 = vcmp.eq.s32.totalorder %v147, %v240
  %v249 = vsel %vm241, %v109, 0.0
  %v250 = vsel %vm242, %v112, 0.0
  %v251 = vsel %vm243, %v117, 0.0
  %v252 = vsel %vm244, %v120, 0.0
  %v253 = vsel %vm245, %v125, 0.0
  %v254 = vsel %vm246, %v128, 0.0
  %v255 = vsel %vm247, %v133, 0.0
  %v256 = vsel %vm248, %v136, 0.0
  %v257 = vsel %vm149, %v249, 0.0
  %v258 = vsel %vm149, %v250, 0.0
  %v259 = vadd.f32 %v257, %v258
  %v260 = vsel %vm149, %v251, 0.0
  %v261 = vadd.f32 %v259, %v260
  %v262 = vsel %vm149, %v252, 0.0
  %v263 = vadd.f32 %v261, %v262
  %v264 = vsel %vm149, %v253, 0.0
  %v265 = vadd.f32 %v263, %v264
  %v266 = vsel %vm149, %v254, 0.0
  %v267 = vadd.f32 %v265, %v266
  %v268 = vsel %vm149, %v255, 0.0
  %v269 = vadd.f32 %v267, %v268
  %v270 = vsel %vm149, %v256, 0.0
  %v271 = vadd.f32 %v269, %v270
  %v272 = vrot.slane %v271, 4
  %v273 = vadd.f32 %v271, %v272
  %v274 = vrot.slane %v273, 2
  %v275 = vadd.f32 %v273, %v274
  %v276 = vrot.slane %v275, 1
  %v277 = vadd.f32 %v275, %v276
  %v278 = vadd.f32 %v236, %v277
  %279 = vst.msk [vmem:[#allocation4] sm:$0x1] %vm229, %v278
  // Predicated region
  $region18: #{seq2seq_forward.39} parent=0 // pred_check
    %p280 = pneg %p15
  $region19: #{seq2seq_forward.39} parent=0 // pred_check_branch
    %282 = sbr.rel (%p280) target = $region21
  $region20: #{seq2seq_forward.39} parent=0 // pred_region
    %v283 = vld [vmem:[#allocation2] sm:$0x1]
    %v284 = vld [vmem:[#allocation3] sm:$0x1]
    %v285 = vlog2.pop %v284
    %v286 = vmul.f32 %v285, 0.6931472
    %v287 = vadd.f32 %v283, %v286
    %v288 = vld [vmem:[#allocation4] sm:$0x1]
    %v289 = vsub.f32 %v287, %v288
    %290 = vst.msk [vmem:[%s3] sm:$0x1] %vm229, %v289
  $region21: #{seq2seq_forward.39} parent=0 // pred_fallthru
    _
  // Predicated region
  $region22: #{seq2seq_forward.39} parent=0 // pred_check
    _
  $region23: #{seq2seq_forward.39} parent=0 // pred_check_branch
    %292 = sbr.rel (0) target = $region25
  $region24: #{seq2seq_forward.39} parent=0 // pred_region
    _
  $region25: #{seq2seq_forward.39} parent=0 // pred_fallthru
    _
  // Predicated region
  $region26: #{seq2seq_forward.39} parent=0 // pred_check
    _
  $region27: #{seq2seq_forward.39} parent=0 // pred_check_branch
    %294 = sbr.rel (0) target = $region29
  $region28: #{seq2seq_forward.39} parent=0 // pred_region
    _
  $region29: #{seq2seq_forward.39} parent=0 // pred_fallthru
    _

</llo_original>
